<compile_context>
chip_gen: v7x
topology: tpu7x:2x2x1
jax: 0.10.0
libtpu: 0.0.40
codegen_flags: <defaults>
</compile_context>

<pallas_src>
import numpy as np
import jax
import jax.numpy as jnp
from jax import lax
from jax.experimental import pallas as pl
from jax.experimental.pallas import tpu as pltpu

EPS = 1e-5
K1 = 10        # firstconv kernel width
K1P = 16       # firstconv contraction padded to a sublane tile
KSEP = 4       # separable depthwise kernel width
NPOOL = 4      # AvgPool window / stride


def _derived_sizes(C, T):
    T1 = T + 1                       # width after firstconv (pad 5, kernel 10)
    P1 = (T1 - 4) // 4 + 1           # width after first AvgPool(1,4)
    W2 = P1 + 1                      # width after separable depthwise conv
    P2 = (W2 - 4) // 4 + 1           # width after second AvgPool(1,4)
    DW = 4 * P1                      # time positions that reach pool #1
    return T1, P1, W2, P2, DW


def make_kernel(C, T, NB):
    nd = C - 1
    _, P1, _, _, DW = _derived_sizes(C, T)
    BQ = NB * P1                     # per-channel block width inside a phase slab
    CQ = C * BQ                      # width of one pool-phase slab
    WZ = NPOOL * CQ                  # full z width
    del DW

    def kernel(xcol_ref, w1_ref, wd_ref, bd_ref, ws_ref, wp_ref, bp_ref,
               wfe_ref, mask_ref, sm_ref, fcb_ref, out_ref, z_scr):
        # ---- firstconv Conv2d(1,16,(1,10)) + folded BN scale: one MXU matmul
        #      over the host-side im2col slab (bias folded into depthconv bias).
        z_scr[...] = jnp.dot(w1_ref[...], xcol_ref[0],
                             preferred_element_type=jnp.float32)

        acc = None                   # (32, NB) per-sample partial fc sums
        for i in range(nd):          # static: nd = C-1 dilation branches
            d = i + 1
            H = C - d
            W1 = H * BQ
            wd_i = wd_ref[i]         # (32, 32) grouped dilated conv (BN folded)
            bd_i = bd_ref[i]         # (32, 1)

            # grouped dilated (2,1) depthconv + BN + ReLU + AvgPool(1,4):
            # one matmul per pool phase j, pooled by summing the 4 phases.
            u = None
            for j in range(NPOOL):
                base = j * CQ
                zt = z_scr[:, base:base + W1]                      # z[:, h]
                zb = z_scr[:, base + d * BQ:base + d * BQ + W1]    # z[:, h+d]
                rhs = jnp.concatenate([zt, zb], axis=0)            # (32, W1)
                t0 = jnp.maximum(
                    jnp.dot(wd_i, rhs, preferred_element_type=jnp.float32)
                    + bd_i, 0.0)
                u = t0 if u is None else u + t0
            u = u * 0.25                                           # (32, W1)

            # separable depthwise (1,4) conv; block-boundary zero padding is
            # handled by precomputed masks (no physical pad columns).
            ws_i = ws_ref[i]                                       # (32, KSEP)
            v = ws_i[:, 2:3] * u                                   # kw=2, shift 0
            for kw in (0, 1, 3):
                r = 2 - kw                                         # lane shift
                if r > 0:
                    sh = jnp.concatenate(
                        [jnp.zeros((32, r), jnp.float32), u[:, :W1 - r]], axis=1)
                else:
                    sh = jnp.concatenate(
                        [u[:, -r:], jnp.zeros((32, -r), jnp.float32)], axis=1)
                v = v + ws_i[:, kw:kw + 1] * (sh * mask_ref[kw, :, 0:W1])

            # pointwise 1x1 conv + folded BN + ReLU (one MXU matmul)
            p = jnp.maximum(
                jnp.dot(wp_ref[i], v, preferred_element_type=jnp.float32)
                + bp_ref[i], 0.0)                                  # (32, W1)

            # AvgPool #2 + Linear folded into wfe; per-sample reduce via one
            # summation matmul against the 0/1 (lane -> sample) matrix.
            m = p * wfe_ref[i, :, 0:W1]
            part = jnp.dot(m, sm_ref[0:W1, :],
                           preferred_element_type=jnp.float32)     # (32, NB)
            acc = part if acc is None else acc + part

        out_ref[0] = jnp.sum(acc, axis=0, keepdims=True) + fcb_ref[...]

    return kernel


def eegnet_trans_power_forward(x, params, block_n=128):
    """Eval-mode forward of EEGNet_trans_power.  x: (N,1,C,T) f32 -> (N,) f32."""
    N, _, C, T = x.shape
    nd = C - 1
    T1, P1, W2, P2, DW = _derived_sizes(C, T)
    assert 4 * P2 <= P1, "unsupported time geometry (4*P2 > P1)"
    del T1, W2

    NB = int(min(max(N, 1), block_n))       # samples per grid step
    NBLK = -(-N // NB)
    NP = NBLK * NB
    BQ = NB * P1
    CQ = C * BQ
    WZ = NPOOL * CQ
    WMAX = nd * BQ
    TPAD = T + K1

    # ---------- fold eval-mode BatchNorm into conv weights ----------
    g1, be1, m1, v1 = params["bn1"]
    s1 = g1 / jnp.sqrt(v1 + EPS)
    w1f = params["w1"][:, 0, 0, :] * s1[:, None]                  # (16, 10)
    b1f = be1 - m1 * s1                                           # (16,)
    w1_arg = jnp.pad(w1f, ((0, 0), (0, K1P - K1)))                # (16, 16)

    rows = np.arange(32)
    wd_l, bd_l, ws_l, wp_l, bp_l, wfe_l = [], [], [], [], [], []
    wfc = params["fc_w"]                                          # (1, F)
    off = 0
    for i in range(nd):
        d = i + 1
        H = C - d
        gd, bd_, md, vd = params["bnd"][i]
        sd = gd / jnp.sqrt(vd + EPS)
        wd = params["wd"][i][:, 0, :, 0]                          # (32, 2)
        m0 = jnp.zeros((32, 16), jnp.float32).at[rows, rows // 2].set(wd[:, 0] * sd)
        m1a = jnp.zeros((32, 16), jnp.float32).at[rows, rows // 2].set(wd[:, 1] * sd)
        wd_arg = jnp.concatenate([m0, m1a], axis=1)               # (32, 32)
        # fold the firstconv bias into the (BN-folded) depthconv bias
        bd_arg = (bd_ - md * sd) + wd_arg @ jnp.concatenate([b1f, b1f])
        ws_arg = params["ws"][i][:, 0, 0, :]                      # (32, 4)
        gs, bs_, ms, vs = params["bns"][i]
        ss = gs / jnp.sqrt(vs + EPS)
        wp_arg = params["wp"][i][:, :, 0, 0] * ss[:, None]        # (32, 32)
        bp_arg = bs_ - ms * ss                                    # (32,)
        nfeat = 32 * H * P2
        w3 = wfc[0, off:off + nfeat].reshape(32, H, P2)
        off += nfeat
        w3e = jnp.repeat(w3, 4, axis=2) * 0.25                    # (32, H, 4*P2)
        w3e = jnp.pad(w3e, ((0, 0), (0, 0), (0, P1 - 4 * P2)))    # (32, H, P1)
        w3e = jnp.broadcast_to(w3e[:, :, None, :], (32, H, NB, P1))
        w3e = jnp.pad(w3e.reshape(32, H * BQ),
                      ((0, 0), (0, WMAX - H * BQ)))               # (32, WMAX)
        wd_l.append(wd_arg); bd_l.append(bd_arg[:, None])
        ws_l.append(ws_arg); wp_l.append(wp_arg)
        bp_l.append(bp_arg[:, None]); wfe_l.append(w3e)
    assert off == wfc.shape[1], "fc in_features mismatch"

    wd_s = jnp.stack(wd_l); bd_s = jnp.stack(bd_l)
    ws_s = jnp.stack(ws_l); wp_s = jnp.stack(wp_l)
    bp_s = jnp.stack(bp_l); wfe_s = jnp.stack(wfe_l)
    fcb_arg = params["fc_b"].reshape(1, 1)

    # separable-conv block-boundary masks (per tap) and the per-sample
    # summation matrix (lane -> sample), both precomputed host-side.
    qmod = np.arange(WMAX) % P1
    masks = np.zeros((KSEP, 1, WMAX), np.float32)
    for kw in range(KSEP):
        src = qmod + kw - 2
        masks[kw, 0] = ((src >= 0) & (src < P1)).astype(np.float32)
    mask_arg = jnp.asarray(masks)

    sm = np.zeros((WMAX, NB), np.float32)
    lanes = np.arange(WMAX)
    sm[lanes, (lanes // P1) % NB] = 1.0
    sm_arg = jnp.asarray(sm)

    # ---------- host-side im2col for the firstconv (layout plumbing) ----------
    # lane layout of z: ((j*C + c)*NB + n)*P1 + p  holds time position 4p + j.
    xpad = jnp.pad(x[:, 0], ((0, NP - N), (0, 0), (K1 // 2, K1 // 2)))  # (NP,C,TPAD)
    assert xpad.shape[-1] == TPAD
    jj, pp = np.meshgrid(np.arange(NPOOL), np.arange(P1), indexing="ij")
    idx = (4 * pp + jj)[None, :, :] + np.arange(K1)[:, None, None]      # (K1,4,P1)
    xg = xpad[:, :, idx]                                         # (NP,C,K1,4,P1)
    xg = xg.reshape(NBLK, NB, C, K1, NPOOL, P1)
    xcol = jnp.transpose(xg, (0, 3, 4, 2, 1, 5)).reshape(NBLK, K1, WZ)
    xcol = jnp.pad(xcol, ((0, 0), (0, K1P - K1), (0, 0)))        # (NBLK,K1P,WZ)

    args = [xcol, w1_arg, wd_s, bd_s, ws_s, wp_s, bp_s, wfe_s,
            mask_arg, sm_arg, fcb_arg]

    def _const_spec(arr):
        zeros = (0,) * arr.ndim
        return pl.BlockSpec(arr.shape, lambda b, _z=zeros: _z)

    in_specs = ([pl.BlockSpec((1, K1P, WZ), lambda b: (b, 0, 0))]
                + [_const_spec(a) for a in args[1:]])
    out_specs = pl.BlockSpec((1, 1, NB), lambda b: (b, 0, 0))

    out = pl.pallas_call(
        make_kernel(C, T, NB),
        grid=(NBLK,),
        out_shape=jax.ShapeDtypeStruct((NBLK, 1, NB), jnp.float32),
        in_specs=in_specs,
        out_specs=out_specs,
        scratch_shapes=[pltpu.VMEM((16, WZ), jnp.float32)],      # firstconv output
        compiler_params=pltpu.CompilerParams(
            dimension_semantics=("parallel",)),
    )(*args)
    return out[:, 0, :].reshape(-1)[:N]


def init_params(key, in_channels, in_features):
    """Deterministic synthetic parameters matching the PyTorch module's shapes."""
    C, T = in_channels, in_features
    nd = C - 1
    keys = iter(jax.random.split(key, 128))

    def nrm(shape, scale=0.2):
        return scale * jax.random.normal(next(keys), shape, dtype=jnp.float32)

    def bn(ch):
        gamma = 1.0 + nrm((ch,), 0.1)
        beta = nrm((ch,), 0.1)
        mean = nrm((ch,), 0.1)
        var = 0.5 + jax.random.uniform(next(keys), (ch,), dtype=jnp.float32)
        return (gamma, beta, mean, var)

    params = {"w1": nrm((16, 1, 1, 10)), "bn1": bn(16),
              "wd": [], "bnd": [], "ws": [], "wp": [], "bns": []}
    for _ in range(nd):
        params["wd"].append(nrm((32, 1, 2, 1)))
        params["bnd"].append(bn(32))
        params["ws"].append(nrm((32, 1, 1, 4)))
        params["wp"].append(nrm((32, 32, 1, 1)))
        params["bns"].append(bn(32))

    f = (T - 4) // 4 + 1
    f = (f - 4) // 4 + 1
    F = int(32 * (1 + nd) * nd / 2 * f)
    params["fc_w"] = nrm((1, F), 0.1)
    params["fc_b"] = nrm((1,), 0.1)
    return params


def reference_forward(x, params):
    """Pure-JAX (lax.conv) eval-mode reference mirroring the PyTorch module."""
    def bn_apply(y, p):
        g, b, m, v = p
        s = g / jnp.sqrt(v + EPS)
        return y * s[None, :, None, None] + (b - m * s)[None, :, None, None]

    def conv(y, w, padding, rhs_dilation=(1, 1), groups=1):
        return lax.conv_general_dilated(
            y, w, window_strides=(1, 1), padding=padding,
            rhs_dilation=rhs_dilation, feature_group_count=groups,
            dimension_numbers=("NCHW", "OIHW", "NCHW"),
            precision=lax.Precision.HIGHEST)

    def avgpool_w4(y):
        W = y.shape[-1]
        P = (W - 4) // 4 + 1
        return jnp.stack([y[..., 4 * t:4 * t + 4].mean(axis=-1) for t in range(P)],
                         axis=-1)

    N, _, C, _ = x.shape
    nd = C - 1
    z = bn_apply(conv(x, params["w1"], ((0, 0), (5, 5))), params["bn1"])
    feats = []
    for i in range(nd):
        d = i + 1
        u = conv(z, params["wd"][i], ((0, 0), (0, 0)), rhs_dilation=(d, 1), groups=16)
        u = jax.nn.relu(bn_apply(u, params["bnd"][i]))
        u = avgpool_w4(u)
        v = conv(u, params["ws"][i], ((0, 0), (2, 2)), groups=32)
        v = conv(v, params["wp"][i], ((0, 0), (0, 0)))
        v = jax.nn.relu(bn_apply(v, params["bns"][i]))
        v = avgpool_w4(v)
        feats.append(v.reshape(N, -1))
    feats = jnp.concatenate(feats, axis=1)
    out = jnp.dot(feats, params["fc_w"].T, precision=lax.Precision.HIGHEST) + params["fc_b"]
    return out.reshape(-1)


if __name__ == "__main__":
    key = jax.random.PRNGKey(0)
    kx, kp = jax.random.split(key)
    in_channels, in_features = 4, 16     # num_dilations = 3
    N = 2
    x = jax.random.normal(kx, (N, 1, in_channels, in_features), dtype=jnp.float32)
    params = init_params(kp, in_channels, in_features)

    out = jax.block_until_ready(eegnet_trans_power_forward(x, params))
    assert out.shape == (N,)

    ref = jax.block_until_ready(reference_forward(x, params))
    if not np.allclose(np.asarray(out), np.asarray(ref), rtol=1e-2, atol=1e-2):
        raise AssertionError(f"mismatch: pallas={np.asarray(out)} ref={np.asarray(ref)}")
    print("KERNEL_OK")
</pallas_src>

<mosaic_0001>
module attributes {stable_mosaic.version = 11 : i64} {
  func.func @kernel(%arg0: i32, %arg1: memref<1x16x128xf32, #tpu.memory_space<vmem>>, %arg2: memref<16x16xf32, #tpu.memory_space<vmem>>, %arg3: memref<3x32x32xf32, #tpu.memory_space<vmem>>, %arg4: memref<3x32x1xf32, #tpu.memory_space<vmem>>, %arg5: memref<3x32x4xf32, #tpu.memory_space<vmem>>, %arg6: memref<3x32x32xf32, #tpu.memory_space<vmem>>, %arg7: memref<3x32x1xf32, #tpu.memory_space<vmem>>, %arg8: memref<3x32x24xf32, #tpu.memory_space<vmem>>, %arg9: memref<4x1x24xf32, #tpu.memory_space<vmem>>, %arg10: memref<24x2xf32, #tpu.memory_space<vmem>>, %arg11: memref<1x1xf32, #tpu.memory_space<vmem>>, %arg12: memref<1x1x2xf32, #tpu.memory_space<vmem>>, %arg13: memref<16x128xf32, #tpu.memory_space<vmem>>) attributes {dimension_semantics = [#tpu.dimension_semantics<parallel>], iteration_bounds = array<i64: 1>, scalar_prefetch = 0 : i64, scratch_operands = 1 : i64, tpu.core_type = #tpu.core_type<tc>, window_params = [{transform_indices = @transform_0, window_bounds = array<i64: 1, 16, 128>}, {pipeline_mode = #tpu.pipeline_mode<synchronous>, transform_indices = @transform_1, window_bounds = array<i64: 16, 16>}, {pipeline_mode = #tpu.pipeline_mode<synchronous>, transform_indices = @transform_2, window_bounds = array<i64: 3, 32, 32>}, {pipeline_mode = #tpu.pipeline_mode<synchronous>, transform_indices = @transform_3, window_bounds = array<i64: 3, 32, 1>}, {pipeline_mode = #tpu.pipeline_mode<synchronous>, transform_indices = @transform_4, window_bounds = array<i64: 3, 32, 4>}, {pipeline_mode = #tpu.pipeline_mode<synchronous>, transform_indices = @transform_5, window_bounds = array<i64: 3, 32, 32>}, {pipeline_mode = #tpu.pipeline_mode<synchronous>, transform_indices = @transform_6, window_bounds = array<i64: 3, 32, 1>}, {pipeline_mode = #tpu.pipeline_mode<synchronous>, transform_indices = @transform_7, window_bounds = array<i64: 3, 32, 24>}, {pipeline_mode = #tpu.pipeline_mode<synchronous>, transform_indices = @transform_8, window_bounds = array<i64: 4, 1, 24>}, {pipeline_mode = #tpu.pipeline_mode<synchronous>, transform_indices = @transform_9, window_bounds = array<i64: 24, 2>}, {pipeline_mode = #tpu.pipeline_mode<synchronous>, transform_indices = @transform_10, window_bounds = array<i64: 1, 1>}, {transform_indices = @transform_11, window_bounds = array<i64: 1, 1, 2>}]} {
    %c0 = arith.constant 0 : index
    %c0_0 = arith.constant 0 : index
    %0 = vector.load %arg2[%c0, %c0_0] : memref<16x16xf32, #tpu.memory_space<vmem>>, vector<16x16xf32>
    %c0_1 = arith.constant 0 : index
    %c0_2 = arith.constant 0 : index
    %c0_3 = arith.constant 0 : index
    %1 = vector.load %arg1[%c0_1, %c0_2, %c0_3] : memref<1x16x128xf32, #tpu.memory_space<vmem>>, vector<1x16x128xf32>
    %2 = vector.shape_cast %1 : vector<1x16x128xf32> to vector<16x128xf32>
    %cst = arith.constant dense<0.000000e+00> : vector<16x128xf32>
    %3 = tpu.matmul %0, %2, %cst {dimension_numbers = #tpu.dot_dimension_numbers<[1], [0], [0], [1], [0, 0, 1, 1], [], []>} : vector<16x16xf32>, vector<16x128xf32>, vector<16x128xf32> -> vector<16x128xf32>
    %c0_4 = arith.constant 0 : index
    %c0_5 = arith.constant 0 : index
    %4 = vector.load %arg13[%c0_4, %c0_5] : memref<16x128xf32, #tpu.memory_space<vmem>>, vector<16x128xf32>
    tpu.vector_store %arg13[%c0_4, %c0_5], %3 {strides = array<i32>} : memref<16x128xf32, #tpu.memory_space<vmem>>, vector<16x128xf32>,
    %c0_6 = arith.constant 0 : index
    %c0_7 = arith.constant 0 : index
    %c0_8 = arith.constant 0 : index
    %5 = vector.load %arg3[%c0_6, %c0_7, %c0_8] : memref<3x32x32xf32, #tpu.memory_space<vmem>>, vector<1x32x32xf32>
    %6 = vector.shape_cast %5 : vector<1x32x32xf32> to vector<32x32xf32>
    %c0_9 = arith.constant 0 : index
    %c0_10 = arith.constant 0 : index
    %c0_11 = arith.constant 0 : index
    %7 = vector.load %arg4[%c0_9, %c0_10, %c0_11] : memref<3x32x1xf32, #tpu.memory_space<vmem>>, vector<1x32x1xf32>
    %8 = vector.shape_cast %7 : vector<1x32x1xf32> to vector<32x1xf32>
    %c0_12 = arith.constant 0 : index
    %c0_13 = arith.constant 0 : index
    %9 = vector.load %arg13[%c0_12, %c0_13] : memref<16x128xf32, #tpu.memory_space<vmem>>, vector<16x24xf32>
    %c0_14 = arith.constant 0 : index
    %c8 = arith.constant 8 : index
    %10 = vector.load %arg13[%c0_14, %c8] : memref<16x128xf32, #tpu.memory_space<vmem>>, vector<16x24xf32>
    %11 = tpu.concatenate %9, %10 in 0 : vector<16x24xf32>, vector<16x24xf32> -> vector<32x24xf32>
    %cst_15 = arith.constant dense<0.000000e+00> : vector<32x24xf32>
    %12 = tpu.matmul %6, %11, %cst_15 {dimension_numbers = #tpu.dot_dimension_numbers<[1], [0], [0], [1], [0, 0, 1, 1], [], []>} : vector<32x32xf32>, vector<32x24xf32>, vector<32x24xf32> -> vector<32x24xf32>
    %13 = vector.broadcast %8 : vector<32x1xf32> to vector<32x24xf32>
    %14 = arith.addf %12, %13 : vector<32x24xf32>
    %cst_16 = arith.constant 0.000000e+00 : f32
    %15 = vector.broadcast %cst_16 : f32 to vector<32x24xf32>
    %16 = arith.maximumf %14, %15 : vector<32x24xf32>
    %c0_17 = arith.constant 0 : index
    %c32 = arith.constant 32 : index
    %17 = vector.load %arg13[%c0_17, %c32] : memref<16x128xf32, #tpu.memory_space<vmem>>, vector<16x24xf32>
    %c0_18 = arith.constant 0 : index
    %c40 = arith.constant 40 : index
    %18 = vector.load %arg13[%c0_18, %c40] : memref<16x128xf32, #tpu.memory_space<vmem>>, vector<16x24xf32>
    %19 = tpu.concatenate %17, %18 in 0 : vector<16x24xf32>, vector<16x24xf32> -> vector<32x24xf32>
    %cst_19 = arith.constant dense<0.000000e+00> : vector<32x24xf32>
    %20 = tpu.matmul %6, %19, %cst_19 {dimension_numbers = #tpu.dot_dimension_numbers<[1], [0], [0], [1], [0, 0, 1, 1], [], []>} : vector<32x32xf32>, vector<32x24xf32>, vector<32x24xf32> -> vector<32x24xf32>
    %21 = vector.broadcast %8 : vector<32x1xf32> to vector<32x24xf32>
    %22 = arith.addf %20, %21 : vector<32x24xf32>
    %cst_20 = arith.constant 0.000000e+00 : f32
    %23 = vector.broadcast %cst_20 : f32 to vector<32x24xf32>
    %24 = arith.maximumf %22, %23 : vector<32x24xf32>
    %25 = arith.addf %16, %24 : vector<32x24xf32>
    %c0_21 = arith.constant 0 : index
    %c64 = arith.constant 64 : index
    %26 = vector.load %arg13[%c0_21, %c64] : memref<16x128xf32, #tpu.memory_space<vmem>>, vector<16x24xf32>
    %c0_22 = arith.constant 0 : index
    %c72 = arith.constant 72 : index
    %27 = vector.load %arg13[%c0_22, %c72] : memref<16x128xf32, #tpu.memory_space<vmem>>, vector<16x24xf32>
    %28 = tpu.concatenate %26, %27 in 0 : vector<16x24xf32>, vector<16x24xf32> -> vector<32x24xf32>
    %cst_23 = arith.constant dense<0.000000e+00> : vector<32x24xf32>
    %29 = tpu.matmul %6, %28, %cst_23 {dimension_numbers = #tpu.dot_dimension_numbers<[1], [0], [0], [1], [0, 0, 1, 1], [], []>} : vector<32x32xf32>, vector<32x24xf32>, vector<32x24xf32> -> vector<32x24xf32>
    %30 = vector.broadcast %8 : vector<32x1xf32> to vector<32x24xf32>
    %31 = arith.addf %29, %30 : vector<32x24xf32>
    %cst_24 = arith.constant 0.000000e+00 : f32
    %32 = vector.broadcast %cst_24 : f32 to vector<32x24xf32>
    %33 = arith.maximumf %31, %32 : vector<32x24xf32>
    %34 = arith.addf %25, %33 : vector<32x24xf32>
    %c0_25 = arith.constant 0 : index
    %c96 = arith.constant 96 : index
    %35 = vector.load %arg13[%c0_25, %c96] : memref<16x128xf32, #tpu.memory_space<vmem>>, vector<16x24xf32>
    %c0_26 = arith.constant 0 : index
    %c104 = arith.constant 104 : index
    %36 = vector.load %arg13[%c0_26, %c104] : memref<16x128xf32, #tpu.memory_space<vmem>>, vector<16x24xf32>
    %37 = tpu.concatenate %35, %36 in 0 : vector<16x24xf32>, vector<16x24xf32> -> vector<32x24xf32>
    %cst_27 = arith.constant dense<0.000000e+00> : vector<32x24xf32>
    %38 = tpu.matmul %6, %37, %cst_27 {dimension_numbers = #tpu.dot_dimension_numbers<[1], [0], [0], [1], [0, 0, 1, 1], [], []>} : vector<32x32xf32>, vector<32x24xf32>, vector<32x24xf32> -> vector<32x24xf32>
    %39 = vector.broadcast %8 : vector<32x1xf32> to vector<32x24xf32>
    %40 = arith.addf %38, %39 : vector<32x24xf32>
    %cst_28 = arith.constant 0.000000e+00 : f32
    %41 = vector.broadcast %cst_28 : f32 to vector<32x24xf32>
    %42 = arith.maximumf %40, %41 : vector<32x24xf32>
    %43 = arith.addf %34, %42 : vector<32x24xf32>
    %cst_29 = arith.constant 2.500000e-01 : f32
    %44 = vector.broadcast %cst_29 : f32 to vector<32x24xf32>
    %45 = arith.mulf %43, %44 : vector<32x24xf32>
    %c0_30 = arith.constant 0 : index
    %c0_31 = arith.constant 0 : index
    %c0_32 = arith.constant 0 : index
    %46 = vector.load %arg5[%c0_30, %c0_31, %c0_32] : memref<3x32x4xf32, #tpu.memory_space<vmem>>, vector<1x32x4xf32>
    %47 = vector.shape_cast %46 : vector<1x32x4xf32> to vector<32x4xf32>
    %48 = vector.extract_strided_slice %47 {offsets = [0, 2], sizes = [32, 1], strides = [1, 1]} : vector<32x4xf32> to vector<32x1xf32>
    %49 = vector.broadcast %48 : vector<32x1xf32> to vector<32x24xf32>
    %50 = arith.mulf %49, %45 : vector<32x24xf32>
    %cst_33 = arith.constant 0.000000e+00 : f32
    %51 = vector.broadcast %cst_33 : f32 to vector<32x2xf32>
    %52 = vector.extract_strided_slice %45 {offsets = [0, 0], sizes = [32, 22], strides = [1, 1]} : vector<32x24xf32> to vector<32x22xf32>
    %53 = tpu.concatenate %51, %52 in 1 : vector<32x2xf32>, vector<32x22xf32> -> vector<32x24xf32>
    %54 = vector.extract_strided_slice %47 {offsets = [0, 0], sizes = [32, 1], strides = [1, 1]} : vector<32x4xf32> to vector<32x1xf32>
    %c0_34 = arith.constant 0 : index
    %c0_35 = arith.constant 0 : index
    %c0_36 = arith.constant 0 : index
    %55 = vector.load %arg9[%c0_34, %c0_35, %c0_36] : memref<4x1x24xf32, #tpu.memory_space<vmem>>, vector<1x1x24xf32>
    %56 = vector.shape_cast %55 : vector<1x1x24xf32> to vector<1x24xf32>
    %57 = vector.broadcast %56 : vector<1x24xf32> to vector<32x24xf32>
    %58 = arith.mulf %53, %57 : vector<32x24xf32>
    %59 = vector.broadcast %54 : vector<32x1xf32> to vector<32x24xf32>
    %60 = arith.mulf %59, %58 : vector<32x24xf32>
    %61 = arith.addf %50, %60 : vector<32x24xf32>
    %cst_37 = arith.constant 0.000000e+00 : f32
    %62 = vector.broadcast %cst_37 : f32 to vector<32x1xf32>
    %63 = vector.extract_strided_slice %45 {offsets = [0, 0], sizes = [32, 23], strides = [1, 1]} : vector<32x24xf32> to vector<32x23xf32>
    %64 = tpu.concatenate %62, %63 in 1 : vector<32x1xf32>, vector<32x23xf32> -> vector<32x24xf32>
    %65 = vector.extract_strided_slice %47 {offsets = [0, 1], sizes = [32, 1], strides = [1, 1]} : vector<32x4xf32> to vector<32x1xf32>
    %c1 = arith.constant 1 : index
    %c0_38 = arith.constant 0 : index
    %c0_39 = arith.constant 0 : index
    %66 = vector.load %arg9[%c1, %c0_38, %c0_39] : memref<4x1x24xf32, #tpu.memory_space<vmem>>, vector<1x1x24xf32>
    %67 = vector.shape_cast %66 : vector<1x1x24xf32> to vector<1x24xf32>
    %68 = vector.broadcast %67 : vector<1x24xf32> to vector<32x24xf32>
    %69 = arith.mulf %64, %68 : vector<32x24xf32>
    %70 = vector.broadcast %65 : vector<32x1xf32> to vector<32x24xf32>
    %71 = arith.mulf %70, %69 : vector<32x24xf32>
    %72 = arith.addf %61, %71 : vector<32x24xf32>
    %73 = vector.extract_strided_slice %45 {offsets = [0, 1], sizes = [32, 23], strides = [1, 1]} : vector<32x24xf32> to vector<32x23xf32>
    %cst_40 = arith.constant 0.000000e+00 : f32
    %74 = vector.broadcast %cst_40 : f32 to vector<32x1xf32>
    %75 = tpu.concatenate %73, %74 in 1 : vector<32x23xf32>, vector<32x1xf32> -> vector<32x24xf32>
    %76 = vector.extract_strided_slice %47 {offsets = [0, 3], sizes = [32, 1], strides = [1, 1]} : vector<32x4xf32> to vector<32x1xf32>
    %c3 = arith.constant 3 : index
    %c0_41 = arith.constant 0 : index
    %c0_42 = arith.constant 0 : index
    %77 = vector.load %arg9[%c3, %c0_41, %c0_42] : memref<4x1x24xf32, #tpu.memory_space<vmem>>, vector<1x1x24xf32>
    %78 = vector.shape_cast %77 : vector<1x1x24xf32> to vector<1x24xf32>
    %79 = vector.broadcast %78 : vector<1x24xf32> to vector<32x24xf32>
    %80 = arith.mulf %75, %79 : vector<32x24xf32>
    %81 = vector.broadcast %76 : vector<32x1xf32> to vector<32x24xf32>
    %82 = arith.mulf %81, %80 : vector<32x24xf32>
    %83 = arith.addf %72, %82 : vector<32x24xf32>
    %c0_43 = arith.constant 0 : index
    %c0_44 = arith.constant 0 : index
    %c0_45 = arith.constant 0 : index
    %84 = vector.load %arg6[%c0_43, %c0_44, %c0_45] : memref<3x32x32xf32, #tpu.memory_space<vmem>>, vector<1x32x32xf32>
    %85 = vector.shape_cast %84 : vector<1x32x32xf32> to vector<32x32xf32>
    %cst_46 = arith.constant dense<0.000000e+00> : vector<32x24xf32>
    %86 = tpu.matmul %85, %83, %cst_46 {dimension_numbers = #tpu.dot_dimension_numbers<[1], [0], [0], [1], [0, 0, 1, 1], [], []>} : vector<32x32xf32>, vector<32x24xf32>, vector<32x24xf32> -> vector<32x24xf32>
    %c0_47 = arith.constant 0 : index
    %c0_48 = arith.constant 0 : index
    %c0_49 = arith.constant 0 : index
    %87 = vector.load %arg7[%c0_47, %c0_48, %c0_49] : memref<3x32x1xf32, #tpu.memory_space<vmem>>, vector<1x32x1xf32>
    %88 = vector.shape_cast %87 : vector<1x32x1xf32> to vector<32x1xf32>
    %89 = vector.broadcast %88 : vector<32x1xf32> to vector<32x24xf32>
    %90 = arith.addf %86, %89 : vector<32x24xf32>
    %cst_50 = arith.constant 0.000000e+00 : f32
    %91 = vector.broadcast %cst_50 : f32 to vector<32x24xf32>
    %92 = arith.maximumf %90, %91 : vector<32x24xf32>
    %c0_51 = arith.constant 0 : index
    %c0_52 = arith.constant 0 : index
    %c0_53 = arith.constant 0 : index
    %93 = vector.load %arg8[%c0_51, %c0_52, %c0_53] : memref<3x32x24xf32, #tpu.memory_space<vmem>>, vector<1x32x24xf32>
    %94 = vector.shape_cast %93 : vector<1x32x24xf32> to vector<32x24xf32>
    %95 = arith.mulf %92, %94 : vector<32x24xf32>
    %c0_54 = arith.constant 0 : index
    %c0_55 = arith.constant 0 : index
    %96 = vector.load %arg10[%c0_54, %c0_55] : memref<24x2xf32, #tpu.memory_space<vmem>>, vector<24x2xf32>
    %cst_56 = arith.constant dense<0.000000e+00> : vector<32x2xf32>
    %97 = tpu.matmul %95, %96, %cst_56 {dimension_numbers = #tpu.dot_dimension_numbers<[1], [0], [0], [1], [0, 0, 1, 1], [], []>} : vector<32x24xf32>, vector<24x2xf32>, vector<32x2xf32> -> vector<32x2xf32>
    %c1_57 = arith.constant 1 : index
    %c0_58 = arith.constant 0 : index
    %c0_59 = arith.constant 0 : index
    %98 = vector.load %arg3[%c1_57, %c0_58, %c0_59] : memref<3x32x32xf32, #tpu.memory_space<vmem>>, vector<1x32x32xf32>
    %99 = vector.shape_cast %98 : vector<1x32x32xf32> to vector<32x32xf32>
    %c1_60 = arith.constant 1 : index
    %c0_61 = arith.constant 0 : index
    %c0_62 = arith.constant 0 : index
    %100 = vector.load %arg4[%c1_60, %c0_61, %c0_62] : memref<3x32x1xf32, #tpu.memory_space<vmem>>, vector<1x32x1xf32>
    %101 = vector.shape_cast %100 : vector<1x32x1xf32> to vector<32x1xf32>
    %c0_63 = arith.constant 0 : index
    %c0_64 = arith.constant 0 : index
    %102 = vector.load %arg13[%c0_63, %c0_64] : memref<16x128xf32, #tpu.memory_space<vmem>>, vector<16x16xf32>
    %c0_65 = arith.constant 0 : index
    %c16 = arith.constant 16 : index
    %103 = vector.load %arg13[%c0_65, %c16] : memref<16x128xf32, #tpu.memory_space<vmem>>, vector<16x16xf32>
    %104 = tpu.concatenate %102, %103 in 0 : vector<16x16xf32>, vector<16x16xf32> -> vector<32x16xf32>
    %cst_66 = arith.constant dense<0.000000e+00> : vector<32x16xf32>
    %105 = tpu.matmul %99, %104, %cst_66 {dimension_numbers = #tpu.dot_dimension_numbers<[1], [0], [0], [1], [0, 0, 1, 1], [], []>} : vector<32x32xf32>, vector<32x16xf32>, vector<32x16xf32> -> vector<32x16xf32>
    %106 = vector.broadcast %101 : vector<32x1xf32> to vector<32x16xf32>
    %107 = arith.addf %105, %106 : vector<32x16xf32>
    %cst_67 = arith.constant 0.000000e+00 : f32
    %108 = vector.broadcast %cst_67 : f32 to vector<32x16xf32>
    %109 = arith.maximumf %107, %108 : vector<32x16xf32>
    %c0_68 = arith.constant 0 : index
    %c32_69 = arith.constant 32 : index
    %110 = vector.load %arg13[%c0_68, %c32_69] : memref<16x128xf32, #tpu.memory_space<vmem>>, vector<16x16xf32>
    %c0_70 = arith.constant 0 : index
    %c48 = arith.constant 48 : index
    %111 = vector.load %arg13[%c0_70, %c48] : memref<16x128xf32, #tpu.memory_space<vmem>>, vector<16x16xf32>
    %112 = tpu.concatenate %110, %111 in 0 : vector<16x16xf32>, vector<16x16xf32> -> vector<32x16xf32>
    %cst_71 = arith.constant dense<0.000000e+00> : vector<32x16xf32>
    %113 = tpu.matmul %99, %112, %cst_71 {dimension_numbers = #tpu.dot_dimension_numbers<[1], [0], [0], [1], [0, 0, 1, 1], [], []>} : vector<32x32xf32>, vector<32x16xf32>, vector<32x16xf32> -> vector<32x16xf32>
    %114 = vector.broadcast %101 : vector<32x1xf32> to vector<32x16xf32>
    %115 = arith.addf %113, %114 : vector<32x16xf32>
    %cst_72 = arith.constant 0.000000e+00 : f32
    %116 = vector.broadcast %cst_72 : f32 to vector<32x16xf32>
    %117 = arith.maximumf %115, %116 : vector<32x16xf32>
    %118 = arith.addf %109, %117 : vector<32x16xf32>
    %c0_73 = arith.constant 0 : index
    %c64_74 = arith.constant 64 : index
    %119 = vector.load %arg13[%c0_73, %c64_74] : memref<16x128xf32, #tpu.memory_space<vmem>>, vector<16x16xf32>
    %c0_75 = arith.constant 0 : index
    %c80 = arith.constant 80 : index
    %120 = vector.load %arg13[%c0_75, %c80] : memref<16x128xf32, #tpu.memory_space<vmem>>, vector<16x16xf32>
    %121 = tpu.concatenate %119, %120 in 0 : vector<16x16xf32>, vector<16x16xf32> -> vector<32x16xf32>
    %cst_76 = arith.constant dense<0.000000e+00> : vector<32x16xf32>
    %122 = tpu.matmul %99, %121, %cst_76 {dimension_numbers = #tpu.dot_dimension_numbers<[1], [0], [0], [1], [0, 0, 1, 1], [], []>} : vector<32x32xf32>, vector<32x16xf32>, vector<32x16xf32> -> vector<32x16xf32>
    %123 = vector.broadcast %101 : vector<32x1xf32> to vector<32x16xf32>
    %124 = arith.addf %122, %123 : vector<32x16xf32>
    %cst_77 = arith.constant 0.000000e+00 : f32
    %125 = vector.broadcast %cst_77 : f32 to vector<32x16xf32>
    %126 = arith.maximumf %124, %125 : vector<32x16xf32>
    %127 = arith.addf %118, %126 : vector<32x16xf32>
    %c0_78 = arith.constant 0 : index
    %c96_79 = arith.constant 96 : index
    %128 = vector.load %arg13[%c0_78, %c96_79] : memref<16x128xf32, #tpu.memory_space<vmem>>, vector<16x16xf32>
    %c0_80 = arith.constant 0 : index
    %c112 = arith.constant 112 : index
    %129 = vector.load %arg13[%c0_80, %c112] : memref<16x128xf32, #tpu.memory_space<vmem>>, vector<16x16xf32>
    %130 = tpu.concatenate %128, %129 in 0 : vector<16x16xf32>, vector<16x16xf32> -> vector<32x16xf32>
    %cst_81 = arith.constant dense<0.000000e+00> : vector<32x16xf32>
    %131 = tpu.matmul %99, %130, %cst_81 {dimension_numbers = #tpu.dot_dimension_numbers<[1], [0], [0], [1], [0, 0, 1, 1], [], []>} : vector<32x32xf32>, vector<32x16xf32>, vector<32x16xf32> -> vector<32x16xf32>
    %132 = vector.broadcast %101 : vector<32x1xf32> to vector<32x16xf32>
    %133 = arith.addf %131, %132 : vector<32x16xf32>
    %cst_82 = arith.constant 0.000000e+00 : f32
    %134 = vector.broadcast %cst_82 : f32 to vector<32x16xf32>
    %135 = arith.maximumf %133, %134 : vector<32x16xf32>
    %136 = arith.addf %127, %135 : vector<32x16xf32>
    %cst_83 = arith.constant 2.500000e-01 : f32
    %137 = vector.broadcast %cst_83 : f32 to vector<32x16xf32>
    %138 = arith.mulf %136, %137 : vector<32x16xf32>
    %c1_84 = arith.constant 1 : index
    %c0_85 = arith.constant 0 : index
    %c0_86 = arith.constant 0 : index
    %139 = vector.load %arg5[%c1_84, %c0_85, %c0_86] : memref<3x32x4xf32, #tpu.memory_space<vmem>>, vector<1x32x4xf32>
    %140 = vector.shape_cast %139 : vector<1x32x4xf32> to vector<32x4xf32>
    %141 = vector.extract_strided_slice %140 {offsets = [0, 2], sizes = [32, 1], strides = [1, 1]} : vector<32x4xf32> to vector<32x1xf32>
    %142 = vector.broadcast %141 : vector<32x1xf32> to vector<32x16xf32>
    %143 = arith.mulf %142, %138 : vector<32x16xf32>
    %cst_87 = arith.constant 0.000000e+00 : f32
    %144 = vector.broadcast %cst_87 : f32 to vector<32x2xf32>
    %145 = vector.extract_strided_slice %138 {offsets = [0, 0], sizes = [32, 14], strides = [1, 1]} : vector<32x16xf32> to vector<32x14xf32>
    %146 = tpu.concatenate %144, %145 in 1 : vector<32x2xf32>, vector<32x14xf32> -> vector<32x16xf32>
    %147 = vector.extract_strided_slice %140 {offsets = [0, 0], sizes = [32, 1], strides = [1, 1]} : vector<32x4xf32> to vector<32x1xf32>
    %c0_88 = arith.constant 0 : index
    %c0_89 = arith.constant 0 : index
    %c0_90 = arith.constant 0 : index
    %148 = vector.load %arg9[%c0_88, %c0_89, %c0_90] : memref<4x1x24xf32, #tpu.memory_space<vmem>>, vector<1x1x16xf32>
    %149 = vector.shape_cast %148 : vector<1x1x16xf32> to vector<1x16xf32>
    %150 = vector.broadcast %149 : vector<1x16xf32> to vector<32x16xf32>
    %151 = arith.mulf %146, %150 : vector<32x16xf32>
    %152 = vector.broadcast %147 : vector<32x1xf32> to vector<32x16xf32>
    %153 = arith.mulf %152, %151 : vector<32x16xf32>
    %154 = arith.addf %143, %153 : vector<32x16xf32>
    %cst_91 = arith.constant 0.000000e+00 : f32
    %155 = vector.broadcast %cst_91 : f32 to vector<32x1xf32>
    %156 = vector.extract_strided_slice %138 {offsets = [0, 0], sizes = [32, 15], strides = [1, 1]} : vector<32x16xf32> to vector<32x15xf32>
    %157 = tpu.concatenate %155, %156 in 1 : vector<32x1xf32>, vector<32x15xf32> -> vector<32x16xf32>
    %158 = vector.extract_strided_slice %140 {offsets = [0, 1], sizes = [32, 1], strides = [1, 1]} : vector<32x4xf32> to vector<32x1xf32>
    %c1_92 = arith.constant 1 : index
    %c0_93 = arith.constant 0 : index
    %c0_94 = arith.constant 0 : index
    %159 = vector.load %arg9[%c1_92, %c0_93, %c0_94] : memref<4x1x24xf32, #tpu.memory_space<vmem>>, vector<1x1x16xf32>
    %160 = vector.shape_cast %159 : vector<1x1x16xf32> to vector<1x16xf32>
    %161 = vector.broadcast %160 : vector<1x16xf32> to vector<32x16xf32>
    %162 = arith.mulf %157, %161 : vector<32x16xf32>
    %163 = vector.broadcast %158 : vector<32x1xf32> to vector<32x16xf32>
    %164 = arith.mulf %163, %162 : vector<32x16xf32>
    %165 = arith.addf %154, %164 : vector<32x16xf32>
    %166 = vector.extract_strided_slice %138 {offsets = [0, 1], sizes = [32, 15], strides = [1, 1]} : vector<32x16xf32> to vector<32x15xf32>
    %cst_95 = arith.constant 0.000000e+00 : f32
    %167 = vector.broadcast %cst_95 : f32 to vector<32x1xf32>
    %168 = tpu.concatenate %166, %167 in 1 : vector<32x15xf32>, vector<32x1xf32> -> vector<32x16xf32>
    %169 = vector.extract_strided_slice %140 {offsets = [0, 3], sizes = [32, 1], strides = [1, 1]} : vector<32x4xf32> to vector<32x1xf32>
    %c3_96 = arith.constant 3 : index
    %c0_97 = arith.constant 0 : index
    %c0_98 = arith.constant 0 : index
    %170 = vector.load %arg9[%c3_96, %c0_97, %c0_98] : memref<4x1x24xf32, #tpu.memory_space<vmem>>, vector<1x1x16xf32>
    %171 = vector.shape_cast %170 : vector<1x1x16xf32> to vector<1x16xf32>
    %172 = vector.broadcast %171 : vector<1x16xf32> to vector<32x16xf32>
    %173 = arith.mulf %168, %172 : vector<32x16xf32>
    %174 = vector.broadcast %169 : vector<32x1xf32> to vector<32x16xf32>
    %175 = arith.mulf %174, %173 : vector<32x16xf32>
    %176 = arith.addf %165, %175 : vector<32x16xf32>
    %c1_99 = arith.constant 1 : index
    %c0_100 = arith.constant 0 : index
    %c0_101 = arith.constant 0 : index
    %177 = vector.load %arg6[%c1_99, %c0_100, %c0_101] : memref<3x32x32xf32, #tpu.memory_space<vmem>>, vector<1x32x32xf32>
    %178 = vector.shape_cast %177 : vector<1x32x32xf32> to vector<32x32xf32>
    %cst_102 = arith.constant dense<0.000000e+00> : vector<32x16xf32>
    %179 = tpu.matmul %178, %176, %cst_102 {dimension_numbers = #tpu.dot_dimension_numbers<[1], [0], [0], [1], [0, 0, 1, 1], [], []>} : vector<32x32xf32>, vector<32x16xf32>, vector<32x16xf32> -> vector<32x16xf32>
    %c1_103 = arith.constant 1 : index
    %c0_104 = arith.constant 0 : index
    %c0_105 = arith.constant 0 : index
    %180 = vector.load %arg7[%c1_103, %c0_104, %c0_105] : memref<3x32x1xf32, #tpu.memory_space<vmem>>, vector<1x32x1xf32>
    %181 = vector.shape_cast %180 : vector<1x32x1xf32> to vector<32x1xf32>
    %182 = vector.broadcast %181 : vector<32x1xf32> to vector<32x16xf32>
    %183 = arith.addf %179, %182 : vector<32x16xf32>
    %cst_106 = arith.constant 0.000000e+00 : f32
    %184 = vector.broadcast %cst_106 : f32 to vector<32x16xf32>
    %185 = arith.maximumf %183, %184 : vector<32x16xf32>
    %c1_107 = arith.constant 1 : index
    %c0_108 = arith.constant 0 : index
    %c0_109 = arith.constant 0 : index
    %186 = vector.load %arg8[%c1_107, %c0_108, %c0_109] : memref<3x32x24xf32, #tpu.memory_space<vmem>>, vector<1x32x16xf32>
    %187 = vector.shape_cast %186 : vector<1x32x16xf32> to vector<32x16xf32>
    %188 = arith.mulf %185, %187 : vector<32x16xf32>
    %c0_110 = arith.constant 0 : index
    %c0_111 = arith.constant 0 : index
    %189 = vector.load %arg10[%c0_110, %c0_111] : memref<24x2xf32, #tpu.memory_space<vmem>>, vector<16x2xf32>
    %cst_112 = arith.constant dense<0.000000e+00> : vector<32x2xf32>
    %190 = tpu.matmul %188, %189, %cst_112 {dimension_numbers = #tpu.dot_dimension_numbers<[1], [0], [0], [1], [0, 0, 1, 1], [], []>} : vector<32x16xf32>, vector<16x2xf32>, vector<32x2xf32> -> vector<32x2xf32>
    %191 = arith.addf %97, %190 : vector<32x2xf32>
    %c2 = arith.constant 2 : index
    %c0_113 = arith.constant 0 : index
    %c0_114 = arith.constant 0 : index
    %192 = vector.load %arg3[%c2, %c0_113, %c0_114] : memref<3x32x32xf32, #tpu.memory_space<vmem>>, vector<1x32x32xf32>
    %193 = vector.shape_cast %192 : vector<1x32x32xf32> to vector<32x32xf32>
    %c2_115 = arith.constant 2 : index
    %c0_116 = arith.constant 0 : index
    %c0_117 = arith.constant 0 : index
    %194 = vector.load %arg4[%c2_115, %c0_116, %c0_117] : memref<3x32x1xf32, #tpu.memory_space<vmem>>, vector<1x32x1xf32>
    %195 = vector.shape_cast %194 : vector<1x32x1xf32> to vector<32x1xf32>
    %c0_118 = arith.constant 0 : index
    %c0_119 = arith.constant 0 : index
    %196 = vector.load %arg13[%c0_118, %c0_119] : memref<16x128xf32, #tpu.memory_space<vmem>>, vector<16x8xf32>
    %c0_120 = arith.constant 0 : index
    %c24 = arith.constant 24 : index
    %197 = vector.load %arg13[%c0_120, %c24] : memref<16x128xf32, #tpu.memory_space<vmem>>, vector<16x8xf32>
    %198 = tpu.concatenate %196, %197 in 0 : vector<16x8xf32>, vector<16x8xf32> -> vector<32x8xf32>
    %cst_121 = arith.constant dense<0.000000e+00> : vector<32x8xf32>
    %199 = tpu.matmul %193, %198, %cst_121 {dimension_numbers = #tpu.dot_dimension_numbers<[1], [0], [0], [1], [0, 0, 1, 1], [], []>} : vector<32x32xf32>, vector<32x8xf32>, vector<32x8xf32> -> vector<32x8xf32>
    %200 = vector.broadcast %195 : vector<32x1xf32> to vector<32x8xf32>
    %201 = arith.addf %199, %200 : vector<32x8xf32>
    %cst_122 = arith.constant 0.000000e+00 : f32
    %202 = vector.broadcast %cst_122 : f32 to vector<32x8xf32>
    %203 = arith.maximumf %201, %202 : vector<32x8xf32>
    %c0_123 = arith.constant 0 : index
    %c32_124 = arith.constant 32 : index
    %204 = vector.load %arg13[%c0_123, %c32_124] : memref<16x128xf32, #tpu.memory_space<vmem>>, vector<16x8xf32>
    %c0_125 = arith.constant 0 : index
    %c56 = arith.constant 56 : index
    %205 = vector.load %arg13[%c0_125, %c56] : memref<16x128xf32, #tpu.memory_space<vmem>>, vector<16x8xf32>
    %206 = tpu.concatenate %204, %205 in 0 : vector<16x8xf32>, vector<16x8xf32> -> vector<32x8xf32>
    %cst_126 = arith.constant dense<0.000000e+00> : vector<32x8xf32>
    %207 = tpu.matmul %193, %206, %cst_126 {dimension_numbers = #tpu.dot_dimension_numbers<[1], [0], [0], [1], [0, 0, 1, 1], [], []>} : vector<32x32xf32>, vector<32x8xf32>, vector<32x8xf32> -> vector<32x8xf32>
    %208 = vector.broadcast %195 : vector<32x1xf32> to vector<32x8xf32>
    %209 = arith.addf %207, %208 : vector<32x8xf32>
    %cst_127 = arith.constant 0.000000e+00 : f32
    %210 = vector.broadcast %cst_127 : f32 to vector<32x8xf32>
    %211 = arith.maximumf %209, %210 : vector<32x8xf32>
    %212 = arith.addf %203, %211 : vector<32x8xf32>
    %c0_128 = arith.constant 0 : index
    %c64_129 = arith.constant 64 : index
    %213 = vector.load %arg13[%c0_128, %c64_129] : memref<16x128xf32, #tpu.memory_space<vmem>>, vector<16x8xf32>
    %c0_130 = arith.constant 0 : index
    %c88 = arith.constant 88 : index
    %214 = vector.load %arg13[%c0_130, %c88] : memref<16x128xf32, #tpu.memory_space<vmem>>, vector<16x8xf32>
    %215 = tpu.concatenate %213, %214 in 0 : vector<16x8xf32>, vector<16x8xf32> -> vector<32x8xf32>
    %cst_131 = arith.constant dense<0.000000e+00> : vector<32x8xf32>
    %216 = tpu.matmul %193, %215, %cst_131 {dimension_numbers = #tpu.dot_dimension_numbers<[1], [0], [0], [1], [0, 0, 1, 1], [], []>} : vector<32x32xf32>, vector<32x8xf32>, vector<32x8xf32> -> vector<32x8xf32>
    %217 = vector.broadcast %195 : vector<32x1xf32> to vector<32x8xf32>
    %218 = arith.addf %216, %217 : vector<32x8xf32>
    %cst_132 = arith.constant 0.000000e+00 : f32
    %219 = vector.broadcast %cst_132 : f32 to vector<32x8xf32>
    %220 = arith.maximumf %218, %219 : vector<32x8xf32>
    %221 = arith.addf %212, %220 : vector<32x8xf32>
    %c0_133 = arith.constant 0 : index
    %c96_134 = arith.constant 96 : index
    %222 = vector.load %arg13[%c0_133, %c96_134] : memref<16x128xf32, #tpu.memory_space<vmem>>, vector<16x8xf32>
    %c0_135 = arith.constant 0 : index
    %c120 = arith.constant 120 : index
    %223 = vector.load %arg13[%c0_135, %c120] : memref<16x128xf32, #tpu.memory_space<vmem>>, vector<16x8xf32>
    %224 = tpu.concatenate %222, %223 in 0 : vector<16x8xf32>, vector<16x8xf32> -> vector<32x8xf32>
    %cst_136 = arith.constant dense<0.000000e+00> : vector<32x8xf32>
    %225 = tpu.matmul %193, %224, %cst_136 {dimension_numbers = #tpu.dot_dimension_numbers<[1], [0], [0], [1], [0, 0, 1, 1], [], []>} : vector<32x32xf32>, vector<32x8xf32>, vector<32x8xf32> -> vector<32x8xf32>
    %226 = vector.broadcast %195 : vector<32x1xf32> to vector<32x8xf32>
    %227 = arith.addf %225, %226 : vector<32x8xf32>
    %cst_137 = arith.constant 0.000000e+00 : f32
    %228 = vector.broadcast %cst_137 : f32 to vector<32x8xf32>
    %229 = arith.maximumf %227, %228 : vector<32x8xf32>
    %230 = arith.addf %221, %229 : vector<32x8xf32>
    %cst_138 = arith.constant 2.500000e-01 : f32
    %231 = vector.broadcast %cst_138 : f32 to vector<32x8xf32>
    %232 = arith.mulf %230, %231 : vector<32x8xf32>
    %c2_139 = arith.constant 2 : index
    %c0_140 = arith.constant 0 : index
    %c0_141 = arith.constant 0 : index
    %233 = vector.load %arg5[%c2_139, %c0_140, %c0_141] : memref<3x32x4xf32, #tpu.memory_space<vmem>>, vector<1x32x4xf32>
    %234 = vector.shape_cast %233 : vector<1x32x4xf32> to vector<32x4xf32>
    %235 = vector.extract_strided_slice %234 {offsets = [0, 2], sizes = [32, 1], strides = [1, 1]} : vector<32x4xf32> to vector<32x1xf32>
    %236 = vector.broadcast %235 : vector<32x1xf32> to vector<32x8xf32>
    %237 = arith.mulf %236, %232 : vector<32x8xf32>
    %cst_142 = arith.constant 0.000000e+00 : f32
    %238 = vector.broadcast %cst_142 : f32 to vector<32x2xf32>
    %239 = vector.extract_strided_slice %232 {offsets = [0, 0], sizes = [32, 6], strides = [1, 1]} : vector<32x8xf32> to vector<32x6xf32>
    %240 = tpu.concatenate %238, %239 in 1 : vector<32x2xf32>, vector<32x6xf32> -> vector<32x8xf32>
    %241 = vector.extract_strided_slice %234 {offsets = [0, 0], sizes = [32, 1], strides = [1, 1]} : vector<32x4xf32> to vector<32x1xf32>
    %c0_143 = arith.constant 0 : index
    %c0_144 = arith.constant 0 : index
    %c0_145 = arith.constant 0 : index
    %242 = vector.load %arg9[%c0_143, %c0_144, %c0_145] : memref<4x1x24xf32, #tpu.memory_space<vmem>>, vector<1x1x8xf32>
    %243 = vector.shape_cast %242 : vector<1x1x8xf32> to vector<1x8xf32>
    %244 = vector.broadcast %243 : vector<1x8xf32> to vector<32x8xf32>
    %245 = arith.mulf %240, %244 : vector<32x8xf32>
    %246 = vector.broadcast %241 : vector<32x1xf32> to vector<32x8xf32>
    %247 = arith.mulf %246, %245 : vector<32x8xf32>
    %248 = arith.addf %237, %247 : vector<32x8xf32>
    %cst_146 = arith.constant 0.000000e+00 : f32
    %249 = vector.broadcast %cst_146 : f32 to vector<32x1xf32>
    %250 = vector.extract_strided_slice %232 {offsets = [0, 0], sizes = [32, 7], strides = [1, 1]} : vector<32x8xf32> to vector<32x7xf32>
    %251 = tpu.concatenate %249, %250 in 1 : vector<32x1xf32>, vector<32x7xf32> -> vector<32x8xf32>
    %252 = vector.extract_strided_slice %234 {offsets = [0, 1], sizes = [32, 1], strides = [1, 1]} : vector<32x4xf32> to vector<32x1xf32>
    %c1_147 = arith.constant 1 : index
    %c0_148 = arith.constant 0 : index
    %c0_149 = arith.constant 0 : index
    %253 = vector.load %arg9[%c1_147, %c0_148, %c0_149] : memref<4x1x24xf32, #tpu.memory_space<vmem>>, vector<1x1x8xf32>
    %254 = vector.shape_cast %253 : vector<1x1x8xf32> to vector<1x8xf32>
    %255 = vector.broadcast %254 : vector<1x8xf32> to vector<32x8xf32>
    %256 = arith.mulf %251, %255 : vector<32x8xf32>
    %257 = vector.broadcast %252 : vector<32x1xf32> to vector<32x8xf32>
    %258 = arith.mulf %257, %256 : vector<32x8xf32>
    %259 = arith.addf %248, %258 : vector<32x8xf32>
    %260 = vector.extract_strided_slice %232 {offsets = [0, 1], sizes = [32, 7], strides = [1, 1]} : vector<32x8xf32> to vector<32x7xf32>
    %cst_150 = arith.constant 0.000000e+00 : f32
    %261 = vector.broadcast %cst_150 : f32 to vector<32x1xf32>
    %262 = tpu.concatenate %260, %261 in 1 : vector<32x7xf32>, vector<32x1xf32> -> vector<32x8xf32>
    %263 = vector.extract_strided_slice %234 {offsets = [0, 3], sizes = [32, 1], strides = [1, 1]} : vector<32x4xf32> to vector<32x1xf32>
    %c3_151 = arith.constant 3 : index
    %c0_152 = arith.constant 0 : index
    %c0_153 = arith.constant 0 : index
    %264 = vector.load %arg9[%c3_151, %c0_152, %c0_153] : memref<4x1x24xf32, #tpu.memory_space<vmem>>, vector<1x1x8xf32>
    %265 = vector.shape_cast %264 : vector<1x1x8xf32> to vector<1x8xf32>
    %266 = vector.broadcast %265 : vector<1x8xf32> to vector<32x8xf32>
    %267 = arith.mulf %262, %266 : vector<32x8xf32>
    %268 = vector.broadcast %263 : vector<32x1xf32> to vector<32x8xf32>
    %269 = arith.mulf %268, %267 : vector<32x8xf32>
    %270 = arith.addf %259, %269 : vector<32x8xf32>
    %c2_154 = arith.constant 2 : index
    %c0_155 = arith.constant 0 : index
    %c0_156 = arith.constant 0 : index
    %271 = vector.load %arg6[%c2_154, %c0_155, %c0_156] : memref<3x32x32xf32, #tpu.memory_space<vmem>>, vector<1x32x32xf32>
    %272 = vector.shape_cast %271 : vector<1x32x32xf32> to vector<32x32xf32>
    %cst_157 = arith.constant dense<0.000000e+00> : vector<32x8xf32>
    %273 = tpu.matmul %272, %270, %cst_157 {dimension_numbers = #tpu.dot_dimension_numbers<[1], [0], [0], [1], [0, 0, 1, 1], [], []>} : vector<32x32xf32>, vector<32x8xf32>, vector<32x8xf32> -> vector<32x8xf32>
    %c2_158 = arith.constant 2 : index
    %c0_159 = arith.constant 0 : index
    %c0_160 = arith.constant 0 : index
    %274 = vector.load %arg7[%c2_158, %c0_159, %c0_160] : memref<3x32x1xf32, #tpu.memory_space<vmem>>, vector<1x32x1xf32>
    %275 = vector.shape_cast %274 : vector<1x32x1xf32> to vector<32x1xf32>
    %276 = vector.broadcast %275 : vector<32x1xf32> to vector<32x8xf32>
    %277 = arith.addf %273, %276 : vector<32x8xf32>
    %cst_161 = arith.constant 0.000000e+00 : f32
    %278 = vector.broadcast %cst_161 : f32 to vector<32x8xf32>
    %279 = arith.maximumf %277, %278 : vector<32x8xf32>
    %c2_162 = arith.constant 2 : index
    %c0_163 = arith.constant 0 : index
    %c0_164 = arith.constant 0 : index
    %280 = vector.load %arg8[%c2_162, %c0_163, %c0_164] : memref<3x32x24xf32, #tpu.memory_space<vmem>>, vector<1x32x8xf32>
    %281 = vector.shape_cast %280 : vector<1x32x8xf32> to vector<32x8xf32>
    %282 = arith.mulf %279, %281 : vector<32x8xf32>
    %c0_165 = arith.constant 0 : index
    %c0_166 = arith.constant 0 : index
    %283 = vector.load %arg10[%c0_165, %c0_166] : memref<24x2xf32, #tpu.memory_space<vmem>>, vector<8x2xf32>
    %cst_167 = arith.constant dense<0.000000e+00> : vector<32x2xf32>
    %284 = tpu.matmul %282, %283, %cst_167 {dimension_numbers = #tpu.dot_dimension_numbers<[1], [0], [0], [1], [0, 0, 1, 1], [], []>} : vector<32x8xf32>, vector<8x2xf32>, vector<32x2xf32> -> vector<32x2xf32>
    %285 = arith.addf %191, %284 : vector<32x2xf32>
    %cst_168 = arith.constant dense<0.000000e+00> : vector<2xf32>
    %286 = vector.multi_reduction <add>, %285, %cst_168 [0] : vector<32x2xf32> to vector<2xf32>
    %287 = vector.shape_cast %286 : vector<2xf32> to vector<1x2xf32>
    %c0_169 = arith.constant 0 : index
    %c0_170 = arith.constant 0 : index
    %288 = vector.load %arg11[%c0_169, %c0_170] : memref<1x1xf32, #tpu.memory_space<vmem>>, vector<1x1xf32>
    %289 = vector.broadcast %288 : vector<1x1xf32> to vector<1x2xf32>
    %290 = arith.addf %287, %289 : vector<1x2xf32>
    %c0_171 = arith.constant 0 : index
    %c0_172 = arith.constant 0 : index
    %c0_173 = arith.constant 0 : index
    %291 = vector.load %arg12[%c0_171, %c0_172, %c0_173] : memref<1x1x2xf32, #tpu.memory_space<vmem>>, vector<1x1x2xf32>
    %292 = vector.shape_cast %291 : vector<1x1x2xf32> to vector<1x2xf32>
    %293 = vector.shape_cast %290 : vector<1x2xf32> to vector<1x1x2xf32>
    tpu.vector_store %arg12[%c0_171, %c0_172, %c0_173], %293 {strides = array<i32>} : memref<1x1x2xf32, #tpu.memory_space<vmem>>, vector<1x1x2xf32>,
    return
  }
  func.func @transform_0(%arg0: i32) -> (i32, i32, i32) {
    %c0_i32 = arith.constant 0 : i32
    %c0_i32_0 = arith.constant 0 : i32
    %c0_i32_1 = arith.constant 0 : i32
    return %arg0, %c0_i32, %c0_i32_0 : i32, i32, i32
  }
  func.func @transform_1(%arg0: i32) -> (i32, i32) {
    %c0_i32 = arith.constant 0 : i32
    %c0_i32_0 = arith.constant 0 : i32
    %c0_i32_1 = arith.constant 0 : i32
    return %c0_i32, %c0_i32_0 : i32, i32
  }
  func.func @transform_2(%arg0: i32) -> (i32, i32, i32) {
    %c0_i32 = arith.constant 0 : i32
    %c0_i32_0 = arith.constant 0 : i32
    %c0_i32_1 = arith.constant 0 : i32
    %c0_i32_2 = arith.constant 0 : i32
    return %c0_i32, %c0_i32_0, %c0_i32_1 : i32, i32, i32
  }
  func.func @transform_3(%arg0: i32) -> (i32, i32, i32) {
    %c0_i32 = arith.constant 0 : i32
    %c0_i32_0 = arith.constant 0 : i32
    %c0_i32_1 = arith.constant 0 : i32
    %c0_i32_2 = arith.constant 0 : i32
    return %c0_i32, %c0_i32_0, %c0_i32_1 : i32, i32, i32
  }
  func.func @transform_4(%arg0: i32) -> (i32, i32, i32) {
    %c0_i32 = arith.constant 0 : i32
    %c0_i32_0 = arith.constant 0 : i32
    %c0_i32_1 = arith.constant 0 : i32
    %c0_i32_2 = arith.constant 0 : i32
    return %c0_i32, %c0_i32_0, %c0_i32_1 : i32, i32, i32
  }
  func.func @transform_5(%arg0: i32) -> (i32, i32, i32) {
    %c0_i32 = arith.constant 0 : i32
    %c0_i32_0 = arith.constant 0 : i32
    %c0_i32_1 = arith.constant 0 : i32
    %c0_i32_2 = arith.constant 0 : i32
    return %c0_i32, %c0_i32_0, %c0_i32_1 : i32, i32, i32
  }
  func.func @transform_6(%arg0: i32) -> (i32, i32, i32) {
    %c0_i32 = arith.constant 0 : i32
    %c0_i32_0 = arith.constant 0 : i32
    %c0_i32_1 = arith.constant 0 : i32
    %c0_i32_2 = arith.constant 0 : i32
    return %c0_i32, %c0_i32_0, %c0_i32_1 : i32, i32, i32
  }
  func.func @transform_7(%arg0: i32) -> (i32, i32, i32) {
    %c0_i32 = arith.constant 0 : i32
    %c0_i32_0 = arith.constant 0 : i32
    %c0_i32_1 = arith.constant 0 : i32
    %c0_i32_2 = arith.constant 0 : i32
    return %c0_i32, %c0_i32_0, %c0_i32_1 : i32, i32, i32
  }
  func.func @transform_8(%arg0: i32) -> (i32, i32, i32) {
    %c0_i32 = arith.constant 0 : i32
    %c0_i32_0 = arith.constant 0 : i32
    %c0_i32_1 = arith.constant 0 : i32
    %c0_i32_2 = arith.constant 0 : i32
    return %c0_i32, %c0_i32_0, %c0_i32_1 : i32, i32, i32
  }
  func.func @transform_9(%arg0: i32) -> (i32, i32) {
    %c0_i32 = arith.constant 0 : i32
    %c0_i32_0 = arith.constant 0 : i32
    %c0_i32_1 = arith.constant 0 : i32
    return %c0_i32, %c0_i32_0 : i32, i32
  }
  func.func @transform_10(%arg0: i32) -> (i32, i32) {
    %c0_i32 = arith.constant 0 : i32
    %c0_i32_0 = arith.constant 0 : i32
    %c0_i32_1 = arith.constant 0 : i32
    return %c0_i32, %c0_i32_0 : i32, i32
  }
  func.func @transform_11(%arg0: i32) -> (i32, i32, i32) {
    %c0_i32 = arith.constant 0 : i32
    %c0_i32_0 = arith.constant 0 : i32
    %c0_i32_1 = arith.constant 0 : i32
    return %arg0, %c0_i32, %c0_i32_0 : i32, i32, i32
  }
}

</mosaic_0001>

<llo_original>
// kernel: tpu_custom_call.1
$region0: #{tpu_custom_call.1}
  #allocation0 [shape = 'u32[]', space=smem, size = 0x4, offset = 0x4, fixed_abs, tag = 'smem constant byte address 0x4 - core index']
  #allocation1 [shape = 'u32[144,128]{1,0:T(1,128)}', space=vmem, size = 0x12000, scoped, tag = 'internal scratch']
  #allocation2 [shape = 'f32[16,128]{1,0:T(8,128)}', space=vmem, size = 0x2000, scoped, tag = 'scratch operand']
  #allocation3 [shape = 'f32[1,1]{1,0:T(1,128)S(1)}', space=vmem, size = 0x200, scoped, tag = 'scoped memory for tpu_custom_call.1']
  %s0 = inlined_call_operand.vmem [shape: f32[1,16,128], index: 0, kind: input, shape index: {}]
  %s1 = inlined_call_operand.vmem [shape: f32[16,16], index: 1, kind: input, shape index: {}]
  %s2 = inlined_call_operand.vmem [shape: f32[3,32,32], index: 2, kind: input, shape index: {}]
  %s3 = inlined_call_operand.vmem [shape: f32[3,32,1], index: 3, kind: input, shape index: {}]
  %s4 = inlined_call_operand.vmem [shape: f32[3,32,4], index: 4, kind: input, shape index: {}]
  %s5 = inlined_call_operand.vmem [shape: f32[3,32,32], index: 5, kind: input, shape index: {}]
  %s6 = inlined_call_operand.vmem [shape: f32[3,32,1], index: 6, kind: input, shape index: {}]
  %s7 = inlined_call_operand.vmem [shape: f32[3,32,24], index: 7, kind: input, shape index: {}]
  %s8 = inlined_call_operand.vmem [shape: f32[4,1,24], index: 8, kind: input, shape index: {}]
  %s9 = inlined_call_operand.vmem [shape: f32[24,2], index: 9, kind: input, shape index: {}]
  %s10 = inlined_call_operand.<no memory space> [shape: f32[1,1], index: 10, kind: input, shape index: {}]
  %s11 = inlined_call_operand.hbm [shape: f32[1,1,2], index: 11, kind: output, shape index: {}]
  %s12 = sld [smem:[#allocation0]]
  $region54: #{tpu_custom_call.1} parent=0
    _
  %s14 = ssub.s32 1, %s12
  %s15 = scalar_select 0, %s14, %s12
  %v16 = vstv %s10
  %17 = vst [vmem:[#allocation3] sm:$0x1] %v16
  $region1: #{tpu_custom_call.1} parent=0
    #allocation4 [shape = 'u8[512]{0}', space=vmem, size = 0x400, scoped, tag = 'output window, operand 0, single buffered']
    #allocation5 [shape = 's32[1]{0}', space=sflag, size = 0x4, scoped, tag = 'scoped memory for tpu_custom_call.1']
    %18 = vsyncpa [#allocation5], 0
    // Predicated region
    $region2: #{tpu_custom_call.1} parent=1 // pred_check
      _
    $region3: #{tpu_custom_call.1} parent=1 // pred_check_branch
      %20 = sbr.rel (0) target = $region5
    $region4: #{tpu_custom_call.1} parent=1 // pred_region
      _
    $region5: #{tpu_custom_call.1} parent=1 // pred_fallthru
      _
    // Predicated region
    $region6: #{tpu_custom_call.1} parent=1 // pred_check
      _
    $region7: #{tpu_custom_call.1} parent=1 // pred_check_branch
      %22 = sbr.rel (0) target = $region9
    $region8: #{tpu_custom_call.1} parent=1 // pred_region
      _
    $region9: #{tpu_custom_call.1} parent=1 // pred_fallthru
      _
    // Predicated region
    $region10: #{tpu_custom_call.1} parent=1 // pred_check
      _
    $region11: #{tpu_custom_call.1} parent=1 // pred_check_branch
      %24 = sbr.rel (0) target = $region13
    $region12: #{tpu_custom_call.1} parent=1 // pred_region
      _
    $region13: #{tpu_custom_call.1} parent=1 // pred_fallthru
      _
    // Predicated region
    $region14: #{tpu_custom_call.1} parent=1 // pred_check
      _
    $region15: #{tpu_custom_call.1} parent=1 // pred_check_branch
      %26 = sbr.rel (0) target = $region17
    $region16: #{tpu_custom_call.1} parent=1 // pred_region
      _
    $region17: #{tpu_custom_call.1} parent=1 // pred_fallthru
      _
    // Predicated region
    $region18: #{tpu_custom_call.1} parent=1 // pred_check
      _
    $region19: #{tpu_custom_call.1} parent=1 // pred_check_branch
      %28 = sbr.rel (0) target = $region21
    $region20: #{tpu_custom_call.1} parent=1 // pred_region
      _
    $region21: #{tpu_custom_call.1} parent=1 // pred_fallthru
      _
    // Predicated region
    $region22: #{tpu_custom_call.1} parent=1 // pred_check
      _
    $region23: #{tpu_custom_call.1} parent=1 // pred_check_branch
      %30 = sbr.rel (0) target = $region25
    $region24: #{tpu_custom_call.1} parent=1 // pred_region
      _
    $region25: #{tpu_custom_call.1} parent=1 // pred_fallthru
      _
    // Predicated region
    $region26: #{tpu_custom_call.1} parent=1 // pred_check
      _
    $region27: #{tpu_custom_call.1} parent=1 // pred_check_branch
      %32 = sbr.rel (0) target = $region29
    $region28: #{tpu_custom_call.1} parent=1 // pred_region
      _
    $region29: #{tpu_custom_call.1} parent=1 // pred_fallthru
      _
    // Predicated region
    $region30: #{tpu_custom_call.1} parent=1 // pred_check
      _
    $region31: #{tpu_custom_call.1} parent=1 // pred_check_branch
      %34 = sbr.rel (0) target = $region33
    $region32: #{tpu_custom_call.1} parent=1 // pred_region
      _
    $region33: #{tpu_custom_call.1} parent=1 // pred_fallthru
      _
    // Predicated region
    $region34: #{tpu_custom_call.1} parent=1 // pred_check
      _
    $region35: #{tpu_custom_call.1} parent=1 // pred_check_branch
      %36 = sbr.rel (0) target = $region37
    $region36: #{tpu_custom_call.1} parent=1 // pred_region
      _
    $region37: #{tpu_custom_call.1} parent=1 // pred_fallthru
      _
    // Predicated region
    $region38: #{tpu_custom_call.1} parent=1 // pred_check
      _
    $region39: #{tpu_custom_call.1} parent=1 // pred_check_branch
      %38 = sbr.rel (0) target = $region41
    $region40: #{tpu_custom_call.1} parent=1 // pred_region
      _
    $region41: #{tpu_custom_call.1} parent=1 // pred_fallthru
      _
    // Predicated region
    $region42: #{tpu_custom_call.1} parent=1 // pred_check
      _
    $region43: #{tpu_custom_call.1} parent=1 // pred_check_branch
      %40 = sbr.rel (0) target = $region45
    $region44: #{tpu_custom_call.1} parent=1 // pred_region
      _
    $region45: #{tpu_custom_call.1} parent=1 // pred_fallthru
      _
    %v41 = vld [vmem:[%s1] sm:$0xff]
    %v42 = vld [vmem:[%s1 + $0x8] sm:$0xff]
    %v43 = vld [vmem:[%s0] sm:$0xff]
    %v44 = vld [vmem:[%s0 + $0x8] sm:$0xff]
    %vm45 = vcmask 130048
    %v47 = vsel %vm45, %v41, 0
    %v50 = vsel %vm45, %v42, 0
    %52 = vmatprep.subr.mxu0 0.0
    %53 = vmatpush1.msra.mxu0 %v43
    %54 = vmatprep.subr.mxu0 0.0
    %55 = vmatpush1.msra.mxu0 %v44
    %56 = vmatprep.subr.mxu0 0.0
    %57 = vmatpush1.msra.mxu0 0.0
    %58 = vmatprep.subr.mxu0 0.0
    %59 = vmatpush1.msra.mxu0 0.0
    %60 = vmatprep.subr.mxu0 0.0
    %61 = vmatpush1.msra.mxu0 0.0
    %62 = vmatprep.subr.mxu0 0.0
    %63 = vmatpush1.msra.mxu0 0.0
    %64 = vmatprep.subr.mxu0 0.0
    %65 = vmatpush1.msra.mxu0 0.0
    %66 = vmatprep.subr.mxu0 0.0
    %67 = vmatpush1.msra.mxu0 0.0
    %68 = vmatprep.subr.mxu0 0.0
    %69 = vmatpush1.msra.mxu0 0.0
    %70 = vmatprep.subr.mxu0 0.0
    %71 = vmatpush1.msra.mxu0 0.0
    %72 = vmatprep.subr.mxu0 0.0
    %73 = vmatpush1.msra.mxu0 0.0
    %74 = vmatprep.subr.mxu0 0.0
    %75 = vmatpush1.msra.mxu0 0.0
    %76 = vmatprep.subr.mxu0 0.0
    %77 = vmatpush1.msra.mxu0 0.0
    %78 = vmatprep.subr.mxu0 0.0
    %79 = vmatpush1.msra.mxu0 0.0
    %80 = vmatprep.subr.mxu0 0.0
    %81 = vmatpush1.msra.mxu0 0.0
    %82 = vmatprep.subr.mxu0 0.0
    %83 = vmatpush1.msra.mxu0 0.0
    %84 = vmatprep.subr.mxu0 0.0
    %85 = vmatpush1.msra.mxu0 0.0
    %86 = vmatprep.subr.mxu0 0.0
    %87 = vmatpush1.msra.mxu0 0.0
    %88 = vmatprep.subr.mxu0 0.0
    %89 = vmatpush1.msra.mxu0 0.0
    %90 = vmatprep.subr.mxu0 0.0
    %91 = vmatpush1.msra.mxu0 0.0
    %92 = vmatprep.subr.mxu0 0.0
    %93 = vmatpush1.msra.mxu0 0.0
    %94 = vmatprep.subr.mxu0 0.0
    %95 = vmatpush1.msra.mxu0 0.0
    %96 = vmatprep.subr.mxu0 0.0
    %97 = vmatpush1.msra.mxu0 0.0
    %98 = vmatprep.subr.mxu0 0.0
    %99 = vmatpush1.msra.mxu0 0.0
    %100 = vmatprep.subr.mxu0 0.0
    %101 = vmatpush1.msra.mxu0 0.0
    %102 = vmatprep.subr.mxu0 0.0
    %103 = vmatpush1.msra.mxu0 0.0
    %104 = vmatprep.subr.mxu0 0.0
    %105 = vmatpush1.msra.mxu0 0.0
    %106 = vmatprep.subr.mxu0 0.0
    %107 = vmatpush1.msra.mxu0 0.0
    %108 = vmatprep.subr.mxu0 0.0
    %109 = vmatpush1.msra.mxu0 0.0
    %110 = vmatprep.subr.mxu0 0.0
    %111 = vmatpush1.msra.mxu0 0.0
    %112 = vmatprep.subr.mxu0 0.0
    %113 = vmatpush1.msra.mxu0 0.0
    %114 = vmatprep.subr.mxu0 0.0
    %115 = vmatpush1.msra.mxu0 0.0
    %116 = vmatprep.mubr.f32.mxu0 0.0
    %117 = vmatmul.mubr.f32.gmra.mrb[0].mxu0 %v47
    %v118 = vpop.f32.mrb[0].mxu0
    %v119 = vadd.f32 0.0, %v118
    %v120 = vpop.f32.mrb[0].mxu0
    %121 = vmatprep.mubr.f32.mxu0 0.0
    %122 = vmatmul.mubr.f32.gmra.mrb[0].mxu0 %v50
    %v123 = vpop.f32.mrb[0].mxu0
    %v124 = vadd.f32 0.0, %v123
    %v125 = vpop.f32.mrb[0].mxu0
    %126 = vdwg.mxu0
    %127 = vst [vmem:[#allocation2] sm:$0xff] %v119
    %128 = vst [vmem:[#allocation2 + $0x8] sm:$0xff] %v124
    %v129 = vld [vmem:[%s2] sm:$0xff]
    %v130 = vld [vmem:[%s2 + $0x8] sm:$0xff]
    %v131 = vld [vmem:[%s2 + $0x10] sm:$0xff]
    %v132 = vld [vmem:[%s2 + $0x18] sm:$0xff]
    %v133 = vld [vmem:[%s3] sm:$0xff]
    %v134 = vld [vmem:[%s3 + $0x8] sm:$0xff]
    %v135 = vld [vmem:[%s3 + $0x10] sm:$0xff]
    %v136 = vld [vmem:[%s3 + $0x18] sm:$0xff]
    %v137 = vld [vmem:[#allocation2] sm:$0xff]
    %v138 = vld [vmem:[#allocation2 + $0x8] sm:$0xff]
    %141 = vrot.lane.b32.xlu0 %v137, 120
    %v142 = vpop.permute.xlu0 %141
    %143 = vrot.lane.b32.xlu0 %v138, 120
    %v144 = vpop.permute.xlu0 %143
    %148 = vset.pattern.permute.xlu0 0
    %149 = vperm.xlu0 %148, %v133
    %v150 = vpop.permute.xlu0 %149
    %153 = vset.pattern.permute.xlu0 0
    %154 = vperm.xlu0 %153, %v134
    %v155 = vpop.permute.xlu0 %154
    %158 = vset.pattern.permute.xlu0 0
    %159 = vperm.xlu0 %158, %v135
    %v160 = vpop.permute.xlu0 %159
    %163 = vset.pattern.permute.xlu0 0
    %164 = vperm.xlu0 %163, %v136
    %v165 = vpop.permute.xlu0 %164
    %vm167 = vcmask 261120
    %v169 = vsel %vm167, %v129, 0
    %v172 = vsel %vm167, %v130, 0
    %v175 = vsel %vm167, %v131, 0
    %v178 = vsel %vm167, %v132, 0
    %180 = vmatprep.subr.mxu0 0.0
    %181 = vmatpush1.msra.mxu0 %v137
    %182 = vmatprep.subr.mxu0 0.0
    %183 = vmatpush1.msra.mxu0 %v138
    %184 = vmatprep.subr.mxu0 0.0
    %185 = vmatpush1.msra.mxu0 %v142
    %186 = vmatprep.subr.mxu0 0.0
    %187 = vmatpush1.msra.mxu0 %v144
    %188 = vmatprep.subr.mxu0 0.0
    %189 = vmatpush1.msra.mxu0 0.0
    %190 = vmatprep.subr.mxu0 0.0
    %191 = vmatpush1.msra.mxu0 0.0
    %192 = vmatprep.subr.mxu0 0.0
    %193 = vmatpush1.msra.mxu0 0.0
    %194 = vmatprep.subr.mxu0 0.0
    %195 = vmatpush1.msra.mxu0 0.0
    %196 = vmatprep.subr.mxu0 0.0
    %197 = vmatpush1.msra.mxu0 0.0
    %198 = vmatprep.subr.mxu0 0.0
    %199 = vmatpush1.msra.mxu0 0.0
    %200 = vmatprep.subr.mxu0 0.0
    %201 = vmatpush1.msra.mxu0 0.0
    %202 = vmatprep.subr.mxu0 0.0
    %203 = vmatpush1.msra.mxu0 0.0
    %204 = vmatprep.subr.mxu0 0.0
    %205 = vmatpush1.msra.mxu0 0.0
    %206 = vmatprep.subr.mxu0 0.0
    %207 = vmatpush1.msra.mxu0 0.0
    %208 = vmatprep.subr.mxu0 0.0
    %209 = vmatpush1.msra.mxu0 0.0
    %210 = vmatprep.subr.mxu0 0.0
    %211 = vmatpush1.msra.mxu0 0.0
    %212 = vmatprep.subr.mxu0 0.0
    %213 = vmatpush1.msra.mxu0 0.0
    %214 = vmatprep.subr.mxu0 0.0
    %215 = vmatpush1.msra.mxu0 0.0
    %216 = vmatprep.subr.mxu0 0.0
    %217 = vmatpush1.msra.mxu0 0.0
    %218 = vmatprep.subr.mxu0 0.0
    %219 = vmatpush1.msra.mxu0 0.0
    %220 = vmatprep.subr.mxu0 0.0
    %221 = vmatpush1.msra.mxu0 0.0
    %222 = vmatprep.subr.mxu0 0.0
    %223 = vmatpush1.msra.mxu0 0.0
    %224 = vmatprep.subr.mxu0 0.0
    %225 = vmatpush1.msra.mxu0 0.0
    %226 = vmatprep.subr.mxu0 0.0
    %227 = vmatpush1.msra.mxu0 0.0
    %228 = vmatprep.subr.mxu0 0.0
    %229 = vmatpush1.msra.mxu0 0.0
    %230 = vmatprep.subr.mxu0 0.0
    %231 = vmatpush1.msra.mxu0 0.0
    %232 = vmatprep.subr.mxu0 0.0
    %233 = vmatpush1.msra.mxu0 0.0
    %234 = vmatprep.subr.mxu0 0.0
    %235 = vmatpush1.msra.mxu0 0.0
    %236 = vmatprep.subr.mxu0 0.0
    %237 = vmatpush1.msra.mxu0 0.0
    %238 = vmatprep.subr.mxu0 0.0
    %239 = vmatpush1.msra.mxu0 0.0
    %240 = vmatprep.subr.mxu0 0.0
    %241 = vmatpush1.msra.mxu0 0.0
    %242 = vmatprep.subr.mxu0 0.0
    %243 = vmatpush1.msra.mxu0 0.0
    %244 = vmatprep.mubr.f32.mxu0 0.0
    %245 = vmatmul.mubr.f32.gmra.mrb[0].mxu0 %v169
    %v246 = vpop.f32.mrb[0].mxu0
    %v247 = vadd.f32 %v150, %v246
    %v248 = vpop.f32.mrb[0].mxu0
    %249 = vmatprep.mubr.f32.mxu0 0.0
    %250 = vmatmul.mubr.f32.gmra.mrb[0].mxu0 %v172
    %v251 = vpop.f32.mrb[0].mxu0
    %v252 = vadd.f32 %v155, %v251
    %v253 = vpop.f32.mrb[0].mxu0
    %254 = vmatprep.mubr.f32.mxu0 0.0
    %255 = vmatmul.mubr.f32.gmra.mrb[0].mxu0 %v175
    %v256 = vpop.f32.mrb[0].mxu0
    %v257 = vadd.f32 %v160, %v256
    %v258 = vpop.f32.mrb[0].mxu0
    %259 = vmatprep.mubr.f32.mxu0 0.0
    %260 = vmatmul.mubr.f32.gmra.mrb[0].mxu0 %v178
    %v261 = vpop.f32.mrb[0].mxu0
    %v262 = vadd.f32 %v165, %v261
    %v263 = vpop.f32.mrb[0].mxu0
    %264 = vdwg.mxu0
    %v265 = vmax.f32 %v247, 0.0
    %v266 = vmax.f32 %v252, 0.0
    %v267 = vmax.f32 %v257, 0.0
    %v268 = vmax.f32 %v262, 0.0
    %269 = vrot.lane.b32.xlu0 %v137, 96
    %v270 = vpop.permute.xlu0 %269
    %271 = vrot.lane.b32.xlu0 %v138, 96
    %v272 = vpop.permute.xlu0 %271
    %273 = vrot.lane.b32.xlu0 %v142, 96
    %v274 = vpop.permute.xlu0 %273
    %275 = vrot.lane.b32.xlu0 %v144, 96
    %v276 = vpop.permute.xlu0 %275
    %281 = vmatprep.subr.mxu0 0.0
    %282 = vmatpush1.msra.mxu0 %v270
    %283 = vmatprep.subr.mxu0 0.0
    %284 = vmatpush1.msra.mxu0 %v272
    %285 = vmatprep.subr.mxu0 0.0
    %286 = vmatpush1.msra.mxu0 %v274
    %287 = vmatprep.subr.mxu0 0.0
    %288 = vmatpush1.msra.mxu0 %v276
    %289 = vmatprep.subr.mxu0 0.0
    %290 = vmatpush1.msra.mxu0 0.0
    %291 = vmatprep.subr.mxu0 0.0
    %292 = vmatpush1.msra.mxu0 0.0
    %293 = vmatprep.subr.mxu0 0.0
    %294 = vmatpush1.msra.mxu0 0.0
    %295 = vmatprep.subr.mxu0 0.0
    %296 = vmatpush1.msra.mxu0 0.0
    %297 = vmatprep.subr.mxu0 0.0
    %298 = vmatpush1.msra.mxu0 0.0
    %299 = vmatprep.subr.mxu0 0.0
    %300 = vmatpush1.msra.mxu0 0.0
    %301 = vmatprep.subr.mxu0 0.0
    %302 = vmatpush1.msra.mxu0 0.0
    %303 = vmatprep.subr.mxu0 0.0
    %304 = vmatpush1.msra.mxu0 0.0
    %305 = vmatprep.subr.mxu0 0.0
    %306 = vmatpush1.msra.mxu0 0.0
    %307 = vmatprep.subr.mxu0 0.0
    %308 = vmatpush1.msra.mxu0 0.0
    %309 = vmatprep.subr.mxu0 0.0
    %310 = vmatpush1.msra.mxu0 0.0
    %311 = vmatprep.subr.mxu0 0.0
    %312 = vmatpush1.msra.mxu0 0.0
    %313 = vmatprep.subr.mxu0 0.0
    %314 = vmatpush1.msra.mxu0 0.0
    %315 = vmatprep.subr.mxu0 0.0
    %316 = vmatpush1.msra.mxu0 0.0
    %317 = vmatprep.subr.mxu0 0.0
    %318 = vmatpush1.msra.mxu0 0.0
    %319 = vmatprep.subr.mxu0 0.0
    %320 = vmatpush1.msra.mxu0 0.0
    %321 = vmatprep.subr.mxu0 0.0
    %322 = vmatpush1.msra.mxu0 0.0
    %323 = vmatprep.subr.mxu0 0.0
    %324 = vmatpush1.msra.mxu0 0.0
    %325 = vmatprep.subr.mxu0 0.0
    %326 = vmatpush1.msra.mxu0 0.0
    %327 = vmatprep.subr.mxu0 0.0
    %328 = vmatpush1.msra.mxu0 0.0
    %329 = vmatprep.subr.mxu0 0.0
    %330 = vmatpush1.msra.mxu0 0.0
    %331 = vmatprep.subr.mxu0 0.0
    %332 = vmatpush1.msra.mxu0 0.0
    %333 = vmatprep.subr.mxu0 0.0
    %334 = vmatpush1.msra.mxu0 0.0
    %335 = vmatprep.subr.mxu0 0.0
    %336 = vmatpush1.msra.mxu0 0.0
    %337 = vmatprep.subr.mxu0 0.0
    %338 = vmatpush1.msra.mxu0 0.0
    %339 = vmatprep.subr.mxu0 0.0
    %340 = vmatpush1.msra.mxu0 0.0
    %341 = vmatprep.subr.mxu0 0.0
    %342 = vmatpush1.msra.mxu0 0.0
    %343 = vmatprep.subr.mxu0 0.0
    %344 = vmatpush1.msra.mxu0 0.0
    %345 = vmatprep.mubr.f32.mxu0 0.0
    %346 = vmatmul.mubr.f32.gmra.mrb[0].mxu0 %v169
    %v347 = vpop.f32.mrb[0].mxu0
    %v348 = vadd.f32 %v150, %v347
    %v349 = vpop.f32.mrb[0].mxu0
    %350 = vmatprep.mubr.f32.mxu0 0.0
    %351 = vmatmul.mubr.f32.gmra.mrb[0].mxu0 %v172
    %v352 = vpop.f32.mrb[0].mxu0
    %v353 = vadd.f32 %v155, %v352
    %v354 = vpop.f32.mrb[0].mxu0
    %355 = vmatprep.mubr.f32.mxu0 0.0
    %356 = vmatmul.mubr.f32.gmra.mrb[0].mxu0 %v175
    %v357 = vpop.f32.mrb[0].mxu0
    %v358 = vadd.f32 %v160, %v357
    %v359 = vpop.f32.mrb[0].mxu0
    %360 = vmatprep.mubr.f32.mxu0 0.0
    %361 = vmatmul.mubr.f32.gmra.mrb[0].mxu0 %v178
    %v362 = vpop.f32.mrb[0].mxu0
    %v363 = vadd.f32 %v165, %v362
    %v364 = vpop.f32.mrb[0].mxu0
    %365 = vdwg.mxu0
    %v366 = vmax.f32 %v348, 0.0
    %v367 = vmax.f32 %v353, 0.0
    %v368 = vmax.f32 %v358, 0.0
    %v369 = vmax.f32 %v363, 0.0
    %v370 = vadd.f32 %v265, %v366
    %v371 = vadd.f32 %v266, %v367
    %v372 = vadd.f32 %v267, %v368
    %v373 = vadd.f32 %v268, %v369
    %374 = vrot.lane.b32.xlu0 %v137, 64
    %v375 = vpop.permute.xlu0 %374
    %376 = vrot.lane.b32.xlu0 %v138, 64
    %v377 = vpop.permute.xlu0 %376
    %378 = vrot.lane.b32.xlu0 %v142, 64
    %v379 = vpop.permute.xlu0 %378
    %380 = vrot.lane.b32.xlu0 %v144, 64
    %v381 = vpop.permute.xlu0 %380
    %386 = vmatprep.subr.mxu0 0.0
    %387 = vmatpush1.msra.mxu0 %v375
    %388 = vmatprep.subr.mxu0 0.0
    %389 = vmatpush1.msra.mxu0 %v377
    %390 = vmatprep.subr.mxu0 0.0
    %391 = vmatpush1.msra.mxu0 %v379
    %392 = vmatprep.subr.mxu0 0.0
    %393 = vmatpush1.msra.mxu0 %v381
    %394 = vmatprep.subr.mxu0 0.0
    %395 = vmatpush1.msra.mxu0 0.0
    %396 = vmatprep.subr.mxu0 0.0
    %397 = vmatpush1.msra.mxu0 0.0
    %398 = vmatprep.subr.mxu0 0.0
    %399 = vmatpush1.msra.mxu0 0.0
    %400 = vmatprep.subr.mxu0 0.0
    %401 = vmatpush1.msra.mxu0 0.0
    %402 = vmatprep.subr.mxu0 0.0
    %403 = vmatpush1.msra.mxu0 0.0
    %404 = vmatprep.subr.mxu0 0.0
    %405 = vmatpush1.msra.mxu0 0.0
    %406 = vmatprep.subr.mxu0 0.0
    %407 = vmatpush1.msra.mxu0 0.0
    %408 = vmatprep.subr.mxu0 0.0
    %409 = vmatpush1.msra.mxu0 0.0
    %410 = vmatprep.subr.mxu0 0.0
    %411 = vmatpush1.msra.mxu0 0.0
    %412 = vmatprep.subr.mxu0 0.0
    %413 = vmatpush1.msra.mxu0 0.0
    %414 = vmatprep.subr.mxu0 0.0
    %415 = vmatpush1.msra.mxu0 0.0
    %416 = vmatprep.subr.mxu0 0.0
    %417 = vmatpush1.msra.mxu0 0.0
    %418 = vmatprep.subr.mxu0 0.0
    %419 = vmatpush1.msra.mxu0 0.0
    %420 = vmatprep.subr.mxu0 0.0
    %421 = vmatpush1.msra.mxu0 0.0
    %422 = vmatprep.subr.mxu0 0.0
    %423 = vmatpush1.msra.mxu0 0.0
    %424 = vmatprep.subr.mxu0 0.0
    %425 = vmatpush1.msra.mxu0 0.0
    %426 = vmatprep.subr.mxu0 0.0
    %427 = vmatpush1.msra.mxu0 0.0
    %428 = vmatprep.subr.mxu0 0.0
    %429 = vmatpush1.msra.mxu0 0.0
    %430 = vmatprep.subr.mxu0 0.0
    %431 = vmatpush1.msra.mxu0 0.0
    %432 = vmatprep.subr.mxu0 0.0
    %433 = vmatpush1.msra.mxu0 0.0
    %434 = vmatprep.subr.mxu0 0.0
    %435 = vmatpush1.msra.mxu0 0.0
    %436 = vmatprep.subr.mxu0 0.0
    %437 = vmatpush1.msra.mxu0 0.0
    %438 = vmatprep.subr.mxu0 0.0
    %439 = vmatpush1.msra.mxu0 0.0
    %440 = vmatprep.subr.mxu0 0.0
    %441 = vmatpush1.msra.mxu0 0.0
    %442 = vmatprep.subr.mxu0 0.0
    %443 = vmatpush1.msra.mxu0 0.0
    %444 = vmatprep.subr.mxu0 0.0
    %445 = vmatpush1.msra.mxu0 0.0
    %446 = vmatprep.subr.mxu0 0.0
    %447 = vmatpush1.msra.mxu0 0.0
    %448 = vmatprep.subr.mxu0 0.0
    %449 = vmatpush1.msra.mxu0 0.0
    %450 = vmatprep.mubr.f32.mxu0 0.0
    %451 = vmatmul.mubr.f32.gmra.mrb[0].mxu0 %v169
    %v452 = vpop.f32.mrb[0].mxu0
    %v453 = vadd.f32 %v150, %v452
    %v454 = vpop.f32.mrb[0].mxu0
    %455 = vmatprep.mubr.f32.mxu0 0.0
    %456 = vmatmul.mubr.f32.gmra.mrb[0].mxu0 %v172
    %v457 = vpop.f32.mrb[0].mxu0
    %v458 = vadd.f32 %v155, %v457
    %v459 = vpop.f32.mrb[0].mxu0
    %460 = vmatprep.mubr.f32.mxu0 0.0
    %461 = vmatmul.mubr.f32.gmra.mrb[0].mxu0 %v175
    %v462 = vpop.f32.mrb[0].mxu0
    %v463 = vadd.f32 %v160, %v462
    %v464 = vpop.f32.mrb[0].mxu0
    %465 = vmatprep.mubr.f32.mxu0 0.0
    %466 = vmatmul.mubr.f32.gmra.mrb[0].mxu0 %v178
    %v467 = vpop.f32.mrb[0].mxu0
    %v468 = vadd.f32 %v165, %v467
    %v469 = vpop.f32.mrb[0].mxu0
    %470 = vdwg.mxu0
    %v471 = vmax.f32 %v453, 0.0
    %v472 = vmax.f32 %v458, 0.0
    %v473 = vmax.f32 %v463, 0.0
    %v474 = vmax.f32 %v468, 0.0
    %v475 = vadd.f32 %v370, %v471
    %v476 = vadd.f32 %v371, %v472
    %v477 = vadd.f32 %v372, %v473
    %v478 = vadd.f32 %v373, %v474
    %479 = vrot.lane.b32.xlu0 %v137, 32
    %v480 = vpop.permute.xlu0 %479
    %481 = vrot.lane.b32.xlu0 %v138, 32
    %v482 = vpop.permute.xlu0 %481
    %483 = vrot.lane.b32.xlu0 %v142, 32
    %v484 = vpop.permute.xlu0 %483
    %485 = vrot.lane.b32.xlu0 %v144, 32
    %v486 = vpop.permute.xlu0 %485
    %491 = vmatprep.subr.mxu0 0.0
    %492 = vmatpush1.msra.mxu0 %v480
    %493 = vmatprep.subr.mxu0 0.0
    %494 = vmatpush1.msra.mxu0 %v482
    %495 = vmatprep.subr.mxu0 0.0
    %496 = vmatpush1.msra.mxu0 %v484
    %497 = vmatprep.subr.mxu0 0.0
    %498 = vmatpush1.msra.mxu0 %v486
    %499 = vmatprep.subr.mxu0 0.0
    %500 = vmatpush1.msra.mxu0 0.0
    %501 = vmatprep.subr.mxu0 0.0
    %502 = vmatpush1.msra.mxu0 0.0
    %503 = vmatprep.subr.mxu0 0.0
    %504 = vmatpush1.msra.mxu0 0.0
    %505 = vmatprep.subr.mxu0 0.0
    %506 = vmatpush1.msra.mxu0 0.0
    %507 = vmatprep.subr.mxu0 0.0
    %508 = vmatpush1.msra.mxu0 0.0
    %509 = vmatprep.subr.mxu0 0.0
    %510 = vmatpush1.msra.mxu0 0.0
    %511 = vmatprep.subr.mxu0 0.0
    %512 = vmatpush1.msra.mxu0 0.0
    %513 = vmatprep.subr.mxu0 0.0
    %514 = vmatpush1.msra.mxu0 0.0
    %515 = vmatprep.subr.mxu0 0.0
    %516 = vmatpush1.msra.mxu0 0.0
    %517 = vmatprep.subr.mxu0 0.0
    %518 = vmatpush1.msra.mxu0 0.0
    %519 = vmatprep.subr.mxu0 0.0
    %520 = vmatpush1.msra.mxu0 0.0
    %521 = vmatprep.subr.mxu0 0.0
    %522 = vmatpush1.msra.mxu0 0.0
    %523 = vmatprep.subr.mxu0 0.0
    %524 = vmatpush1.msra.mxu0 0.0
    %525 = vmatprep.subr.mxu0 0.0
    %526 = vmatpush1.msra.mxu0 0.0
    %527 = vmatprep.subr.mxu0 0.0
    %528 = vmatpush1.msra.mxu0 0.0
    %529 = vmatprep.subr.mxu0 0.0
    %530 = vmatpush1.msra.mxu0 0.0
    %531 = vmatprep.subr.mxu0 0.0
    %532 = vmatpush1.msra.mxu0 0.0
    %533 = vmatprep.subr.mxu0 0.0
    %534 = vmatpush1.msra.mxu0 0.0
    %535 = vmatprep.subr.mxu0 0.0
    %536 = vmatpush1.msra.mxu0 0.0
    %537 = vmatprep.subr.mxu0 0.0
    %538 = vmatpush1.msra.mxu0 0.0
    %539 = vmatprep.subr.mxu0 0.0
    %540 = vmatpush1.msra.mxu0 0.0
    %541 = vmatprep.subr.mxu0 0.0
    %542 = vmatpush1.msra.mxu0 0.0
    %543 = vmatprep.subr.mxu0 0.0
    %544 = vmatpush1.msra.mxu0 0.0
    %545 = vmatprep.subr.mxu0 0.0
    %546 = vmatpush1.msra.mxu0 0.0
    %547 = vmatprep.subr.mxu0 0.0
    %548 = vmatpush1.msra.mxu0 0.0
    %549 = vmatprep.subr.mxu0 0.0
    %550 = vmatpush1.msra.mxu0 0.0
    %551 = vmatprep.subr.mxu0 0.0
    %552 = vmatpush1.msra.mxu0 0.0
    %553 = vmatprep.subr.mxu0 0.0
    %554 = vmatpush1.msra.mxu0 0.0
    %555 = vmatprep.mubr.f32.mxu0 0.0
    %556 = vmatmul.mubr.f32.gmra.mrb[0].mxu0 %v169
    %v557 = vpop.f32.mrb[0].mxu0
    %v558 = vadd.f32 %v150, %v557
    %v559 = vpop.f32.mrb[0].mxu0
    %560 = vmatprep.mubr.f32.mxu0 0.0
    %561 = vmatmul.mubr.f32.gmra.mrb[0].mxu0 %v172
    %v562 = vpop.f32.mrb[0].mxu0
    %v563 = vadd.f32 %v155, %v562
    %v564 = vpop.f32.mrb[0].mxu0
    %565 = vmatprep.mubr.f32.mxu0 0.0
    %566 = vmatmul.mubr.f32.gmra.mrb[0].mxu0 %v175
    %v567 = vpop.f32.mrb[0].mxu0
    %v568 = vadd.f32 %v160, %v567
    %v569 = vpop.f32.mrb[0].mxu0
    %570 = vmatprep.mubr.f32.mxu0 0.0
    %571 = vmatmul.mubr.f32.gmra.mrb[0].mxu0 %v178
    %v572 = vpop.f32.mrb[0].mxu0
    %v573 = vadd.f32 %v165, %v572
    %v574 = vpop.f32.mrb[0].mxu0
    %575 = vdwg.mxu0
    %v576 = vmax.f32 %v558, 0.0
    %v577 = vmax.f32 %v563, 0.0
    %v578 = vmax.f32 %v568, 0.0
    %v579 = vmax.f32 %v573, 0.0
    %v580 = vadd.f32 %v475, %v576
    %v581 = vadd.f32 %v476, %v577
    %v582 = vadd.f32 %v477, %v578
    %v583 = vadd.f32 %v478, %v579
    %v584 = vmul.f32 %v580, 0.25
    %v585 = vmul.f32 %v581, 0.25
    %v586 = vmul.f32 %v582, 0.25
    %v587 = vmul.f32 %v583, 0.25
    %v588 = vld [vmem:[%s4] sm:$0xff]
    %v589 = vld [vmem:[%s4 + $0x8] sm:$0xff]
    %v590 = vld [vmem:[%s4 + $0x10] sm:$0xff]
    %v591 = vld [vmem:[%s4 + $0x18] sm:$0xff]
    %593 = vset.pattern.permute.xlu0 2
    %594 = vperm.xlu0 %593, %v588
    %v595 = vpop.permute.xlu0 %594
    %598 = vset.pattern.permute.xlu0 2
    %599 = vperm.xlu0 %598, %v589
    %v600 = vpop.permute.xlu0 %599
    %603 = vset.pattern.permute.xlu0 2
    %604 = vperm.xlu0 %603, %v590
    %v605 = vpop.permute.xlu0 %604
    %608 = vset.pattern.permute.xlu0 2
    %609 = vperm.xlu0 %608, %v591
    %v610 = vpop.permute.xlu0 %609
    %v612 = vmul.f32 %v595, %v584
    %v613 = vmul.f32 %v600, %v585
    %v614 = vmul.f32 %v605, %v586
    %v615 = vmul.f32 %v610, %v587
    %620 = vrot.lane.b32.xlu0 %v584, 2
    %v621 = vpop.permute.xlu0 %620
    %622 = vrot.lane.b32.xlu0 %v585, 2
    %v623 = vpop.permute.xlu0 %622
    %624 = vrot.lane.b32.xlu0 %v586, 2
    %v625 = vpop.permute.xlu0 %624
    %626 = vrot.lane.b32.xlu0 %v587, 2
    %v627 = vpop.permute.xlu0 %626
    %vm632 = vcmask 15360
    %v633 = vsel %vm632, 0.0, %v621
    %v634 = vsel %vm632, 0.0, %v623
    %v635 = vsel %vm632, 0.0, %v625
    %v636 = vsel %vm632, 0.0, %v627
    %v637 = vld [vmem:[%s8] sm:$0x1]
    %v639 = vlaneseq
    %v640 = vshrl.u32 %v639, 7
    %v641 = vsub.s32 0, %v640
    %v642 = vrot.slane %v637, %v641
    %v644 = vmul.f32 %v633, %v642
    %v645 = vmul.f32 %v634, %v642
    %v646 = vmul.f32 %v635, %v642
    %v647 = vmul.f32 %v636, %v642
    %648 = vset.pattern.permute.xlu0 0
    %649 = vperm.xlu0 %648, %v588
    %v650 = vpop.permute.xlu0 %649
    %652 = vset.pattern.permute.xlu0 0
    %653 = vperm.xlu0 %652, %v589
    %v654 = vpop.permute.xlu0 %653
    %656 = vset.pattern.permute.xlu0 0
    %657 = vperm.xlu0 %656, %v590
    %v658 = vpop.permute.xlu0 %657
    %660 = vset.pattern.permute.xlu0 0
    %661 = vperm.xlu0 %660, %v591
    %v662 = vpop.permute.xlu0 %661
    %v664 = vmul.f32 %v650, %v644
    %v665 = vmul.f32 %v654, %v645
    %v666 = vmul.f32 %v658, %v646
    %v667 = vmul.f32 %v662, %v647
    %v668 = vadd.f32 %v612, %v664
    %v669 = vadd.f32 %v613, %v665
    %v670 = vadd.f32 %v614, %v666
    %v671 = vadd.f32 %v615, %v667
    %672 = vrot.lane.b32.xlu0 %v584, 1
    %v673 = vpop.permute.xlu0 %672
    %674 = vrot.lane.b32.xlu0 %v585, 1
    %v675 = vpop.permute.xlu0 %674
    %676 = vrot.lane.b32.xlu0 %v586, 1
    %v677 = vpop.permute.xlu0 %676
    %678 = vrot.lane.b32.xlu0 %v587, 1
    %v679 = vpop.permute.xlu0 %678
    %vm684 = vcmask 7168
    %v685 = vsel %vm684, 0.0, %v673
    %v686 = vsel %vm684, 0.0, %v675
    %v687 = vsel %vm684, 0.0, %v677
    %v688 = vsel %vm684, 0.0, %v679
    %s689 = scalar_lea.vmem %s8, 1
    %v690 = vld [vmem:[%s689] sm:$0x1]
    %v692 = vlaneseq
    %v693 = vshrl.u32 %v692, 7
    %v694 = vsub.s32 0, %v693
    %v695 = vrot.slane %v690, %v694
    %v697 = vmul.f32 %v685, %v695
    %v698 = vmul.f32 %v686, %v695
    %v699 = vmul.f32 %v687, %v695
    %v700 = vmul.f32 %v688, %v695
    %701 = vset.pattern.permute.xlu0 1
    %702 = vperm.xlu0 %701, %v588
    %v703 = vpop.permute.xlu0 %702
    %705 = vset.pattern.permute.xlu0 1
    %706 = vperm.xlu0 %705, %v589
    %v707 = vpop.permute.xlu0 %706
    %709 = vset.pattern.permute.xlu0 1
    %710 = vperm.xlu0 %709, %v590
    %v711 = vpop.permute.xlu0 %710
    %713 = vset.pattern.permute.xlu0 1
    %714 = vperm.xlu0 %713, %v591
    %v715 = vpop.permute.xlu0 %714
    %v717 = vmul.f32 %v703, %v697
    %v718 = vmul.f32 %v707, %v698
    %v719 = vmul.f32 %v711, %v699
    %v720 = vmul.f32 %v715, %v700
    %v721 = vadd.f32 %v668, %v717
    %v722 = vadd.f32 %v669, %v718
    %v723 = vadd.f32 %v670, %v719
    %v724 = vadd.f32 %v671, %v720
    %725 = vrot.lane.b32.xlu0 %v584, 127
    %v726 = vpop.permute.xlu0 %725
    %727 = vrot.lane.b32.xlu0 %v585, 127
    %v728 = vpop.permute.xlu0 %727
    %729 = vrot.lane.b32.xlu0 %v586, 127
    %v730 = vpop.permute.xlu0 %729
    %731 = vrot.lane.b32.xlu0 %v587, 127
    %v732 = vpop.permute.xlu0 %731
    %vm737 = vcmask 187392
    %v738 = vsel %vm737, %v726, 0.0
    %v739 = vsel %vm737, %v728, 0.0
    %v740 = vsel %vm737, %v730, 0.0
    %v741 = vsel %vm737, %v732, 0.0
    %s742 = scalar_lea.vmem %s8, 3
    %v743 = vld [vmem:[%s742] sm:$0x1]
    %v745 = vlaneseq
    %v746 = vshrl.u32 %v745, 7
    %v747 = vsub.s32 0, %v746
    %v748 = vrot.slane %v743, %v747
    %v750 = vmul.f32 %v738, %v748
    %v751 = vmul.f32 %v739, %v748
    %v752 = vmul.f32 %v740, %v748
    %v753 = vmul.f32 %v741, %v748
    %754 = vset.pattern.permute.xlu0 3
    %755 = vperm.xlu0 %754, %v588
    %v756 = vpop.permute.xlu0 %755
    %758 = vset.pattern.permute.xlu0 3
    %759 = vperm.xlu0 %758, %v589
    %v760 = vpop.permute.xlu0 %759
    %762 = vset.pattern.permute.xlu0 3
    %763 = vperm.xlu0 %762, %v590
    %v764 = vpop.permute.xlu0 %763
    %766 = vset.pattern.permute.xlu0 3
    %767 = vperm.xlu0 %766, %v591
    %v768 = vpop.permute.xlu0 %767
    %v770 = vmul.f32 %v756, %v750
    %v771 = vmul.f32 %v760, %v751
    %v772 = vmul.f32 %v764, %v752
    %v773 = vmul.f32 %v768, %v753
    %v774 = vadd.f32 %v721, %v770
    %v775 = vadd.f32 %v722, %v771
    %v776 = vadd.f32 %v723, %v772
    %v777 = vadd.f32 %v724, %v773
    %v778 = vld [vmem:[%s5] sm:$0xff]
    %v779 = vld [vmem:[%s5 + $0x8] sm:$0xff]
    %v780 = vld [vmem:[%s5 + $0x10] sm:$0xff]
    %v781 = vld [vmem:[%s5 + $0x18] sm:$0xff]
    %v782 = vld [vmem:[%s6] sm:$0xff]
    %v783 = vld [vmem:[%s6 + $0x8] sm:$0xff]
    %v784 = vld [vmem:[%s6 + $0x10] sm:$0xff]
    %v785 = vld [vmem:[%s6 + $0x18] sm:$0xff]
    %787 = vset.pattern.permute.xlu0 0
    %788 = vperm.xlu0 %787, %v782
    %v789 = vpop.permute.xlu0 %788
    %792 = vset.pattern.permute.xlu0 0
    %793 = vperm.xlu0 %792, %v783
    %v794 = vpop.permute.xlu0 %793
    %797 = vset.pattern.permute.xlu0 0
    %798 = vperm.xlu0 %797, %v784
    %v799 = vpop.permute.xlu0 %798
    %802 = vset.pattern.permute.xlu0 0
    %803 = vperm.xlu0 %802, %v785
    %v804 = vpop.permute.xlu0 %803
    %v807 = vsel %vm167, %v778, 0
    %v810 = vsel %vm167, %v779, 0
    %v813 = vsel %vm167, %v780, 0
    %v816 = vsel %vm167, %v781, 0
    %818 = vmatprep.subr.mxu0 0.0
    %819 = vmatpush1.msra.mxu0 %v774
    %820 = vmatprep.subr.mxu0 0.0
    %821 = vmatpush1.msra.mxu0 %v775
    %822 = vmatprep.subr.mxu0 0.0
    %823 = vmatpush1.msra.mxu0 %v776
    %824 = vmatprep.subr.mxu0 0.0
    %825 = vmatpush1.msra.mxu0 %v777
    %826 = vmatprep.subr.mxu0 0.0
    %827 = vmatpush1.msra.mxu0 0.0
    %828 = vmatprep.subr.mxu0 0.0
    %829 = vmatpush1.msra.mxu0 0.0
    %830 = vmatprep.subr.mxu0 0.0
    %831 = vmatpush1.msra.mxu0 0.0
    %832 = vmatprep.subr.mxu0 0.0
    %833 = vmatpush1.msra.mxu0 0.0
    %834 = vmatprep.subr.mxu0 0.0
    %835 = vmatpush1.msra.mxu0 0.0
    %836 = vmatprep.subr.mxu0 0.0
    %837 = vmatpush1.msra.mxu0 0.0
    %838 = vmatprep.subr.mxu0 0.0
    %839 = vmatpush1.msra.mxu0 0.0
    %840 = vmatprep.subr.mxu0 0.0
    %841 = vmatpush1.msra.mxu0 0.0
    %842 = vmatprep.subr.mxu0 0.0
    %843 = vmatpush1.msra.mxu0 0.0
    %844 = vmatprep.subr.mxu0 0.0
    %845 = vmatpush1.msra.mxu0 0.0
    %846 = vmatprep.subr.mxu0 0.0
    %847 = vmatpush1.msra.mxu0 0.0
    %848 = vmatprep.subr.mxu0 0.0
    %849 = vmatpush1.msra.mxu0 0.0
    %850 = vmatprep.subr.mxu0 0.0
    %851 = vmatpush1.msra.mxu0 0.0
    %852 = vmatprep.subr.mxu0 0.0
    %853 = vmatpush1.msra.mxu0 0.0
    %854 = vmatprep.subr.mxu0 0.0
    %855 = vmatpush1.msra.mxu0 0.0
    %856 = vmatprep.subr.mxu0 0.0
    %857 = vmatpush1.msra.mxu0 0.0
    %858 = vmatprep.subr.mxu0 0.0
    %859 = vmatpush1.msra.mxu0 0.0
    %860 = vmatprep.subr.mxu0 0.0
    %861 = vmatpush1.msra.mxu0 0.0
    %862 = vmatprep.subr.mxu0 0.0
    %863 = vmatpush1.msra.mxu0 0.0
    %864 = vmatprep.subr.mxu0 0.0
    %865 = vmatpush1.msra.mxu0 0.0
    %866 = vmatprep.subr.mxu0 0.0
    %867 = vmatpush1.msra.mxu0 0.0
    %868 = vmatprep.subr.mxu0 0.0
    %869 = vmatpush1.msra.mxu0 0.0
    %870 = vmatprep.subr.mxu0 0.0
    %871 = vmatpush1.msra.mxu0 0.0
    %872 = vmatprep.subr.mxu0 0.0
    %873 = vmatpush1.msra.mxu0 0.0
    %874 = vmatprep.subr.mxu0 0.0
    %875 = vmatpush1.msra.mxu0 0.0
    %876 = vmatprep.subr.mxu0 0.0
    %877 = vmatpush1.msra.mxu0 0.0
    %878 = vmatprep.subr.mxu0 0.0
    %879 = vmatpush1.msra.mxu0 0.0
    %880 = vmatprep.subr.mxu0 0.0
    %881 = vmatpush1.msra.mxu0 0.0
    %882 = vmatprep.mubr.f32.mxu0 0.0
    %883 = vmatmul.mubr.f32.gmra.mrb[0].mxu0 %v807
    %v884 = vpop.f32.mrb[0].mxu0
    %v885 = vadd.f32 %v789, %v884
    %v886 = vpop.f32.mrb[0].mxu0
    %887 = vmatprep.mubr.f32.mxu0 0.0
    %888 = vmatmul.mubr.f32.gmra.mrb[0].mxu0 %v810
    %v889 = vpop.f32.mrb[0].mxu0
    %v890 = vadd.f32 %v794, %v889
    %v891 = vpop.f32.mrb[0].mxu0
    %892 = vmatprep.mubr.f32.mxu0 0.0
    %893 = vmatmul.mubr.f32.gmra.mrb[0].mxu0 %v813
    %v894 = vpop.f32.mrb[0].mxu0
    %v895 = vadd.f32 %v799, %v894
    %v896 = vpop.f32.mrb[0].mxu0
    %897 = vmatprep.mubr.f32.mxu0 0.0
    %898 = vmatmul.mubr.f32.gmra.mrb[0].mxu0 %v816
    %v899 = vpop.f32.mrb[0].mxu0
    %v900 = vadd.f32 %v804, %v899
    %v901 = vpop.f32.mrb[0].mxu0
    %902 = vdwg.mxu0
    %v903 = vmax.f32 %v885, 0.0
    %v904 = vmax.f32 %v890, 0.0
    %v905 = vmax.f32 %v895, 0.0
    %v906 = vmax.f32 %v900, 0.0
    %v907 = vld [vmem:[%s7] sm:$0xff]
    %v908 = vld [vmem:[%s7 + $0x8] sm:$0xff]
    %v909 = vld [vmem:[%s7 + $0x10] sm:$0xff]
    %v910 = vld [vmem:[%s7 + $0x18] sm:$0xff]
    %v911 = vmul.f32 %v903, %v907
    %v912 = vmul.f32 %v904, %v908
    %v913 = vmul.f32 %v905, %v909
    %v914 = vmul.f32 %v906, %v910
    %v915 = vld [vmem:[%s9] sm:$0xff]
    %v916 = vld [vmem:[%s9 + $0x8] sm:$0xff]
    %v917 = vld [vmem:[%s9 + $0x10] sm:$0xff]
    %s918 = scalar_lea.vmem %s2, 32
    %v919 = vld [vmem:[%s918] sm:$0xff]
    %v920 = vld [vmem:[%s918 + $0x8] sm:$0xff]
    %v921 = vld [vmem:[%s918 + $0x10] sm:$0xff]
    %v922 = vld [vmem:[%s918 + $0x18] sm:$0xff]
    %s923 = scalar_lea.vmem %s3, 32
    %v924 = vld [vmem:[%s923] sm:$0xff]
    %v925 = vld [vmem:[%s923 + $0x8] sm:$0xff]
    %v926 = vld [vmem:[%s923 + $0x10] sm:$0xff]
    %v927 = vld [vmem:[%s923 + $0x18] sm:$0xff]
    %928 = vrot.lane.b32.xlu0 %v137, 112
    %v929 = vpop.permute.xlu0 %928
    %930 = vrot.lane.b32.xlu0 %v138, 112
    %v931 = vpop.permute.xlu0 %930
    %935 = vset.pattern.permute.xlu0 0
    %936 = vperm.xlu0 %935, %v924
    %v937 = vpop.permute.xlu0 %936
    %940 = vset.pattern.permute.xlu0 0
    %941 = vperm.xlu0 %940, %v925
    %v942 = vpop.permute.xlu0 %941
    %945 = vset.pattern.permute.xlu0 0
    %946 = vperm.xlu0 %945, %v926
    %v947 = vpop.permute.xlu0 %946
    %950 = vset.pattern.permute.xlu0 0
    %951 = vperm.xlu0 %950, %v927
    %v952 = vpop.permute.xlu0 %951
    %v955 = vsel %vm167, %v919, 0
    %v958 = vsel %vm167, %v920, 0
    %v961 = vsel %vm167, %v921, 0
    %v964 = vsel %vm167, %v922, 0
    %966 = vmatprep.subr.mxu0 0.0
    %967 = vmatpush1.msra.mxu0 %v137
    %968 = vmatprep.subr.mxu0 0.0
    %969 = vmatpush1.msra.mxu0 %v138
    %970 = vmatprep.subr.mxu0 0.0
    %971 = vmatpush1.msra.mxu0 %v929
    %972 = vmatprep.subr.mxu0 0.0
    %973 = vmatpush1.msra.mxu0 %v931
    %974 = vmatprep.subr.mxu0 0.0
    %975 = vmatpush1.msra.mxu0 0.0
    %976 = vmatprep.subr.mxu0 0.0
    %977 = vmatpush1.msra.mxu0 0.0
    %978 = vmatprep.subr.mxu0 0.0
    %979 = vmatpush1.msra.mxu0 0.0
    %980 = vmatprep.subr.mxu0 0.0
    %981 = vmatpush1.msra.mxu0 0.0
    %982 = vmatprep.subr.mxu0 0.0
    %983 = vmatpush1.msra.mxu0 0.0
    %984 = vmatprep.subr.mxu0 0.0
    %985 = vmatpush1.msra.mxu0 0.0
    %986 = vmatprep.subr.mxu0 0.0
    %987 = vmatpush1.msra.mxu0 0.0
    %988 = vmatprep.subr.mxu0 0.0
    %989 = vmatpush1.msra.mxu0 0.0
    %990 = vmatprep.subr.mxu0 0.0
    %991 = vmatpush1.msra.mxu0 0.0
    %992 = vmatprep.subr.mxu0 0.0
    %993 = vmatpush1.msra.mxu0 0.0
    %994 = vmatprep.subr.mxu0 0.0
    %995 = vmatpush1.msra.mxu0 0.0
    %996 = vmatprep.subr.mxu0 0.0
    %997 = vmatpush1.msra.mxu0 0.0
    %998 = vmatprep.subr.mxu0 0.0
    %999 = vmatpush1.msra.mxu0 0.0
    %1000 = vmatprep.subr.mxu0 0.0
    %1001 = vmatpush1.msra.mxu0 0.0
    %1002 = vmatprep.subr.mxu0 0.0
    %1003 = vmatpush1.msra.mxu0 0.0
    %1004 = vmatprep.subr.mxu0 0.0
    %1005 = vmatpush1.msra.mxu0 0.0
    %1006 = vmatprep.subr.mxu0 0.0
    %1007 = vmatpush1.msra.mxu0 0.0
    %1008 = vmatprep.subr.mxu0 0.0
    %1009 = vmatpush1.msra.mxu0 0.0
    %1010 = vmatprep.subr.mxu0 0.0
    %1011 = vmatpush1.msra.mxu0 0.0
    %1012 = vmatprep.subr.mxu0 0.0
    %1013 = vmatpush1.msra.mxu0 0.0
    %1014 = vmatprep.subr.mxu0 0.0
    %1015 = vmatpush1.msra.mxu0 0.0
    %1016 = vmatprep.subr.mxu0 0.0
    %1017 = vmatpush1.msra.mxu0 0.0
    %1018 = vmatprep.subr.mxu0 0.0
    %1019 = vmatpush1.msra.mxu0 0.0
    %1020 = vmatprep.subr.mxu0 0.0
    %1021 = vmatpush1.msra.mxu0 0.0
    %1022 = vmatprep.subr.mxu0 0.0
    %1023 = vmatpush1.msra.mxu0 0.0
    %1024 = vmatprep.subr.mxu0 0.0
    %1025 = vmatpush1.msra.mxu0 0.0
    %1026 = vmatprep.subr.mxu0 0.0
    %1027 = vmatpush1.msra.mxu0 0.0
    %1028 = vmatprep.subr.mxu0 0.0
    %1029 = vmatpush1.msra.mxu0 0.0
    %1030 = vmatprep.mubr.f32.mxu0 0.0
    %1031 = vmatmul.mubr.f32.gmra.mrb[0].mxu0 %v955
    %v1032 = vpop.f32.mrb[0].mxu0
    %v1033 = vadd.f32 %v937, %v1032
    %v1034 = vpop.f32.mrb[0].mxu0
    %1035 = vmatprep.mubr.f32.mxu0 0.0
    %1036 = vmatmul.mubr.f32.gmra.mrb[0].mxu0 %v958
    %v1037 = vpop.f32.mrb[0].mxu0
    %v1038 = vadd.f32 %v942, %v1037
    %v1039 = vpop.f32.mrb[0].mxu0
    %1040 = vmatprep.mubr.f32.mxu0 0.0
    %1041 = vmatmul.mubr.f32.gmra.mrb[0].mxu0 %v961
    %v1042 = vpop.f32.mrb[0].mxu0
    %v1043 = vadd.f32 %v947, %v1042
    %v1044 = vpop.f32.mrb[0].mxu0
    %1045 = vmatprep.mubr.f32.mxu0 0.0
    %1046 = vmatmul.mubr.f32.gmra.mrb[0].mxu0 %v964
    %v1047 = vpop.f32.mrb[0].mxu0
    %v1048 = vadd.f32 %v952, %v1047
    %v1049 = vpop.f32.mrb[0].mxu0
    %1050 = vdwg.mxu0
    %v1051 = vmax.f32 %v1033, 0.0
    %v1052 = vmax.f32 %v1038, 0.0
    %v1053 = vmax.f32 %v1043, 0.0
    %v1054 = vmax.f32 %v1048, 0.0
    %1055 = vrot.lane.b32.xlu0 %v929, 96
    %v1056 = vpop.permute.xlu0 %1055
    %1057 = vrot.lane.b32.xlu0 %v931, 96
    %v1058 = vpop.permute.xlu0 %1057
    %1061 = vmatprep.subr.mxu0 0.0
    %1062 = vmatpush1.msra.mxu0 %v270
    %1063 = vmatprep.subr.mxu0 0.0
    %1064 = vmatpush1.msra.mxu0 %v272
    %1065 = vmatprep.subr.mxu0 0.0
    %1066 = vmatpush1.msra.mxu0 %v1056
    %1067 = vmatprep.subr.mxu0 0.0
    %1068 = vmatpush1.msra.mxu0 %v1058
    %1069 = vmatprep.subr.mxu0 0.0
    %1070 = vmatpush1.msra.mxu0 0.0
    %1071 = vmatprep.subr.mxu0 0.0
    %1072 = vmatpush1.msra.mxu0 0.0
    %1073 = vmatprep.subr.mxu0 0.0
    %1074 = vmatpush1.msra.mxu0 0.0
    %1075 = vmatprep.subr.mxu0 0.0
    %1076 = vmatpush1.msra.mxu0 0.0
    %1077 = vmatprep.subr.mxu0 0.0
    %1078 = vmatpush1.msra.mxu0 0.0
    %1079 = vmatprep.subr.mxu0 0.0
    %1080 = vmatpush1.msra.mxu0 0.0
    %1081 = vmatprep.subr.mxu0 0.0
    %1082 = vmatpush1.msra.mxu0 0.0
    %1083 = vmatprep.subr.mxu0 0.0
    %1084 = vmatpush1.msra.mxu0 0.0
    %1085 = vmatprep.subr.mxu0 0.0
    %1086 = vmatpush1.msra.mxu0 0.0
    %1087 = vmatprep.subr.mxu0 0.0
    %1088 = vmatpush1.msra.mxu0 0.0
    %1089 = vmatprep.subr.mxu0 0.0
    %1090 = vmatpush1.msra.mxu0 0.0
    %1091 = vmatprep.subr.mxu0 0.0
    %1092 = vmatpush1.msra.mxu0 0.0
    %1093 = vmatprep.subr.mxu0 0.0
    %1094 = vmatpush1.msra.mxu0 0.0
    %1095 = vmatprep.subr.mxu0 0.0
    %1096 = vmatpush1.msra.mxu0 0.0
    %1097 = vmatprep.subr.mxu0 0.0
    %1098 = vmatpush1.msra.mxu0 0.0
    %1099 = vmatprep.subr.mxu0 0.0
    %1100 = vmatpush1.msra.mxu0 0.0
    %1101 = vmatprep.subr.mxu0 0.0
    %1102 = vmatpush1.msra.mxu0 0.0
    %1103 = vmatprep.subr.mxu0 0.0
    %1104 = vmatpush1.msra.mxu0 0.0
    %1105 = vmatprep.subr.mxu0 0.0
    %1106 = vmatpush1.msra.mxu0 0.0
    %1107 = vmatprep.subr.mxu0 0.0
    %1108 = vmatpush1.msra.mxu0 0.0
    %1109 = vmatprep.subr.mxu0 0.0
    %1110 = vmatpush1.msra.mxu0 0.0
    %1111 = vmatprep.subr.mxu0 0.0
    %1112 = vmatpush1.msra.mxu0 0.0
    %1113 = vmatprep.subr.mxu0 0.0
    %1114 = vmatpush1.msra.mxu0 0.0
    %1115 = vmatprep.subr.mxu0 0.0
    %1116 = vmatpush1.msra.mxu0 0.0
    %1117 = vmatprep.subr.mxu0 0.0
    %1118 = vmatpush1.msra.mxu0 0.0
    %1119 = vmatprep.subr.mxu0 0.0
    %1120 = vmatpush1.msra.mxu0 0.0
    %1121 = vmatprep.subr.mxu0 0.0
    %1122 = vmatpush1.msra.mxu0 0.0
    %1123 = vmatprep.subr.mxu0 0.0
    %1124 = vmatpush1.msra.mxu0 0.0
    %1125 = vmatprep.mubr.f32.mxu0 0.0
    %1126 = vmatmul.mubr.f32.gmra.mrb[0].mxu0 %v955
    %v1127 = vpop.f32.mrb[0].mxu0
    %v1128 = vadd.f32 %v937, %v1127
    %v1129 = vpop.f32.mrb[0].mxu0
    %1130 = vmatprep.mubr.f32.mxu0 0.0
    %1131 = vmatmul.mubr.f32.gmra.mrb[0].mxu0 %v958
    %v1132 = vpop.f32.mrb[0].mxu0
    %v1133 = vadd.f32 %v942, %v1132
    %v1134 = vpop.f32.mrb[0].mxu0
    %1135 = vmatprep.mubr.f32.mxu0 0.0
    %1136 = vmatmul.mubr.f32.gmra.mrb[0].mxu0 %v961
    %v1137 = vpop.f32.mrb[0].mxu0
    %v1138 = vadd.f32 %v947, %v1137
    %v1139 = vpop.f32.mrb[0].mxu0
    %1140 = vmatprep.mubr.f32.mxu0 0.0
    %1141 = vmatmul.mubr.f32.gmra.mrb[0].mxu0 %v964
    %v1142 = vpop.f32.mrb[0].mxu0
    %v1143 = vadd.f32 %v952, %v1142
    %v1144 = vpop.f32.mrb[0].mxu0
    %1145 = vdwg.mxu0
    %v1146 = vmax.f32 %v1128, 0.0
    %v1147 = vmax.f32 %v1133, 0.0
    %v1148 = vmax.f32 %v1138, 0.0
    %v1149 = vmax.f32 %v1143, 0.0
    %v1150 = vadd.f32 %v1051, %v1146
    %v1151 = vadd.f32 %v1052, %v1147
    %v1152 = vadd.f32 %v1053, %v1148
    %v1153 = vadd.f32 %v1054, %v1149
    %1154 = vrot.lane.b32.xlu0 %v929, 64
    %v1155 = vpop.permute.xlu0 %1154
    %1156 = vrot.lane.b32.xlu0 %v931, 64
    %v1157 = vpop.permute.xlu0 %1156
    %1160 = vmatprep.subr.mxu0 0.0
    %1161 = vmatpush1.msra.mxu0 %v375
    %1162 = vmatprep.subr.mxu0 0.0
    %1163 = vmatpush1.msra.mxu0 %v377
    %1164 = vmatprep.subr.mxu0 0.0
    %1165 = vmatpush1.msra.mxu0 %v1155
    %1166 = vmatprep.subr.mxu0 0.0
    %1167 = vmatpush1.msra.mxu0 %v1157
    %1168 = vmatprep.subr.mxu0 0.0
    %1169 = vmatpush1.msra.mxu0 0.0
    %1170 = vmatprep.subr.mxu0 0.0
    %1171 = vmatpush1.msra.mxu0 0.0
    %1172 = vmatprep.subr.mxu0 0.0
    %1173 = vmatpush1.msra.mxu0 0.0
    %1174 = vmatprep.subr.mxu0 0.0
    %1175 = vmatpush1.msra.mxu0 0.0
    %1176 = vmatprep.subr.mxu0 0.0
    %1177 = vmatpush1.msra.mxu0 0.0
    %1178 = vmatprep.subr.mxu0 0.0
    %1179 = vmatpush1.msra.mxu0 0.0
    %1180 = vmatprep.subr.mxu0 0.0
    %1181 = vmatpush1.msra.mxu0 0.0
    %1182 = vmatprep.subr.mxu0 0.0
    %1183 = vmatpush1.msra.mxu0 0.0
    %1184 = vmatprep.subr.mxu0 0.0
    %1185 = vmatpush1.msra.mxu0 0.0
    %1186 = vmatprep.subr.mxu0 0.0
    %1187 = vmatpush1.msra.mxu0 0.0
    %1188 = vmatprep.subr.mxu0 0.0
    %1189 = vmatpush1.msra.mxu0 0.0
    %1190 = vmatprep.subr.mxu0 0.0
    %1191 = vmatpush1.msra.mxu0 0.0
    %1192 = vmatprep.subr.mxu0 0.0
    %1193 = vmatpush1.msra.mxu0 0.0
    %1194 = vmatprep.subr.mxu0 0.0
    %1195 = vmatpush1.msra.mxu0 0.0
    %1196 = vmatprep.subr.mxu0 0.0
    %1197 = vmatpush1.msra.mxu0 0.0
    %1198 = vmatprep.subr.mxu0 0.0
    %1199 = vmatpush1.msra.mxu0 0.0
    %1200 = vmatprep.subr.mxu0 0.0
    %1201 = vmatpush1.msra.mxu0 0.0
    %1202 = vmatprep.subr.mxu0 0.0
    %1203 = vmatpush1.msra.mxu0 0.0
    %1204 = vmatprep.subr.mxu0 0.0
    %1205 = vmatpush1.msra.mxu0 0.0
    %1206 = vmatprep.subr.mxu0 0.0
    %1207 = vmatpush1.msra.mxu0 0.0
    %1208 = vmatprep.subr.mxu0 0.0
    %1209 = vmatpush1.msra.mxu0 0.0
    %1210 = vmatprep.subr.mxu0 0.0
    %1211 = vmatpush1.msra.mxu0 0.0
    %1212 = vmatprep.subr.mxu0 0.0
    %1213 = vmatpush1.msra.mxu0 0.0
    %1214 = vmatprep.subr.mxu0 0.0
    %1215 = vmatpush1.msra.mxu0 0.0
    %1216 = vmatprep.subr.mxu0 0.0
    %1217 = vmatpush1.msra.mxu0 0.0
    %1218 = vmatprep.subr.mxu0 0.0
    %1219 = vmatpush1.msra.mxu0 0.0
    %1220 = vmatprep.subr.mxu0 0.0
    %1221 = vmatpush1.msra.mxu0 0.0
    %1222 = vmatprep.subr.mxu0 0.0
    %1223 = vmatpush1.msra.mxu0 0.0
    %1224 = vmatprep.mubr.f32.mxu0 0.0
    %1225 = vmatmul.mubr.f32.gmra.mrb[0].mxu0 %v955
    %v1226 = vpop.f32.mrb[0].mxu0
    %v1227 = vadd.f32 %v937, %v1226
    %v1228 = vpop.f32.mrb[0].mxu0
    %1229 = vmatprep.mubr.f32.mxu0 0.0
    %1230 = vmatmul.mubr.f32.gmra.mrb[0].mxu0 %v958
    %v1231 = vpop.f32.mrb[0].mxu0
    %v1232 = vadd.f32 %v942, %v1231
    %v1233 = vpop.f32.mrb[0].mxu0
    %1234 = vmatprep.mubr.f32.mxu0 0.0
    %1235 = vmatmul.mubr.f32.gmra.mrb[0].mxu0 %v961
    %v1236 = vpop.f32.mrb[0].mxu0
    %v1237 = vadd.f32 %v947, %v1236
    %v1238 = vpop.f32.mrb[0].mxu0
    %1239 = vmatprep.mubr.f32.mxu0 0.0
    %1240 = vmatmul.mubr.f32.gmra.mrb[0].mxu0 %v964
    %v1241 = vpop.f32.mrb[0].mxu0
    %v1242 = vadd.f32 %v952, %v1241
    %v1243 = vpop.f32.mrb[0].mxu0
    %1244 = vdwg.mxu0
    %v1245 = vmax.f32 %v1227, 0.0
    %v1246 = vmax.f32 %v1232, 0.0
    %v1247 = vmax.f32 %v1237, 0.0
    %v1248 = vmax.f32 %v1242, 0.0
    %v1249 = vadd.f32 %v1150, %v1245
    %v1250 = vadd.f32 %v1151, %v1246
    %v1251 = vadd.f32 %v1152, %v1247
    %v1252 = vadd.f32 %v1153, %v1248
    %1253 = vrot.lane.b32.xlu0 %v929, 32
    %v1254 = vpop.permute.xlu0 %1253
    %1255 = vrot.lane.b32.xlu0 %v931, 32
    %v1256 = vpop.permute.xlu0 %1255
    %1259 = vmatprep.subr.mxu0 0.0
    %1260 = vmatpush1.msra.mxu0 %v480
    %1261 = vmatprep.subr.mxu0 0.0
    %1262 = vmatpush1.msra.mxu0 %v482
    %1263 = vmatprep.subr.mxu0 0.0
    %1264 = vmatpush1.msra.mxu0 %v1254
    %1265 = vmatprep.subr.mxu0 0.0
    %1266 = vmatpush1.msra.mxu0 %v1256
    %1267 = vmatprep.subr.mxu0 0.0
    %1268 = vmatpush1.msra.mxu0 0.0
    %1269 = vmatprep.subr.mxu0 0.0
    %1270 = vmatpush1.msra.mxu0 0.0
    %1271 = vmatprep.subr.mxu0 0.0
    %1272 = vmatpush1.msra.mxu0 0.0
    %1273 = vmatprep.subr.mxu0 0.0
    %1274 = vmatpush1.msra.mxu0 0.0
    %1275 = vmatprep.subr.mxu0 0.0
    %1276 = vmatpush1.msra.mxu0 0.0
    %1277 = vmatprep.subr.mxu0 0.0
    %1278 = vmatpush1.msra.mxu0 0.0
    %1279 = vmatprep.subr.mxu0 0.0
    %1280 = vmatpush1.msra.mxu0 0.0
    %1281 = vmatprep.subr.mxu0 0.0
    %1282 = vmatpush1.msra.mxu0 0.0
    %1283 = vmatprep.subr.mxu0 0.0
    %1284 = vmatpush1.msra.mxu0 0.0
    %1285 = vmatprep.subr.mxu0 0.0
    %1286 = vmatpush1.msra.mxu0 0.0
    %1287 = vmatprep.subr.mxu0 0.0
    %1288 = vmatpush1.msra.mxu0 0.0
    %1289 = vmatprep.subr.mxu0 0.0
    %1290 = vmatpush1.msra.mxu0 0.0
    %1291 = vmatprep.subr.mxu0 0.0
    %1292 = vmatpush1.msra.mxu0 0.0
    %1293 = vmatprep.subr.mxu0 0.0
    %1294 = vmatpush1.msra.mxu0 0.0
    %1295 = vmatprep.subr.mxu0 0.0
    %1296 = vmatpush1.msra.mxu0 0.0
    %1297 = vmatprep.subr.mxu0 0.0
    %1298 = vmatpush1.msra.mxu0 0.0
    %1299 = vmatprep.subr.mxu0 0.0
    %1300 = vmatpush1.msra.mxu0 0.0
    %1301 = vmatprep.subr.mxu0 0.0
    %1302 = vmatpush1.msra.mxu0 0.0
    %1303 = vmatprep.subr.mxu0 0.0
    %1304 = vmatpush1.msra.mxu0 0.0
    %1305 = vmatprep.subr.mxu0 0.0
    %1306 = vmatpush1.msra.mxu0 0.0
    %1307 = vmatprep.subr.mxu0 0.0
    %1308 = vmatpush1.msra.mxu0 0.0
    %1309 = vmatprep.subr.mxu0 0.0
    %1310 = vmatpush1.msra.mxu0 0.0
    %1311 = vmatprep.subr.mxu0 0.0
    %1312 = vmatpush1.msra.mxu0 0.0
    %1313 = vmatprep.subr.mxu0 0.0
    %1314 = vmatpush1.msra.mxu0 0.0
    %1315 = vmatprep.subr.mxu0 0.0
    %1316 = vmatpush1.msra.mxu0 0.0
    %1317 = vmatprep.subr.mxu0 0.0
    %1318 = vmatpush1.msra.mxu0 0.0
    %1319 = vmatprep.subr.mxu0 0.0
    %1320 = vmatpush1.msra.mxu0 0.0
    %1321 = vmatprep.subr.mxu0 0.0
    %1322 = vmatpush1.msra.mxu0 0.0
    %1323 = vmatprep.mubr.f32.mxu0 0.0
    %1324 = vmatmul.mubr.f32.gmra.mrb[0].mxu0 %v955
    %v1325 = vpop.f32.mrb[0].mxu0
    %v1326 = vadd.f32 %v937, %v1325
    %v1327 = vpop.f32.mrb[0].mxu0
    %1328 = vmatprep.mubr.f32.mxu0 0.0
    %1329 = vmatmul.mubr.f32.gmra.mrb[0].mxu0 %v958
    %v1330 = vpop.f32.mrb[0].mxu0
    %v1331 = vadd.f32 %v942, %v1330
    %v1332 = vpop.f32.mrb[0].mxu0
    %1333 = vmatprep.mubr.f32.mxu0 0.0
    %1334 = vmatmul.mubr.f32.gmra.mrb[0].mxu0 %v961
    %v1335 = vpop.f32.mrb[0].mxu0
    %v1336 = vadd.f32 %v947, %v1335
    %v1337 = vpop.f32.mrb[0].mxu0
    %1338 = vmatprep.mubr.f32.mxu0 0.0
    %1339 = vmatmul.mubr.f32.gmra.mrb[0].mxu0 %v964
    %v1340 = vpop.f32.mrb[0].mxu0
    %v1341 = vadd.f32 %v952, %v1340
    %v1342 = vpop.f32.mrb[0].mxu0
    %1343 = vdwg.mxu0
    %v1344 = vmax.f32 %v1326, 0.0
    %v1345 = vmax.f32 %v1331, 0.0
    %v1346 = vmax.f32 %v1336, 0.0
    %v1347 = vmax.f32 %v1341, 0.0
    %v1348 = vadd.f32 %v1249, %v1344
    %v1349 = vadd.f32 %v1250, %v1345
    %v1350 = vadd.f32 %v1251, %v1346
    %v1351 = vadd.f32 %v1252, %v1347
    %v1352 = vmul.f32 %v1348, 0.25
    %v1353 = vmul.f32 %v1349, 0.25
    %v1354 = vmul.f32 %v1350, 0.25
    %v1355 = vmul.f32 %v1351, 0.25
    %s1356 = scalar_lea.vmem %s4, 32
    %v1357 = vld [vmem:[%s1356] sm:$0xff]
    %v1358 = vld [vmem:[%s1356 + $0x8] sm:$0xff]
    %v1359 = vld [vmem:[%s1356 + $0x10] sm:$0xff]
    %v1360 = vld [vmem:[%s1356 + $0x18] sm:$0xff]
    %1362 = vset.pattern.permute.xlu0 2
    %1363 = vperm.xlu0 %1362, %v1357
    %v1364 = vpop.permute.xlu0 %1363
    %1367 = vset.pattern.permute.xlu0 2
    %1368 = vperm.xlu0 %1367, %v1358
    %v1369 = vpop.permute.xlu0 %1368
    %1372 = vset.pattern.permute.xlu0 2
    %1373 = vperm.xlu0 %1372, %v1359
    %v1374 = vpop.permute.xlu0 %1373
    %1377 = vset.pattern.permute.xlu0 2
    %1378 = vperm.xlu0 %1377, %v1360
    %v1379 = vpop.permute.xlu0 %1378
    %v1381 = vmul.f32 %v1364, %v1352
    %v1382 = vmul.f32 %v1369, %v1353
    %v1383 = vmul.f32 %v1374, %v1354
    %v1384 = vmul.f32 %v1379, %v1355
    %1389 = vrot.lane.b32.xlu0 %v1352, 2
    %v1390 = vpop.permute.xlu0 %1389
    %1391 = vrot.lane.b32.xlu0 %v1353, 2
    %v1392 = vpop.permute.xlu0 %1391
    %1393 = vrot.lane.b32.xlu0 %v1354, 2
    %v1394 = vpop.permute.xlu0 %1393
    %1395 = vrot.lane.b32.xlu0 %v1355, 2
    %v1396 = vpop.permute.xlu0 %1395
    %v1401 = vsel %vm632, 0.0, %v1390
    %v1402 = vsel %vm632, 0.0, %v1392
    %v1403 = vsel %vm632, 0.0, %v1394
    %v1404 = vsel %vm632, 0.0, %v1396
    %v1405 = vmul.f32 %v1401, %v642
    %v1406 = vmul.f32 %v1402, %v642
    %v1407 = vmul.f32 %v1403, %v642
    %v1408 = vmul.f32 %v1404, %v642
    %1409 = vset.pattern.permute.xlu0 0
    %1410 = vperm.xlu0 %1409, %v1357
    %v1411 = vpop.permute.xlu0 %1410
    %1413 = vset.pattern.permute.xlu0 0
    %1414 = vperm.xlu0 %1413, %v1358
    %v1415 = vpop.permute.xlu0 %1414
    %1417 = vset.pattern.permute.xlu0 0
    %1418 = vperm.xlu0 %1417, %v1359
    %v1419 = vpop.permute.xlu0 %1418
    %1421 = vset.pattern.permute.xlu0 0
    %1422 = vperm.xlu0 %1421, %v1360
    %v1423 = vpop.permute.xlu0 %1422
    %v1425 = vmul.f32 %v1411, %v1405
    %v1426 = vmul.f32 %v1415, %v1406
    %v1427 = vmul.f32 %v1419, %v1407
    %v1428 = vmul.f32 %v1423, %v1408
    %v1429 = vadd.f32 %v1381, %v1425
    %v1430 = vadd.f32 %v1382, %v1426
    %v1431 = vadd.f32 %v1383, %v1427
    %v1432 = vadd.f32 %v1384, %v1428
    %1433 = vrot.lane.b32.xlu0 %v1352, 1
    %v1434 = vpop.permute.xlu0 %1433
    %1435 = vrot.lane.b32.xlu0 %v1353, 1
    %v1436 = vpop.permute.xlu0 %1435
    %1437 = vrot.lane.b32.xlu0 %v1354, 1
    %v1438 = vpop.permute.xlu0 %1437
    %1439 = vrot.lane.b32.xlu0 %v1355, 1
    %v1440 = vpop.permute.xlu0 %1439
    %v1445 = vsel %vm684, 0.0, %v1434
    %v1446 = vsel %vm684, 0.0, %v1436
    %v1447 = vsel %vm684, 0.0, %v1438
    %v1448 = vsel %vm684, 0.0, %v1440
    %v1449 = vmul.f32 %v1445, %v695
    %v1450 = vmul.f32 %v1446, %v695
    %v1451 = vmul.f32 %v1447, %v695
    %v1452 = vmul.f32 %v1448, %v695
    %1453 = vset.pattern.permute.xlu0 1
    %1454 = vperm.xlu0 %1453, %v1357
    %v1455 = vpop.permute.xlu0 %1454
    %1457 = vset.pattern.permute.xlu0 1
    %1458 = vperm.xlu0 %1457, %v1358
    %v1459 = vpop.permute.xlu0 %1458
    %1461 = vset.pattern.permute.xlu0 1
    %1462 = vperm.xlu0 %1461, %v1359
    %v1463 = vpop.permute.xlu0 %1462
    %1465 = vset.pattern.permute.xlu0 1
    %1466 = vperm.xlu0 %1465, %v1360
    %v1467 = vpop.permute.xlu0 %1466
    %v1469 = vmul.f32 %v1455, %v1449
    %v1470 = vmul.f32 %v1459, %v1450
    %v1471 = vmul.f32 %v1463, %v1451
    %v1472 = vmul.f32 %v1467, %v1452
    %v1473 = vadd.f32 %v1429, %v1469
    %v1474 = vadd.f32 %v1430, %v1470
    %v1475 = vadd.f32 %v1431, %v1471
    %v1476 = vadd.f32 %v1432, %v1472
    %1477 = vrot.lane.b32.xlu0 %v1352, 127
    %v1478 = vpop.permute.xlu0 %1477
    %1479 = vrot.lane.b32.xlu0 %v1353, 127
    %v1480 = vpop.permute.xlu0 %1479
    %1481 = vrot.lane.b32.xlu0 %v1354, 127
    %v1482 = vpop.permute.xlu0 %1481
    %1483 = vrot.lane.b32.xlu0 %v1355, 127
    %v1484 = vpop.permute.xlu0 %1483
    %vm1489 = vcmask 121856
    %v1490 = vsel %vm1489, %v1478, 0.0
    %v1491 = vsel %vm1489, %v1480, 0.0
    %v1492 = vsel %vm1489, %v1482, 0.0
    %v1493 = vsel %vm1489, %v1484, 0.0
    %v1494 = vmul.f32 %v1490, %v748
    %v1495 = vmul.f32 %v1491, %v748
    %v1496 = vmul.f32 %v1492, %v748
    %v1497 = vmul.f32 %v1493, %v748
    %1498 = vset.pattern.permute.xlu0 3
    %1499 = vperm.xlu0 %1498, %v1357
    %v1500 = vpop.permute.xlu0 %1499
    %1502 = vset.pattern.permute.xlu0 3
    %1503 = vperm.xlu0 %1502, %v1358
    %v1504 = vpop.permute.xlu0 %1503
    %1506 = vset.pattern.permute.xlu0 3
    %1507 = vperm.xlu0 %1506, %v1359
    %v1508 = vpop.permute.xlu0 %1507
    %1510 = vset.pattern.permute.xlu0 3
    %1511 = vperm.xlu0 %1510, %v1360
    %v1512 = vpop.permute.xlu0 %1511
    %v1514 = vmul.f32 %v1500, %v1494
    %v1515 = vmul.f32 %v1504, %v1495
    %v1516 = vmul.f32 %v1508, %v1496
    %v1517 = vmul.f32 %v1512, %v1497
    %v1518 = vadd.f32 %v1473, %v1514
    %v1519 = vadd.f32 %v1474, %v1515
    %v1520 = vadd.f32 %v1475, %v1516
    %v1521 = vadd.f32 %v1476, %v1517
    %s1522 = scalar_lea.vmem %s5, 32
    %v1523 = vld [vmem:[%s1522] sm:$0xff]
    %v1524 = vld [vmem:[%s1522 + $0x8] sm:$0xff]
    %v1525 = vld [vmem:[%s1522 + $0x10] sm:$0xff]
    %v1526 = vld [vmem:[%s1522 + $0x18] sm:$0xff]
    %s1527 = scalar_lea.vmem %s6, 32
    %v1528 = vld [vmem:[%s1527] sm:$0xff]
    %v1529 = vld [vmem:[%s1527 + $0x8] sm:$0xff]
    %v1530 = vld [vmem:[%s1527 + $0x10] sm:$0xff]
    %v1531 = vld [vmem:[%s1527 + $0x18] sm:$0xff]
    %1533 = vset.pattern.permute.xlu0 0
    %1534 = vperm.xlu0 %1533, %v1528
    %v1535 = vpop.permute.xlu0 %1534
    %1538 = vset.pattern.permute.xlu0 0
    %1539 = vperm.xlu0 %1538, %v1529
    %v1540 = vpop.permute.xlu0 %1539
    %1543 = vset.pattern.permute.xlu0 0
    %1544 = vperm.xlu0 %1543, %v1530
    %v1545 = vpop.permute.xlu0 %1544
    %1548 = vset.pattern.permute.xlu0 0
    %1549 = vperm.xlu0 %1548, %v1531
    %v1550 = vpop.permute.xlu0 %1549
    %v1553 = vsel %vm167, %v1523, 0
    %v1556 = vsel %vm167, %v1524, 0
    %v1559 = vsel %vm167, %v1525, 0
    %v1562 = vsel %vm167, %v1526, 0
    %1564 = vmatprep.subr.mxu0 0.0
    %1565 = vmatpush1.msra.mxu0 %v1518
    %1566 = vmatprep.subr.mxu0 0.0
    %1567 = vmatpush1.msra.mxu0 %v1519
    %1568 = vmatprep.subr.mxu0 0.0
    %1569 = vmatpush1.msra.mxu0 %v1520
    %1570 = vmatprep.subr.mxu0 0.0
    %1571 = vmatpush1.msra.mxu0 %v1521
    %1572 = vmatprep.subr.mxu0 0.0
    %1573 = vmatpush1.msra.mxu0 0.0
    %1574 = vmatprep.subr.mxu0 0.0
    %1575 = vmatpush1.msra.mxu0 0.0
    %1576 = vmatprep.subr.mxu0 0.0
    %1577 = vmatpush1.msra.mxu0 0.0
    %1578 = vmatprep.subr.mxu0 0.0
    %1579 = vmatpush1.msra.mxu0 0.0
    %1580 = vmatprep.subr.mxu0 0.0
    %1581 = vmatpush1.msra.mxu0 0.0
    %1582 = vmatprep.subr.mxu0 0.0
    %1583 = vmatpush1.msra.mxu0 0.0
    %1584 = vmatprep.subr.mxu0 0.0
    %1585 = vmatpush1.msra.mxu0 0.0
    %1586 = vmatprep.subr.mxu0 0.0
    %1587 = vmatpush1.msra.mxu0 0.0
    %1588 = vmatprep.subr.mxu0 0.0
    %1589 = vmatpush1.msra.mxu0 0.0
    %1590 = vmatprep.subr.mxu0 0.0
    %1591 = vmatpush1.msra.mxu0 0.0
    %1592 = vmatprep.subr.mxu0 0.0
    %1593 = vmatpush1.msra.mxu0 0.0
    %1594 = vmatprep.subr.mxu0 0.0
    %1595 = vmatpush1.msra.mxu0 0.0
    %1596 = vmatprep.subr.mxu0 0.0
    %1597 = vmatpush1.msra.mxu0 0.0
    %1598 = vmatprep.subr.mxu0 0.0
    %1599 = vmatpush1.msra.mxu0 0.0
    %1600 = vmatprep.subr.mxu0 0.0
    %1601 = vmatpush1.msra.mxu0 0.0
    %1602 = vmatprep.subr.mxu0 0.0
    %1603 = vmatpush1.msra.mxu0 0.0
    %1604 = vmatprep.subr.mxu0 0.0
    %1605 = vmatpush1.msra.mxu0 0.0
    %1606 = vmatprep.subr.mxu0 0.0
    %1607 = vmatpush1.msra.mxu0 0.0
    %1608 = vmatprep.subr.mxu0 0.0
    %1609 = vmatpush1.msra.mxu0 0.0
    %1610 = vmatprep.subr.mxu0 0.0
    %1611 = vmatpush1.msra.mxu0 0.0
    %1612 = vmatprep.subr.mxu0 0.0
    %1613 = vmatpush1.msra.mxu0 0.0
    %1614 = vmatprep.subr.mxu0 0.0
    %1615 = vmatpush1.msra.mxu0 0.0
    %1616 = vmatprep.subr.mxu0 0.0
    %1617 = vmatpush1.msra.mxu0 0.0
    %1618 = vmatprep.subr.mxu0 0.0
    %1619 = vmatpush1.msra.mxu0 0.0
    %1620 = vmatprep.subr.mxu0 0.0
    %1621 = vmatpush1.msra.mxu0 0.0
    %1622 = vmatprep.subr.mxu0 0.0
    %1623 = vmatpush1.msra.mxu0 0.0
    %1624 = vmatprep.subr.mxu0 0.0
    %1625 = vmatpush1.msra.mxu0 0.0
    %1626 = vmatprep.subr.mxu0 0.0
    %1627 = vmatpush1.msra.mxu0 0.0
    %1628 = vmatprep.mubr.f32.mxu0 0.0
    %1629 = vmatmul.mubr.f32.gmra.mrb[0].mxu0 %v1553
    %v1630 = vpop.f32.mrb[0].mxu0
    %v1631 = vadd.f32 %v1535, %v1630
    %v1632 = vpop.f32.mrb[0].mxu0
    %1633 = vmatprep.mubr.f32.mxu0 0.0
    %1634 = vmatmul.mubr.f32.gmra.mrb[0].mxu0 %v1556
    %v1635 = vpop.f32.mrb[0].mxu0
    %v1636 = vadd.f32 %v1540, %v1635
    %v1637 = vpop.f32.mrb[0].mxu0
    %1638 = vmatprep.mubr.f32.mxu0 0.0
    %1639 = vmatmul.mubr.f32.gmra.mrb[0].mxu0 %v1559
    %v1640 = vpop.f32.mrb[0].mxu0
    %v1641 = vadd.f32 %v1545, %v1640
    %v1642 = vpop.f32.mrb[0].mxu0
    %1643 = vmatprep.mubr.f32.mxu0 0.0
    %1644 = vmatmul.mubr.f32.gmra.mrb[0].mxu0 %v1562
    %v1645 = vpop.f32.mrb[0].mxu0
    %v1646 = vadd.f32 %v1550, %v1645
    %v1647 = vpop.f32.mrb[0].mxu0
    %1648 = vdwg.mxu0
    %v1649 = vmax.f32 %v1631, 0.0
    %v1650 = vmax.f32 %v1636, 0.0
    %v1651 = vmax.f32 %v1641, 0.0
    %v1652 = vmax.f32 %v1646, 0.0
    %s1653 = scalar_lea.vmem %s7, 32
    %v1654 = vld [vmem:[%s1653] sm:$0xff]
    %v1655 = vld [vmem:[%s1653 + $0x8] sm:$0xff]
    %v1656 = vld [vmem:[%s1653 + $0x10] sm:$0xff]
    %v1657 = vld [vmem:[%s1653 + $0x18] sm:$0xff]
    %v1658 = vmul.f32 %v1649, %v1654
    %v1659 = vmul.f32 %v1650, %v1655
    %v1660 = vmul.f32 %v1651, %v1656
    %v1661 = vmul.f32 %v1652, %v1657
    %v1662 = vld [vmem:[%s9] sm:$0xff]
    %v1663 = vld [vmem:[%s9 + $0x8] sm:$0xff]
    %v1665 = vsel %vm45, %v1658, 0
    %v1668 = vsel %vm45, %v1659, 0
    %v1671 = vsel %vm45, %v1660, 0
    %v1674 = vsel %vm45, %v1661, 0
    %1676 = vmatprep.subr.mxu0 0.0
    %1677 = vmatpush1.msra.mxu0 %v1662
    %1678 = vmatprep.subr.mxu0 0.0
    %1679 = vmatpush1.msra.mxu0 %v1663
    %1680 = vmatprep.subr.mxu0 0.0
    %1681 = vmatpush1.msra.mxu0 0.0
    %1682 = vmatprep.subr.mxu0 0.0
    %1683 = vmatpush1.msra.mxu0 0.0
    %1684 = vmatprep.subr.mxu0 0.0
    %1685 = vmatpush1.msra.mxu0 0.0
    %1686 = vmatprep.subr.mxu0 0.0
    %1687 = vmatpush1.msra.mxu0 0.0
    %1688 = vmatprep.subr.mxu0 0.0
    %1689 = vmatpush1.msra.mxu0 0.0
    %1690 = vmatprep.subr.mxu0 0.0
    %1691 = vmatpush1.msra.mxu0 0.0
    %1692 = vmatprep.subr.mxu0 0.0
    %1693 = vmatpush1.msra.mxu0 0.0
    %1694 = vmatprep.subr.mxu0 0.0
    %1695 = vmatpush1.msra.mxu0 0.0
    %1696 = vmatprep.subr.mxu0 0.0
    %1697 = vmatpush1.msra.mxu0 0.0
    %1698 = vmatprep.subr.mxu0 0.0
    %1699 = vmatpush1.msra.mxu0 0.0
    %1700 = vmatprep.subr.mxu0 0.0
    %1701 = vmatpush1.msra.mxu0 0.0
    %1702 = vmatprep.subr.mxu0 0.0
    %1703 = vmatpush1.msra.mxu0 0.0
    %1704 = vmatprep.subr.mxu0 0.0
    %1705 = vmatpush1.msra.mxu0 0.0
    %1706 = vmatprep.subr.mxu0 0.0
    %1707 = vmatpush1.msra.mxu0 0.0
    %1708 = vmatprep.subr.mxu0 0.0
    %1709 = vmatpush1.msra.mxu0 0.0
    %1710 = vmatprep.subr.mxu0 0.0
    %1711 = vmatpush1.msra.mxu0 0.0
    %1712 = vmatprep.subr.mxu0 0.0
    %1713 = vmatpush1.msra.mxu0 0.0
    %1714 = vmatprep.subr.mxu0 0.0
    %1715 = vmatpush1.msra.mxu0 0.0
    %1716 = vmatprep.subr.mxu0 0.0
    %1717 = vmatpush1.msra.mxu0 0.0
    %1718 = vmatprep.subr.mxu0 0.0
    %1719 = vmatpush1.msra.mxu0 0.0
    %1720 = vmatprep.subr.mxu0 0.0
    %1721 = vmatpush1.msra.mxu0 0.0
    %1722 = vmatprep.subr.mxu0 0.0
    %1723 = vmatpush1.msra.mxu0 0.0
    %1724 = vmatprep.subr.mxu0 0.0
    %1725 = vmatpush1.msra.mxu0 0.0
    %1726 = vmatprep.subr.mxu0 0.0
    %1727 = vmatpush1.msra.mxu0 0.0
    %1728 = vmatprep.subr.mxu0 0.0
    %1729 = vmatpush1.msra.mxu0 0.0
    %1730 = vmatprep.subr.mxu0 0.0
    %1731 = vmatpush1.msra.mxu0 0.0
    %1732 = vmatprep.subr.mxu0 0.0
    %1733 = vmatpush1.msra.mxu0 0.0
    %1734 = vmatprep.subr.mxu0 0.0
    %1735 = vmatpush1.msra.mxu0 0.0
    %1736 = vmatprep.subr.mxu0 0.0
    %1737 = vmatpush1.msra.mxu0 0.0
    %1738 = vmatprep.subr.mxu0 0.0
    %1739 = vmatpush1.msra.mxu0 0.0
    %1740 = vmatprep.mubr.f32.mxu0 0.0
    %1741 = vmatmul.mubr.f32.gmra.mrb[0].mxu0 %v1665
    %v1742 = vpop.f32.mrb[0].mxu0
    %v1743 = vadd.f32 0.0, %v1742
    %v1744 = vpop.f32.mrb[0].mxu0
    %1745 = vmatprep.mubr.f32.mxu0 0.0
    %1746 = vmatmul.mubr.f32.gmra.mrb[0].mxu0 %v1668
    %v1747 = vpop.f32.mrb[0].mxu0
    %v1748 = vadd.f32 0.0, %v1747
    %v1749 = vpop.f32.mrb[0].mxu0
    %1750 = vmatprep.mubr.f32.mxu0 0.0
    %1751 = vmatmul.mubr.f32.gmra.mrb[0].mxu0 %v1671
    %v1752 = vpop.f32.mrb[0].mxu0
    %v1753 = vadd.f32 0.0, %v1752
    %v1754 = vpop.f32.mrb[0].mxu0
    %1755 = vmatprep.mubr.f32.mxu0 0.0
    %1756 = vmatmul.mubr.f32.gmra.mrb[0].mxu0 %v1674
    %v1757 = vpop.f32.mrb[0].mxu0
    %v1758 = vadd.f32 0.0, %v1757
    %v1759 = vpop.f32.mrb[0].mxu0
    %1760 = vdwg.mxu0
    %vm1761 = vcmask 195584
    %v1763 = vsel %vm1761, %v911, 0
    %v1766 = vsel %vm1761, %v912, 0
    %v1769 = vsel %vm1761, %v913, 0
    %v1772 = vsel %vm1761, %v914, 0
    %1774 = vmatprep.subr.mxu0 0.0
    %1775 = vmatpush1.msra.mxu0 %v915
    %1776 = vmatprep.subr.mxu0 0.0
    %1777 = vmatpush1.msra.mxu0 %v916
    %1778 = vmatprep.subr.mxu0 0.0
    %1779 = vmatpush1.msra.mxu0 %v917
    %1780 = vmatprep.subr.mxu0 0.0
    %1781 = vmatpush1.msra.mxu0 0.0
    %1782 = vmatprep.subr.mxu0 0.0
    %1783 = vmatpush1.msra.mxu0 0.0
    %1784 = vmatprep.subr.mxu0 0.0
    %1785 = vmatpush1.msra.mxu0 0.0
    %1786 = vmatprep.subr.mxu0 0.0
    %1787 = vmatpush1.msra.mxu0 0.0
    %1788 = vmatprep.subr.mxu0 0.0
    %1789 = vmatpush1.msra.mxu0 0.0
    %1790 = vmatprep.subr.mxu0 0.0
    %1791 = vmatpush1.msra.mxu0 0.0
    %1792 = vmatprep.subr.mxu0 0.0
    %1793 = vmatpush1.msra.mxu0 0.0
    %1794 = vmatprep.subr.mxu0 0.0
    %1795 = vmatpush1.msra.mxu0 0.0
    %1796 = vmatprep.subr.mxu0 0.0
    %1797 = vmatpush1.msra.mxu0 0.0
    %1798 = vmatprep.subr.mxu0 0.0
    %1799 = vmatpush1.msra.mxu0 0.0
    %1800 = vmatprep.subr.mxu0 0.0
    %1801 = vmatpush1.msra.mxu0 0.0
    %1802 = vmatprep.subr.mxu0 0.0
    %1803 = vmatpush1.msra.mxu0 0.0
    %1804 = vmatprep.subr.mxu0 0.0
    %1805 = vmatpush1.msra.mxu0 0.0
    %1806 = vmatprep.subr.mxu0 0.0
    %1807 = vmatpush1.msra.mxu0 0.0
    %1808 = vmatprep.subr.mxu0 0.0
    %1809 = vmatpush1.msra.mxu0 0.0
    %1810 = vmatprep.subr.mxu0 0.0
    %1811 = vmatpush1.msra.mxu0 0.0
    %1812 = vmatprep.subr.mxu0 0.0
    %1813 = vmatpush1.msra.mxu0 0.0
    %1814 = vmatprep.subr.mxu0 0.0
    %1815 = vmatpush1.msra.mxu0 0.0
    %1816 = vmatprep.subr.mxu0 0.0
    %1817 = vmatpush1.msra.mxu0 0.0
    %1818 = vmatprep.subr.mxu0 0.0
    %1819 = vmatpush1.msra.mxu0 0.0
    %1820 = vmatprep.subr.mxu0 0.0
    %1821 = vmatpush1.msra.mxu0 0.0
    %1822 = vmatprep.subr.mxu0 0.0
    %1823 = vmatpush1.msra.mxu0 0.0
    %1824 = vmatprep.subr.mxu0 0.0
    %1825 = vmatpush1.msra.mxu0 0.0
    %1826 = vmatprep.subr.mxu0 0.0
    %1827 = vmatpush1.msra.mxu0 0.0
    %1828 = vmatprep.subr.mxu0 0.0
    %1829 = vmatpush1.msra.mxu0 0.0
    %1830 = vmatprep.subr.mxu0 0.0
    %1831 = vmatpush1.msra.mxu0 0.0
    %1832 = vmatprep.subr.mxu0 0.0
    %1833 = vmatpush1.msra.mxu0 0.0
    %1834 = vmatprep.subr.mxu0 0.0
    %1835 = vmatpush1.msra.mxu0 0.0
    %1836 = vmatprep.subr.mxu0 0.0
    %1837 = vmatpush1.msra.mxu0 0.0
    %1838 = vmatprep.mubr.f32.mxu0 0.0
    %1839 = vmatmul.mubr.f32.gmra.mrb[0].mxu0 %v1763
    %v1840 = vpop.f32.mrb[0].mxu0
    %v1841 = vadd.f32 %v1743, %v1840
    %v1842 = vpop.f32.mrb[0].mxu0
    %1843 = vmatprep.mubr.f32.mxu0 0.0
    %1844 = vmatmul.mubr.f32.gmra.mrb[0].mxu0 %v1766
    %v1845 = vpop.f32.mrb[0].mxu0
    %v1846 = vadd.f32 %v1748, %v1845
    %v1847 = vpop.f32.mrb[0].mxu0
    %1848 = vmatprep.mubr.f32.mxu0 0.0
    %1849 = vmatmul.mubr.f32.gmra.mrb[0].mxu0 %v1769
    %v1850 = vpop.f32.mrb[0].mxu0
    %v1851 = vadd.f32 %v1753, %v1850
    %v1852 = vpop.f32.mrb[0].mxu0
    %1853 = vmatprep.mubr.f32.mxu0 0.0
    %1854 = vmatmul.mubr.f32.gmra.mrb[0].mxu0 %v1772
    %v1855 = vpop.f32.mrb[0].mxu0
    %v1856 = vadd.f32 %v1758, %v1855
    %v1857 = vpop.f32.mrb[0].mxu0
    %1858 = vdwg.mxu0
    %s1859 = scalar_lea.vmem %s2, 64
    %v1860 = vld [vmem:[%s1859] sm:$0xff]
    %v1861 = vld [vmem:[%s1859 + $0x8] sm:$0xff]
    %v1862 = vld [vmem:[%s1859 + $0x10] sm:$0xff]
    %v1863 = vld [vmem:[%s1859 + $0x18] sm:$0xff]
    %s1864 = scalar_lea.vmem %s3, 64
    %v1865 = vld [vmem:[%s1864] sm:$0xff]
    %v1866 = vld [vmem:[%s1864 + $0x8] sm:$0xff]
    %v1867 = vld [vmem:[%s1864 + $0x10] sm:$0xff]
    %v1868 = vld [vmem:[%s1864 + $0x18] sm:$0xff]
    %1869 = vrot.lane.b32.xlu0 %v137, 104
    %v1870 = vpop.permute.xlu0 %1869
    %1871 = vrot.lane.b32.xlu0 %v138, 104
    %v1872 = vpop.permute.xlu0 %1871
    %1876 = vset.pattern.permute.xlu0 0
    %1877 = vperm.xlu0 %1876, %v1865
    %v1878 = vpop.permute.xlu0 %1877
    %1881 = vset.pattern.permute.xlu0 0
    %1882 = vperm.xlu0 %1881, %v1866
    %v1883 = vpop.permute.xlu0 %1882
    %1886 = vset.pattern.permute.xlu0 0
    %1887 = vperm.xlu0 %1886, %v1867
    %v1888 = vpop.permute.xlu0 %1887
    %1891 = vset.pattern.permute.xlu0 0
    %1892 = vperm.xlu0 %1891, %v1868
    %v1893 = vpop.permute.xlu0 %1892
    %v1896 = vsel %vm167, %v1860, 0
    %v1899 = vsel %vm167, %v1861, 0
    %v1902 = vsel %vm167, %v1862, 0
    %v1905 = vsel %vm167, %v1863, 0
    %1907 = vmatprep.subr.mxu0 0.0
    %1908 = vmatpush1.msra.mxu0 %v137
    %1909 = vmatprep.subr.mxu0 0.0
    %1910 = vmatpush1.msra.mxu0 %v138
    %1911 = vmatprep.subr.mxu0 0.0
    %1912 = vmatpush1.msra.mxu0 %v1870
    %1913 = vmatprep.subr.mxu0 0.0
    %1914 = vmatpush1.msra.mxu0 %v1872
    %1915 = vmatprep.subr.mxu0 0.0
    %1916 = vmatpush1.msra.mxu0 0.0
    %1917 = vmatprep.subr.mxu0 0.0
    %1918 = vmatpush1.msra.mxu0 0.0
    %1919 = vmatprep.subr.mxu0 0.0
    %1920 = vmatpush1.msra.mxu0 0.0
    %1921 = vmatprep.subr.mxu0 0.0
    %1922 = vmatpush1.msra.mxu0 0.0
    %1923 = vmatprep.subr.mxu0 0.0
    %1924 = vmatpush1.msra.mxu0 0.0
    %1925 = vmatprep.subr.mxu0 0.0
    %1926 = vmatpush1.msra.mxu0 0.0
    %1927 = vmatprep.subr.mxu0 0.0
    %1928 = vmatpush1.msra.mxu0 0.0
    %1929 = vmatprep.subr.mxu0 0.0
    %1930 = vmatpush1.msra.mxu0 0.0
    %1931 = vmatprep.subr.mxu0 0.0
    %1932 = vmatpush1.msra.mxu0 0.0
    %1933 = vmatprep.subr.mxu0 0.0
    %1934 = vmatpush1.msra.mxu0 0.0
    %1935 = vmatprep.subr.mxu0 0.0
    %1936 = vmatpush1.msra.mxu0 0.0
    %1937 = vmatprep.subr.mxu0 0.0
    %1938 = vmatpush1.msra.mxu0 0.0
    %1939 = vmatprep.subr.mxu0 0.0
    %1940 = vmatpush1.msra.mxu0 0.0
    %1941 = vmatprep.subr.mxu0 0.0
    %1942 = vmatpush1.msra.mxu0 0.0
    %1943 = vmatprep.subr.mxu0 0.0
    %1944 = vmatpush1.msra.mxu0 0.0
    %1945 = vmatprep.subr.mxu0 0.0
    %1946 = vmatpush1.msra.mxu0 0.0
    %1947 = vmatprep.subr.mxu0 0.0
    %1948 = vmatpush1.msra.mxu0 0.0
    %1949 = vmatprep.subr.mxu0 0.0
    %1950 = vmatpush1.msra.mxu0 0.0
    %1951 = vmatprep.subr.mxu0 0.0
    %1952 = vmatpush1.msra.mxu0 0.0
    %1953 = vmatprep.subr.mxu0 0.0
    %1954 = vmatpush1.msra.mxu0 0.0
    %1955 = vmatprep.subr.mxu0 0.0
    %1956 = vmatpush1.msra.mxu0 0.0
    %1957 = vmatprep.subr.mxu0 0.0
    %1958 = vmatpush1.msra.mxu0 0.0
    %1959 = vmatprep.subr.mxu0 0.0
    %1960 = vmatpush1.msra.mxu0 0.0
    %1961 = vmatprep.subr.mxu0 0.0
    %1962 = vmatpush1.msra.mxu0 0.0
    %1963 = vmatprep.subr.mxu0 0.0
    %1964 = vmatpush1.msra.mxu0 0.0
    %1965 = vmatprep.subr.mxu0 0.0
    %1966 = vmatpush1.msra.mxu0 0.0
    %1967 = vmatprep.subr.mxu0 0.0
    %1968 = vmatpush1.msra.mxu0 0.0
    %1969 = vmatprep.subr.mxu0 0.0
    %1970 = vmatpush1.msra.mxu0 0.0
    %1971 = vmatprep.mubr.f32.mxu0 0.0
    %1972 = vmatmul.mubr.f32.gmra.mrb[0].mxu0 %v1896
    %v1973 = vpop.f32.mrb[0].mxu0
    %v1974 = vadd.f32 %v1878, %v1973
    %v1975 = vpop.f32.mrb[0].mxu0
    %1976 = vmatprep.mubr.f32.mxu0 0.0
    %1977 = vmatmul.mubr.f32.gmra.mrb[0].mxu0 %v1899
    %v1978 = vpop.f32.mrb[0].mxu0
    %v1979 = vadd.f32 %v1883, %v1978
    %v1980 = vpop.f32.mrb[0].mxu0
    %1981 = vmatprep.mubr.f32.mxu0 0.0
    %1982 = vmatmul.mubr.f32.gmra.mrb[0].mxu0 %v1902
    %v1983 = vpop.f32.mrb[0].mxu0
    %v1984 = vadd.f32 %v1888, %v1983
    %v1985 = vpop.f32.mrb[0].mxu0
    %1986 = vmatprep.mubr.f32.mxu0 0.0
    %1987 = vmatmul.mubr.f32.gmra.mrb[0].mxu0 %v1905
    %v1988 = vpop.f32.mrb[0].mxu0
    %v1989 = vadd.f32 %v1893, %v1988
    %v1990 = vpop.f32.mrb[0].mxu0
    %1991 = vdwg.mxu0
    %v1992 = vmax.f32 %v1974, 0.0
    %v1993 = vmax.f32 %v1979, 0.0
    %v1994 = vmax.f32 %v1984, 0.0
    %v1995 = vmax.f32 %v1989, 0.0
    %1996 = vrot.lane.b32.xlu0 %v1870, 96
    %v1997 = vpop.permute.xlu0 %1996
    %1998 = vrot.lane.b32.xlu0 %v1872, 96
    %v1999 = vpop.permute.xlu0 %1998
    %2002 = vmatprep.subr.mxu0 0.0
    %2003 = vmatpush1.msra.mxu0 %v270
    %2004 = vmatprep.subr.mxu0 0.0
    %2005 = vmatpush1.msra.mxu0 %v272
    %2006 = vmatprep.subr.mxu0 0.0
    %2007 = vmatpush1.msra.mxu0 %v1997
    %2008 = vmatprep.subr.mxu0 0.0
    %2009 = vmatpush1.msra.mxu0 %v1999
    %2010 = vmatprep.subr.mxu0 0.0
    %2011 = vmatpush1.msra.mxu0 0.0
    %2012 = vmatprep.subr.mxu0 0.0
    %2013 = vmatpush1.msra.mxu0 0.0
    %2014 = vmatprep.subr.mxu0 0.0
    %2015 = vmatpush1.msra.mxu0 0.0
    %2016 = vmatprep.subr.mxu0 0.0
    %2017 = vmatpush1.msra.mxu0 0.0
    %2018 = vmatprep.subr.mxu0 0.0
    %2019 = vmatpush1.msra.mxu0 0.0
    %2020 = vmatprep.subr.mxu0 0.0
    %2021 = vmatpush1.msra.mxu0 0.0
    %2022 = vmatprep.subr.mxu0 0.0
    %2023 = vmatpush1.msra.mxu0 0.0
    %2024 = vmatprep.subr.mxu0 0.0
    %2025 = vmatpush1.msra.mxu0 0.0
    %2026 = vmatprep.subr.mxu0 0.0
    %2027 = vmatpush1.msra.mxu0 0.0
    %2028 = vmatprep.subr.mxu0 0.0
    %2029 = vmatpush1.msra.mxu0 0.0
    %2030 = vmatprep.subr.mxu0 0.0
    %2031 = vmatpush1.msra.mxu0 0.0
    %2032 = vmatprep.subr.mxu0 0.0
    %2033 = vmatpush1.msra.mxu0 0.0
    %2034 = vmatprep.subr.mxu0 0.0
    %2035 = vmatpush1.msra.mxu0 0.0
    %2036 = vmatprep.subr.mxu0 0.0
    %2037 = vmatpush1.msra.mxu0 0.0
    %2038 = vmatprep.subr.mxu0 0.0
    %2039 = vmatpush1.msra.mxu0 0.0
    %2040 = vmatprep.subr.mxu0 0.0
    %2041 = vmatpush1.msra.mxu0 0.0
    %2042 = vmatprep.subr.mxu0 0.0
    %2043 = vmatpush1.msra.mxu0 0.0
    %2044 = vmatprep.subr.mxu0 0.0
    %2045 = vmatpush1.msra.mxu0 0.0
    %2046 = vmatprep.subr.mxu0 0.0
    %2047 = vmatpush1.msra.mxu0 0.0
    %2048 = vmatprep.subr.mxu0 0.0
    %2049 = vmatpush1.msra.mxu0 0.0
    %2050 = vmatprep.subr.mxu0 0.0
    %2051 = vmatpush1.msra.mxu0 0.0
    %2052 = vmatprep.subr.mxu0 0.0
    %2053 = vmatpush1.msra.mxu0 0.0
    %2054 = vmatprep.subr.mxu0 0.0
    %2055 = vmatpush1.msra.mxu0 0.0
    %2056 = vmatprep.subr.mxu0 0.0
    %2057 = vmatpush1.msra.mxu0 0.0
    %2058 = vmatprep.subr.mxu0 0.0
    %2059 = vmatpush1.msra.mxu0 0.0
    %2060 = vmatprep.subr.mxu0 0.0
    %2061 = vmatpush1.msra.mxu0 0.0
    %2062 = vmatprep.subr.mxu0 0.0
    %2063 = vmatpush1.msra.mxu0 0.0
    %2064 = vmatprep.subr.mxu0 0.0
    %2065 = vmatpush1.msra.mxu0 0.0
    %2066 = vmatprep.mubr.f32.mxu0 0.0
    %2067 = vmatmul.mubr.f32.gmra.mrb[0].mxu0 %v1896
    %v2068 = vpop.f32.mrb[0].mxu0
    %v2069 = vadd.f32 %v1878, %v2068
    %v2070 = vpop.f32.mrb[0].mxu0
    %2071 = vmatprep.mubr.f32.mxu0 0.0
    %2072 = vmatmul.mubr.f32.gmra.mrb[0].mxu0 %v1899
    %v2073 = vpop.f32.mrb[0].mxu0
    %v2074 = vadd.f32 %v1883, %v2073
    %v2075 = vpop.f32.mrb[0].mxu0
    %2076 = vmatprep.mubr.f32.mxu0 0.0
    %2077 = vmatmul.mubr.f32.gmra.mrb[0].mxu0 %v1902
    %v2078 = vpop.f32.mrb[0].mxu0
    %v2079 = vadd.f32 %v1888, %v2078
    %v2080 = vpop.f32.mrb[0].mxu0
    %2081 = vmatprep.mubr.f32.mxu0 0.0
    %2082 = vmatmul.mubr.f32.gmra.mrb[0].mxu0 %v1905
    %v2083 = vpop.f32.mrb[0].mxu0
    %v2084 = vadd.f32 %v1893, %v2083
    %v2085 = vpop.f32.mrb[0].mxu0
    %2086 = vdwg.mxu0
    %v2087 = vmax.f32 %v2069, 0.0
    %v2088 = vmax.f32 %v2074, 0.0
    %v2089 = vmax.f32 %v2079, 0.0
    %v2090 = vmax.f32 %v2084, 0.0
    %v2091 = vadd.f32 %v1992, %v2087
    %v2092 = vadd.f32 %v1993, %v2088
    %v2093 = vadd.f32 %v1994, %v2089
    %v2094 = vadd.f32 %v1995, %v2090
    %2095 = vrot.lane.b32.xlu0 %v1870, 64
    %v2096 = vpop.permute.xlu0 %2095
    %2097 = vrot.lane.b32.xlu0 %v1872, 64
    %v2098 = vpop.permute.xlu0 %2097
    %2101 = vmatprep.subr.mxu0 0.0
    %2102 = vmatpush1.msra.mxu0 %v375
    %2103 = vmatprep.subr.mxu0 0.0
    %2104 = vmatpush1.msra.mxu0 %v377
    %2105 = vmatprep.subr.mxu0 0.0
    %2106 = vmatpush1.msra.mxu0 %v2096
    %2107 = vmatprep.subr.mxu0 0.0
    %2108 = vmatpush1.msra.mxu0 %v2098
    %2109 = vmatprep.subr.mxu0 0.0
    %2110 = vmatpush1.msra.mxu0 0.0
    %2111 = vmatprep.subr.mxu0 0.0
    %2112 = vmatpush1.msra.mxu0 0.0
    %2113 = vmatprep.subr.mxu0 0.0
    %2114 = vmatpush1.msra.mxu0 0.0
    %2115 = vmatprep.subr.mxu0 0.0
    %2116 = vmatpush1.msra.mxu0 0.0
    %2117 = vmatprep.subr.mxu0 0.0
    %2118 = vmatpush1.msra.mxu0 0.0
    %2119 = vmatprep.subr.mxu0 0.0
    %2120 = vmatpush1.msra.mxu0 0.0
    %2121 = vmatprep.subr.mxu0 0.0
    %2122 = vmatpush1.msra.mxu0 0.0
    %2123 = vmatprep.subr.mxu0 0.0
    %2124 = vmatpush1.msra.mxu0 0.0
    %2125 = vmatprep.subr.mxu0 0.0
    %2126 = vmatpush1.msra.mxu0 0.0
    %2127 = vmatprep.subr.mxu0 0.0
    %2128 = vmatpush1.msra.mxu0 0.0
    %2129 = vmatprep.subr.mxu0 0.0
    %2130 = vmatpush1.msra.mxu0 0.0
    %2131 = vmatprep.subr.mxu0 0.0
    %2132 = vmatpush1.msra.mxu0 0.0
    %2133 = vmatprep.subr.mxu0 0.0
    %2134 = vmatpush1.msra.mxu0 0.0
    %2135 = vmatprep.subr.mxu0 0.0
    %2136 = vmatpush1.msra.mxu0 0.0
    %2137 = vmatprep.subr.mxu0 0.0
    %2138 = vmatpush1.msra.mxu0 0.0
    %2139 = vmatprep.subr.mxu0 0.0
    %2140 = vmatpush1.msra.mxu0 0.0
    %2141 = vmatprep.subr.mxu0 0.0
    %2142 = vmatpush1.msra.mxu0 0.0
    %2143 = vmatprep.subr.mxu0 0.0
    %2144 = vmatpush1.msra.mxu0 0.0
    %2145 = vmatprep.subr.mxu0 0.0
    %2146 = vmatpush1.msra.mxu0 0.0
    %2147 = vmatprep.subr.mxu0 0.0
    %2148 = vmatpush1.msra.mxu0 0.0
    %2149 = vmatprep.subr.mxu0 0.0
    %2150 = vmatpush1.msra.mxu0 0.0
    %2151 = vmatprep.subr.mxu0 0.0
    %2152 = vmatpush1.msra.mxu0 0.0
    %2153 = vmatprep.subr.mxu0 0.0
    %2154 = vmatpush1.msra.mxu0 0.0
    %2155 = vmatprep.subr.mxu0 0.0
    %2156 = vmatpush1.msra.mxu0 0.0
    %2157 = vmatprep.subr.mxu0 0.0
    %2158 = vmatpush1.msra.mxu0 0.0
    %2159 = vmatprep.subr.mxu0 0.0
    %2160 = vmatpush1.msra.mxu0 0.0
    %2161 = vmatprep.subr.mxu0 0.0
    %2162 = vmatpush1.msra.mxu0 0.0
    %2163 = vmatprep.subr.mxu0 0.0
    %2164 = vmatpush1.msra.mxu0 0.0
    %2165 = vmatprep.mubr.f32.mxu0 0.0
    %2166 = vmatmul.mubr.f32.gmra.mrb[0].mxu0 %v1896
    %v2167 = vpop.f32.mrb[0].mxu0
    %v2168 = vadd.f32 %v1878, %v2167
    %v2169 = vpop.f32.mrb[0].mxu0
    %2170 = vmatprep.mubr.f32.mxu0 0.0
    %2171 = vmatmul.mubr.f32.gmra.mrb[0].mxu0 %v1899
    %v2172 = vpop.f32.mrb[0].mxu0
    %v2173 = vadd.f32 %v1883, %v2172
    %v2174 = vpop.f32.mrb[0].mxu0
    %2175 = vmatprep.mubr.f32.mxu0 0.0
    %2176 = vmatmul.mubr.f32.gmra.mrb[0].mxu0 %v1902
    %v2177 = vpop.f32.mrb[0].mxu0
    %v2178 = vadd.f32 %v1888, %v2177
    %v2179 = vpop.f32.mrb[0].mxu0
    %2180 = vmatprep.mubr.f32.mxu0 0.0
    %2181 = vmatmul.mubr.f32.gmra.mrb[0].mxu0 %v1905
    %v2182 = vpop.f32.mrb[0].mxu0
    %v2183 = vadd.f32 %v1893, %v2182
    %v2184 = vpop.f32.mrb[0].mxu0
    %2185 = vdwg.mxu0
    %v2186 = vmax.f32 %v2168, 0.0
    %v2187 = vmax.f32 %v2173, 0.0
    %v2188 = vmax.f32 %v2178, 0.0
    %v2189 = vmax.f32 %v2183, 0.0
    %v2190 = vadd.f32 %v2091, %v2186
    %v2191 = vadd.f32 %v2092, %v2187
    %v2192 = vadd.f32 %v2093, %v2188
    %v2193 = vadd.f32 %v2094, %v2189
    %2194 = vrot.lane.b32.xlu0 %v1870, 32
    %v2195 = vpop.permute.xlu0 %2194
    %2196 = vrot.lane.b32.xlu0 %v1872, 32
    %v2197 = vpop.permute.xlu0 %2196
    %2200 = vmatprep.subr.mxu0 0.0
    %2201 = vmatpush1.msra.mxu0 %v480
    %2202 = vmatprep.subr.mxu0 0.0
    %2203 = vmatpush1.msra.mxu0 %v482
    %2204 = vmatprep.subr.mxu0 0.0
    %2205 = vmatpush1.msra.mxu0 %v2195
    %2206 = vmatprep.subr.mxu0 0.0
    %2207 = vmatpush1.msra.mxu0 %v2197
    %2208 = vmatprep.subr.mxu0 0.0
    %2209 = vmatpush1.msra.mxu0 0.0
    %2210 = vmatprep.subr.mxu0 0.0
    %2211 = vmatpush1.msra.mxu0 0.0
    %2212 = vmatprep.subr.mxu0 0.0
    %2213 = vmatpush1.msra.mxu0 0.0
    %2214 = vmatprep.subr.mxu0 0.0
    %2215 = vmatpush1.msra.mxu0 0.0
    %2216 = vmatprep.subr.mxu0 0.0
    %2217 = vmatpush1.msra.mxu0 0.0
    %2218 = vmatprep.subr.mxu0 0.0
    %2219 = vmatpush1.msra.mxu0 0.0
    %2220 = vmatprep.subr.mxu0 0.0
    %2221 = vmatpush1.msra.mxu0 0.0
    %2222 = vmatprep.subr.mxu0 0.0
    %2223 = vmatpush1.msra.mxu0 0.0
    %2224 = vmatprep.subr.mxu0 0.0
    %2225 = vmatpush1.msra.mxu0 0.0
    %2226 = vmatprep.subr.mxu0 0.0
    %2227 = vmatpush1.msra.mxu0 0.0
    %2228 = vmatprep.subr.mxu0 0.0
    %2229 = vmatpush1.msra.mxu0 0.0
    %2230 = vmatprep.subr.mxu0 0.0
    %2231 = vmatpush1.msra.mxu0 0.0
    %2232 = vmatprep.subr.mxu0 0.0
    %2233 = vmatpush1.msra.mxu0 0.0
    %2234 = vmatprep.subr.mxu0 0.0
    %2235 = vmatpush1.msra.mxu0 0.0
    %2236 = vmatprep.subr.mxu0 0.0
    %2237 = vmatpush1.msra.mxu0 0.0
    %2238 = vmatprep.subr.mxu0 0.0
    %2239 = vmatpush1.msra.mxu0 0.0
    %2240 = vmatprep.subr.mxu0 0.0
    %2241 = vmatpush1.msra.mxu0 0.0
    %2242 = vmatprep.subr.mxu0 0.0
    %2243 = vmatpush1.msra.mxu0 0.0
    %2244 = vmatprep.subr.mxu0 0.0
    %2245 = vmatpush1.msra.mxu0 0.0
    %2246 = vmatprep.subr.mxu0 0.0
    %2247 = vmatpush1.msra.mxu0 0.0
    %2248 = vmatprep.subr.mxu0 0.0
    %2249 = vmatpush1.msra.mxu0 0.0
    %2250 = vmatprep.subr.mxu0 0.0
    %2251 = vmatpush1.msra.mxu0 0.0
    %2252 = vmatprep.subr.mxu0 0.0
    %2253 = vmatpush1.msra.mxu0 0.0
    %2254 = vmatprep.subr.mxu0 0.0
    %2255 = vmatpush1.msra.mxu0 0.0
    %2256 = vmatprep.subr.mxu0 0.0
    %2257 = vmatpush1.msra.mxu0 0.0
    %2258 = vmatprep.subr.mxu0 0.0
    %2259 = vmatpush1.msra.mxu0 0.0
    %2260 = vmatprep.subr.mxu0 0.0
    %2261 = vmatpush1.msra.mxu0 0.0
    %2262 = vmatprep.subr.mxu0 0.0
    %2263 = vmatpush1.msra.mxu0 0.0
    %2264 = vmatprep.mubr.f32.mxu0 0.0
    %2265 = vmatmul.mubr.f32.gmra.mrb[0].mxu0 %v1896
    %v2266 = vpop.f32.mrb[0].mxu0
    %v2267 = vadd.f32 %v1878, %v2266
    %v2268 = vpop.f32.mrb[0].mxu0
    %2269 = vmatprep.mubr.f32.mxu0 0.0
    %2270 = vmatmul.mubr.f32.gmra.mrb[0].mxu0 %v1899
    %v2271 = vpop.f32.mrb[0].mxu0
    %v2272 = vadd.f32 %v1883, %v2271
    %v2273 = vpop.f32.mrb[0].mxu0
    %2274 = vmatprep.mubr.f32.mxu0 0.0
    %2275 = vmatmul.mubr.f32.gmra.mrb[0].mxu0 %v1902
    %v2276 = vpop.f32.mrb[0].mxu0
    %v2277 = vadd.f32 %v1888, %v2276
    %v2278 = vpop.f32.mrb[0].mxu0
    %2279 = vmatprep.mubr.f32.mxu0 0.0
    %2280 = vmatmul.mubr.f32.gmra.mrb[0].mxu0 %v1905
    %v2281 = vpop.f32.mrb[0].mxu0
    %v2282 = vadd.f32 %v1893, %v2281
    %v2283 = vpop.f32.mrb[0].mxu0
    %2284 = vdwg.mxu0
    %v2285 = vmax.f32 %v2267, 0.0
    %v2286 = vmax.f32 %v2272, 0.0
    %v2287 = vmax.f32 %v2277, 0.0
    %v2288 = vmax.f32 %v2282, 0.0
    %v2289 = vadd.f32 %v2190, %v2285
    %v2290 = vadd.f32 %v2191, %v2286
    %v2291 = vadd.f32 %v2192, %v2287
    %v2292 = vadd.f32 %v2193, %v2288
    %v2293 = vmul.f32 %v2289, 0.25
    %v2294 = vmul.f32 %v2290, 0.25
    %v2295 = vmul.f32 %v2291, 0.25
    %v2296 = vmul.f32 %v2292, 0.25
    %s2297 = scalar_lea.vmem %s4, 64
    %v2298 = vld [vmem:[%s2297] sm:$0xff]
    %v2299 = vld [vmem:[%s2297 + $0x8] sm:$0xff]
    %v2300 = vld [vmem:[%s2297 + $0x10] sm:$0xff]
    %v2301 = vld [vmem:[%s2297 + $0x18] sm:$0xff]
    %2303 = vset.pattern.permute.xlu0 2
    %2304 = vperm.xlu0 %2303, %v2298
    %v2305 = vpop.permute.xlu0 %2304
    %2308 = vset.pattern.permute.xlu0 2
    %2309 = vperm.xlu0 %2308, %v2299
    %v2310 = vpop.permute.xlu0 %2309
    %2313 = vset.pattern.permute.xlu0 2
    %2314 = vperm.xlu0 %2313, %v2300
    %v2315 = vpop.permute.xlu0 %2314
    %2318 = vset.pattern.permute.xlu0 2
    %2319 = vperm.xlu0 %2318, %v2301
    %v2320 = vpop.permute.xlu0 %2319
    %v2322 = vmul.f32 %v2305, %v2293
    %v2323 = vmul.f32 %v2310, %v2294
    %v2324 = vmul.f32 %v2315, %v2295
    %v2325 = vmul.f32 %v2320, %v2296
    %2330 = vrot.lane.b32.xlu0 %v2293, 2
    %v2331 = vpop.permute.xlu0 %2330
    %2332 = vrot.lane.b32.xlu0 %v2294, 2
    %v2333 = vpop.permute.xlu0 %2332
    %2334 = vrot.lane.b32.xlu0 %v2295, 2
    %v2335 = vpop.permute.xlu0 %2334
    %2336 = vrot.lane.b32.xlu0 %v2296, 2
    %v2337 = vpop.permute.xlu0 %2336
    %v2342 = vsel %vm632, 0.0, %v2331
    %v2343 = vsel %vm632, 0.0, %v2333
    %v2344 = vsel %vm632, 0.0, %v2335
    %v2345 = vsel %vm632, 0.0, %v2337
    %v2346 = vmul.f32 %v2342, %v642
    %v2347 = vmul.f32 %v2343, %v642
    %v2348 = vmul.f32 %v2344, %v642
    %v2349 = vmul.f32 %v2345, %v642
    %2350 = vset.pattern.permute.xlu0 0
    %2351 = vperm.xlu0 %2350, %v2298
    %v2352 = vpop.permute.xlu0 %2351
    %2354 = vset.pattern.permute.xlu0 0
    %2355 = vperm.xlu0 %2354, %v2299
    %v2356 = vpop.permute.xlu0 %2355
    %2358 = vset.pattern.permute.xlu0 0
    %2359 = vperm.xlu0 %2358, %v2300
    %v2360 = vpop.permute.xlu0 %2359
    %2362 = vset.pattern.permute.xlu0 0
    %2363 = vperm.xlu0 %2362, %v2301
    %v2364 = vpop.permute.xlu0 %2363
    %v2366 = vmul.f32 %v2352, %v2346
    %v2367 = vmul.f32 %v2356, %v2347
    %v2368 = vmul.f32 %v2360, %v2348
    %v2369 = vmul.f32 %v2364, %v2349
    %v2370 = vadd.f32 %v2322, %v2366
    %v2371 = vadd.f32 %v2323, %v2367
    %v2372 = vadd.f32 %v2324, %v2368
    %v2373 = vadd.f32 %v2325, %v2369
    %2374 = vrot.lane.b32.xlu0 %v2293, 1
    %v2375 = vpop.permute.xlu0 %2374
    %2376 = vrot.lane.b32.xlu0 %v2294, 1
    %v2377 = vpop.permute.xlu0 %2376
    %2378 = vrot.lane.b32.xlu0 %v2295, 1
    %v2379 = vpop.permute.xlu0 %2378
    %2380 = vrot.lane.b32.xlu0 %v2296, 1
    %v2381 = vpop.permute.xlu0 %2380
    %v2386 = vsel %vm684, 0.0, %v2375
    %v2387 = vsel %vm684, 0.0, %v2377
    %v2388 = vsel %vm684, 0.0, %v2379
    %v2389 = vsel %vm684, 0.0, %v2381
    %v2390 = vmul.f32 %v2386, %v695
    %v2391 = vmul.f32 %v2387, %v695
    %v2392 = vmul.f32 %v2388, %v695
    %v2393 = vmul.f32 %v2389, %v695
    %2394 = vset.pattern.permute.xlu0 1
    %2395 = vperm.xlu0 %2394, %v2298
    %v2396 = vpop.permute.xlu0 %2395
    %2398 = vset.pattern.permute.xlu0 1
    %2399 = vperm.xlu0 %2398, %v2299
    %v2400 = vpop.permute.xlu0 %2399
    %2402 = vset.pattern.permute.xlu0 1
    %2403 = vperm.xlu0 %2402, %v2300
    %v2404 = vpop.permute.xlu0 %2403
    %2406 = vset.pattern.permute.xlu0 1
    %2407 = vperm.xlu0 %2406, %v2301
    %v2408 = vpop.permute.xlu0 %2407
    %v2410 = vmul.f32 %v2396, %v2390
    %v2411 = vmul.f32 %v2400, %v2391
    %v2412 = vmul.f32 %v2404, %v2392
    %v2413 = vmul.f32 %v2408, %v2393
    %v2414 = vadd.f32 %v2370, %v2410
    %v2415 = vadd.f32 %v2371, %v2411
    %v2416 = vadd.f32 %v2372, %v2412
    %v2417 = vadd.f32 %v2373, %v2413
    %2418 = vrot.lane.b32.xlu0 %v2293, 127
    %v2419 = vpop.permute.xlu0 %2418
    %2420 = vrot.lane.b32.xlu0 %v2294, 127
    %v2421 = vpop.permute.xlu0 %2420
    %2422 = vrot.lane.b32.xlu0 %v2295, 127
    %v2423 = vpop.permute.xlu0 %2422
    %2424 = vrot.lane.b32.xlu0 %v2296, 127
    %v2425 = vpop.permute.xlu0 %2424
    %vm2430 = vcmask 56320
    %v2431 = vsel %vm2430, %v2419, 0.0
    %v2432 = vsel %vm2430, %v2421, 0.0
    %v2433 = vsel %vm2430, %v2423, 0.0
    %v2434 = vsel %vm2430, %v2425, 0.0
    %v2435 = vmul.f32 %v2431, %v748
    %v2436 = vmul.f32 %v2432, %v748
    %v2437 = vmul.f32 %v2433, %v748
    %v2438 = vmul.f32 %v2434, %v748
    %2439 = vset.pattern.permute.xlu0 3
    %2440 = vperm.xlu0 %2439, %v2298
    %v2441 = vpop.permute.xlu0 %2440
    %2443 = vset.pattern.permute.xlu0 3
    %2444 = vperm.xlu0 %2443, %v2299
    %v2445 = vpop.permute.xlu0 %2444
    %2447 = vset.pattern.permute.xlu0 3
    %2448 = vperm.xlu0 %2447, %v2300
    %v2449 = vpop.permute.xlu0 %2448
    %2451 = vset.pattern.permute.xlu0 3
    %2452 = vperm.xlu0 %2451, %v2301
    %v2453 = vpop.permute.xlu0 %2452
    %v2455 = vmul.f32 %v2441, %v2435
    %v2456 = vmul.f32 %v2445, %v2436
    %v2457 = vmul.f32 %v2449, %v2437
    %v2458 = vmul.f32 %v2453, %v2438
    %v2459 = vadd.f32 %v2414, %v2455
    %v2460 = vadd.f32 %v2415, %v2456
    %v2461 = vadd.f32 %v2416, %v2457
    %v2462 = vadd.f32 %v2417, %v2458
    %s2463 = scalar_lea.vmem %s5, 64
    %v2464 = vld [vmem:[%s2463] sm:$0xff]
    %v2465 = vld [vmem:[%s2463 + $0x8] sm:$0xff]
    %v2466 = vld [vmem:[%s2463 + $0x10] sm:$0xff]
    %v2467 = vld [vmem:[%s2463 + $0x18] sm:$0xff]
    %s2468 = scalar_lea.vmem %s6, 64
    %v2469 = vld [vmem:[%s2468] sm:$0xff]
    %v2470 = vld [vmem:[%s2468 + $0x8] sm:$0xff]
    %v2471 = vld [vmem:[%s2468 + $0x10] sm:$0xff]
    %v2472 = vld [vmem:[%s2468 + $0x18] sm:$0xff]
    %2474 = vset.pattern.permute.xlu0 0
    %2475 = vperm.xlu0 %2474, %v2469
    %v2476 = vpop.permute.xlu0 %2475
    %2479 = vset.pattern.permute.xlu0 0
    %2480 = vperm.xlu0 %2479, %v2470
    %v2481 = vpop.permute.xlu0 %2480
    %2484 = vset.pattern.permute.xlu0 0
    %2485 = vperm.xlu0 %2484, %v2471
    %v2486 = vpop.permute.xlu0 %2485
    %2489 = vset.pattern.permute.xlu0 0
    %2490 = vperm.xlu0 %2489, %v2472
    %v2491 = vpop.permute.xlu0 %2490
    %v2494 = vsel %vm167, %v2464, 0
    %v2497 = vsel %vm167, %v2465, 0
    %v2500 = vsel %vm167, %v2466, 0
    %v2503 = vsel %vm167, %v2467, 0
    %2505 = vmatprep.subr.mxu0 0.0
    %2506 = vmatpush1.msra.mxu0 %v2459
    %2507 = vmatprep.subr.mxu0 0.0
    %2508 = vmatpush1.msra.mxu0 %v2460
    %2509 = vmatprep.subr.mxu0 0.0
    %2510 = vmatpush1.msra.mxu0 %v2461
    %2511 = vmatprep.subr.mxu0 0.0
    %2512 = vmatpush1.msra.mxu0 %v2462
    %2513 = vmatprep.subr.mxu0 0.0
    %2514 = vmatpush1.msra.mxu0 0.0
    %2515 = vmatprep.subr.mxu0 0.0
    %2516 = vmatpush1.msra.mxu0 0.0
    %2517 = vmatprep.subr.mxu0 0.0
    %2518 = vmatpush1.msra.mxu0 0.0
    %2519 = vmatprep.subr.mxu0 0.0
    %2520 = vmatpush1.msra.mxu0 0.0
    %2521 = vmatprep.subr.mxu0 0.0
    %2522 = vmatpush1.msra.mxu0 0.0
    %2523 = vmatprep.subr.mxu0 0.0
    %2524 = vmatpush1.msra.mxu0 0.0
    %2525 = vmatprep.subr.mxu0 0.0
    %2526 = vmatpush1.msra.mxu0 0.0
    %2527 = vmatprep.subr.mxu0 0.0
    %2528 = vmatpush1.msra.mxu0 0.0
    %2529 = vmatprep.subr.mxu0 0.0
    %2530 = vmatpush1.msra.mxu0 0.0
    %2531 = vmatprep.subr.mxu0 0.0
    %2532 = vmatpush1.msra.mxu0 0.0
    %2533 = vmatprep.subr.mxu0 0.0
    %2534 = vmatpush1.msra.mxu0 0.0
    %2535 = vmatprep.subr.mxu0 0.0
    %2536 = vmatpush1.msra.mxu0 0.0
    %2537 = vmatprep.subr.mxu0 0.0
    %2538 = vmatpush1.msra.mxu0 0.0
    %2539 = vmatprep.subr.mxu0 0.0
    %2540 = vmatpush1.msra.mxu0 0.0
    %2541 = vmatprep.subr.mxu0 0.0
    %2542 = vmatpush1.msra.mxu0 0.0
    %2543 = vmatprep.subr.mxu0 0.0
    %2544 = vmatpush1.msra.mxu0 0.0
    %2545 = vmatprep.subr.mxu0 0.0
    %2546 = vmatpush1.msra.mxu0 0.0
    %2547 = vmatprep.subr.mxu0 0.0
    %2548 = vmatpush1.msra.mxu0 0.0
    %2549 = vmatprep.subr.mxu0 0.0
    %2550 = vmatpush1.msra.mxu0 0.0
    %2551 = vmatprep.subr.mxu0 0.0
    %2552 = vmatpush1.msra.mxu0 0.0
    %2553 = vmatprep.subr.mxu0 0.0
    %2554 = vmatpush1.msra.mxu0 0.0
    %2555 = vmatprep.subr.mxu0 0.0
    %2556 = vmatpush1.msra.mxu0 0.0
    %2557 = vmatprep.subr.mxu0 0.0
    %2558 = vmatpush1.msra.mxu0 0.0
    %2559 = vmatprep.subr.mxu0 0.0
    %2560 = vmatpush1.msra.mxu0 0.0
    %2561 = vmatprep.subr.mxu0 0.0
    %2562 = vmatpush1.msra.mxu0 0.0
    %2563 = vmatprep.subr.mxu0 0.0
    %2564 = vmatpush1.msra.mxu0 0.0
    %2565 = vmatprep.subr.mxu0 0.0
    %2566 = vmatpush1.msra.mxu0 0.0
    %2567 = vmatprep.subr.mxu0 0.0
    %2568 = vmatpush1.msra.mxu0 0.0
    %2569 = vmatprep.mubr.f32.mxu0 0.0
    %2570 = vmatmul.mubr.f32.gmra.mrb[0].mxu0 %v2494
    %v2571 = vpop.f32.mrb[0].mxu0
    %v2572 = vadd.f32 %v2476, %v2571
    %v2573 = vpop.f32.mrb[0].mxu0
    %2574 = vmatprep.mubr.f32.mxu0 0.0
    %2575 = vmatmul.mubr.f32.gmra.mrb[0].mxu0 %v2497
    %v2576 = vpop.f32.mrb[0].mxu0
    %v2577 = vadd.f32 %v2481, %v2576
    %v2578 = vpop.f32.mrb[0].mxu0
    %2579 = vmatprep.mubr.f32.mxu0 0.0
    %2580 = vmatmul.mubr.f32.gmra.mrb[0].mxu0 %v2500
    %v2581 = vpop.f32.mrb[0].mxu0
    %v2582 = vadd.f32 %v2486, %v2581
    %v2583 = vpop.f32.mrb[0].mxu0
    %2584 = vmatprep.mubr.f32.mxu0 0.0
    %2585 = vmatmul.mubr.f32.gmra.mrb[0].mxu0 %v2503
    %v2586 = vpop.f32.mrb[0].mxu0
    %v2587 = vadd.f32 %v2491, %v2586
    %v2588 = vpop.f32.mrb[0].mxu0
    %2589 = vdwg.mxu0
    %v2590 = vmax.f32 %v2572, 0.0
    %v2591 = vmax.f32 %v2577, 0.0
    %v2592 = vmax.f32 %v2582, 0.0
    %v2593 = vmax.f32 %v2587, 0.0
    %s2594 = scalar_lea.vmem %s7, 64
    %v2595 = vld [vmem:[%s2594] sm:$0xff]
    %v2596 = vld [vmem:[%s2594 + $0x8] sm:$0xff]
    %v2597 = vld [vmem:[%s2594 + $0x10] sm:$0xff]
    %v2598 = vld [vmem:[%s2594 + $0x18] sm:$0xff]
    %v2599 = vmul.f32 %v2590, %v2595
    %v2600 = vmul.f32 %v2591, %v2596
    %v2601 = vmul.f32 %v2592, %v2597
    %v2602 = vmul.f32 %v2593, %v2598
    %v2603 = vld [vmem:[%s9] sm:$0xff]
    %vm2604 = vcmask 64512
    %v2606 = vsel %vm2604, %v2599, 0
    %v2609 = vsel %vm2604, %v2600, 0
    %v2612 = vsel %vm2604, %v2601, 0
    %v2615 = vsel %vm2604, %v2602, 0
    %2617 = vmatprep.subr.mxu0 0.0
    %2618 = vmatpush1.msra.mxu0 %v2603
    %2619 = vmatprep.subr.mxu0 0.0
    %2620 = vmatpush1.msra.mxu0 0.0
    %2621 = vmatprep.subr.mxu0 0.0
    %2622 = vmatpush1.msra.mxu0 0.0
    %2623 = vmatprep.subr.mxu0 0.0
    %2624 = vmatpush1.msra.mxu0 0.0
    %2625 = vmatprep.subr.mxu0 0.0
    %2626 = vmatpush1.msra.mxu0 0.0
    %2627 = vmatprep.subr.mxu0 0.0
    %2628 = vmatpush1.msra.mxu0 0.0
    %2629 = vmatprep.subr.mxu0 0.0
    %2630 = vmatpush1.msra.mxu0 0.0
    %2631 = vmatprep.subr.mxu0 0.0
    %2632 = vmatpush1.msra.mxu0 0.0
    %2633 = vmatprep.subr.mxu0 0.0
    %2634 = vmatpush1.msra.mxu0 0.0
    %2635 = vmatprep.subr.mxu0 0.0
    %2636 = vmatpush1.msra.mxu0 0.0
    %2637 = vmatprep.subr.mxu0 0.0
    %2638 = vmatpush1.msra.mxu0 0.0
    %2639 = vmatprep.subr.mxu0 0.0
    %2640 = vmatpush1.msra.mxu0 0.0
    %2641 = vmatprep.subr.mxu0 0.0
    %2642 = vmatpush1.msra.mxu0 0.0
    %2643 = vmatprep.subr.mxu0 0.0
    %2644 = vmatpush1.msra.mxu0 0.0
    %2645 = vmatprep.subr.mxu0 0.0
    %2646 = vmatpush1.msra.mxu0 0.0
    %2647 = vmatprep.subr.mxu0 0.0
    %2648 = vmatpush1.msra.mxu0 0.0
    %2649 = vmatprep.subr.mxu0 0.0
    %2650 = vmatpush1.msra.mxu0 0.0
    %2651 = vmatprep.subr.mxu0 0.0
    %2652 = vmatpush1.msra.mxu0 0.0
    %2653 = vmatprep.subr.mxu0 0.0
    %2654 = vmatpush1.msra.mxu0 0.0
    %2655 = vmatprep.subr.mxu0 0.0
    %2656 = vmatpush1.msra.mxu0 0.0
    %2657 = vmatprep.subr.mxu0 0.0
    %2658 = vmatpush1.msra.mxu0 0.0
    %2659 = vmatprep.subr.mxu0 0.0
    %2660 = vmatpush1.msra.mxu0 0.0
    %2661 = vmatprep.subr.mxu0 0.0
    %2662 = vmatpush1.msra.mxu0 0.0
    %2663 = vmatprep.subr.mxu0 0.0
    %2664 = vmatpush1.msra.mxu0 0.0
    %2665 = vmatprep.subr.mxu0 0.0
    %2666 = vmatpush1.msra.mxu0 0.0
    %2667 = vmatprep.subr.mxu0 0.0
    %2668 = vmatpush1.msra.mxu0 0.0
    %2669 = vmatprep.subr.mxu0 0.0
    %2670 = vmatpush1.msra.mxu0 0.0
    %2671 = vmatprep.subr.mxu0 0.0
    %2672 = vmatpush1.msra.mxu0 0.0
    %2673 = vmatprep.subr.mxu0 0.0
    %2674 = vmatpush1.msra.mxu0 0.0
    %2675 = vmatprep.subr.mxu0 0.0
    %2676 = vmatpush1.msra.mxu0 0.0
    %2677 = vmatprep.subr.mxu0 0.0
    %2678 = vmatpush1.msra.mxu0 0.0
    %2679 = vmatprep.subr.mxu0 0.0
    %2680 = vmatpush1.msra.mxu0 0.0
    %2681 = vmatprep.mubr.f32.mxu0 0.0
    %2682 = vmatmul.mubr.f32.gmra.mrb[0].mxu0 %v2606
    %v2683 = vpop.f32.mrb[0].mxu0
    %v2684 = vadd.f32 0.0, %v2683
    %v2685 = vpop.f32.mrb[0].mxu0
    %2686 = vmatprep.mubr.f32.mxu0 0.0
    %2687 = vmatmul.mubr.f32.gmra.mrb[0].mxu0 %v2609
    %v2688 = vpop.f32.mrb[0].mxu0
    %v2689 = vadd.f32 0.0, %v2688
    %v2690 = vpop.f32.mrb[0].mxu0
    %2691 = vmatprep.mubr.f32.mxu0 0.0
    %2692 = vmatmul.mubr.f32.gmra.mrb[0].mxu0 %v2612
    %v2693 = vpop.f32.mrb[0].mxu0
    %v2694 = vadd.f32 0.0, %v2693
    %v2695 = vpop.f32.mrb[0].mxu0
    %2696 = vmatprep.mubr.f32.mxu0 0.0
    %2697 = vmatmul.mubr.f32.gmra.mrb[0].mxu0 %v2615
    %v2698 = vpop.f32.mrb[0].mxu0
    %v2699 = vadd.f32 0.0, %v2698
    %v2700 = vpop.f32.mrb[0].mxu0
    %2701 = vdwg.mxu0
    %v2702 = vadd.f32 %v1841, %v2684
    %v2703 = vadd.f32 %v1846, %v2689
    %v2704 = vadd.f32 %v1851, %v2694
    %v2705 = vadd.f32 %v1856, %v2699
    %v2706 = vsel %vm632, %v2702, 0.0
    %v2707 = vsel %vm632, %v2703, 0.0
    %v2708 = vadd.f32 %v2706, %v2707
    %v2709 = vsel %vm632, %v2704, 0.0
    %v2710 = vadd.f32 %v2708, %v2709
    %v2711 = vsel %vm632, %v2705, 0.0
    %v2712 = vadd.f32 %v2710, %v2711
    %v2713 = vrot.slane %v2712, 4
    %v2714 = vadd.f32 %v2712, %v2713
    %v2715 = vrot.slane %v2714, 2
    %v2716 = vadd.f32 %v2714, %v2715
    %v2717 = vrot.slane %v2716, 1
    %v2718 = vadd.f32 %v2716, %v2717
    %v2719 = vld [vmem:[#allocation3] sm:$0x1]
    %2721 = vset.pattern.permute.xlu0 0
    %2722 = vperm.xlu0 %2721, %v2719
    %v2723 = vpop.permute.xlu0 %2722
    %v2725 = vlaneseq
    %v2726 = vshrl.u32 %v2725, 7
    %v2727 = vsub.s32 0, %v2726
    %v2728 = vrot.slane %v2723, %v2727
    %v2729 = vadd.f32 %v2718, %v2728
    %vm2730 = vcmask 8192
    %2731 = vst.msk [vmem:[#allocation4] sm:$0x1] %vm2730, %v2729
    // Predicated region
    $region46: #{tpu_custom_call.1} parent=1 // pred_check
      _
    $region47: #{tpu_custom_call.1} parent=1 // pred_check_branch
      %2733 = sbr.rel (0) target = $region49
    $region48: #{tpu_custom_call.1} parent=1 // pred_region
      %s2735 = ssub.s32 16, 16
      %2736 = vsyncadd [#allocation5], %s2735
      %s2738 = sshll.u32 [#allocation4], 4
      %s2739 = int_to_ptr.vmem [resolvable:$true] %s2738
      %2741 = dma.vmem_to_hbm [thread:$0]  %s2739, 16, %s11, [#allocation5]
    $region49: #{tpu_custom_call.1} parent=1 // pred_fallthru
      _
    // Predicated region
    $region50: #{tpu_custom_call.1} parent=1 // pred_check
      _
    $region51: #{tpu_custom_call.1} parent=1 // pred_check_branch
      %2743 = sbr.rel (0) target = $region53
    $region52: #{tpu_custom_call.1} parent=1 // pred_region
      %2744 = dma.done [#allocation5], 16
    $region53: #{tpu_custom_call.1} parent=1 // pred_fallthru
      _
    %2745 = vsyncpa [#allocation5], 1

</llo_original>
